<compile_context>
chip_gen: v6e
topology: v6e:2x2x1
jax: 0.10.0
libtpu: 0.0.40
codegen_flags: <defaults>
</compile_context>

<pallas_src>
import numpy as np
import jax
import jax.numpy as jnp
from jax.experimental import pallas as pl
from jax.experimental.pallas import tpu as pltpu


def _vmem():
    return pl.BlockSpec(memory_space=pltpu.MemorySpace.VMEM)


# ------------------------------ Pallas kernel ------------------------------ #

def _cardchecker_kernel(x_ref, m1_ref, s1_ref, m2_ref, s2_ref, m3_ref, s3_ref,
                        m4_ref, s4_ref, m5_ref, b5_ref, o_ref):
    """Full CardChecker forward; all intermediates live in VMEM."""

    def conv_block(a, m_ref, s_ref, *, leaky, avg):
        # conv (+ folded BN scale) as a single matmul; columns are
        # (phase, h_out, w_out, c_out) with the 4 pool phases contiguous.
        y = jnp.dot(a, m_ref[...], preferred_element_type=jnp.float32)
        y = y + s_ref[...]                          # BN shift (eval mode)
        if leaky:
            y = jnp.where(y > 0, y, 0.01 * y)       # nn.LeakyReLU (default slope)
        else:
            y = jnp.maximum(y, 0.0)                 # nn.ReLU
        f = y.shape[1] // 4
        p0 = y[:, 0:f]
        p1 = y[:, f:2 * f]
        p2 = y[:, 2 * f:3 * f]
        p3 = y[:, 3 * f:4 * f]
        if avg:                                     # nn.AvgPool2d(2, 2)
            return (p0 + p1 + p2 + p3) * 0.25
        return jnp.maximum(jnp.maximum(p0, p1), jnp.maximum(p2, p3))  # MaxPool2d

    a = conv_block(x_ref[...], m1_ref, s1_ref, leaky=True, avg=True)    # layer1
    a = conv_block(a, m2_ref, s2_ref, leaky=False, avg=False)           # layer2
    a = conv_block(a, m3_ref, s3_ref, leaky=False, avg=False)           # layer3

    # layer4: Linear (no bias, BN scale folded into m4) + BN shift + ReLU
    z = jnp.dot(a, m4_ref[...], preferred_element_type=jnp.float32) + s4_ref[...]
    z = jnp.maximum(z, 0.0)
    # layer5: Linear + bias
    o_ref[...] = (jnp.dot(z, m5_ref[...], preferred_element_type=jnp.float32)
                  + b5_ref[...])


# ------------------------- operator / param folding ------------------------ #

def _conv_pool_operator(w_oihw, bn_scale, bn_shift, H, W, pad):
    """Dense operator for a stride-1 conv with zero padding `pad` whose input is
    a flattened (h, w, c_in) image and whose output columns are the flattened
    (phase, h_out, w_out, c_out) pre-pool activations (phase = 2x2 pool offset).
    The eval-mode BatchNorm scale is folded into the columns; the matching
    per-column shift row is returned alongside."""
    w = np.asarray(w_oihw, np.float32)              # (Cout, Cin, KH, KW)
    Cout, Cin, KH, KW = w.shape
    Ho, Wo = H // 2, W // 2
    M = np.zeros((H, W, Cin, 2, 2, Ho, Wo, Cout), np.float32)
    for di in range(2):
        for dj in range(2):
            for ho in range(Ho):
                for wo in range(Wo):
                    oy, ox = 2 * ho + di, 2 * wo + dj      # pre-pool output pixel
                    for ky in range(KH):
                        hi = oy + ky - pad
                        if not 0 <= hi < H:
                            continue
                        for kx in range(KW):
                            wi = ox + kx - pad
                            if 0 <= wi < W:
                                M[hi, wi, :, di, dj, ho, wo, :] += w[:, :, ky, kx].T
    M = M.reshape(H * W * Cin, 4 * Ho * Wo * Cout)
    scale = np.asarray(bn_scale, np.float32).reshape(-1)
    shift = np.asarray(bn_shift, np.float32).reshape(-1)
    M = M * np.tile(scale, 4 * Ho * Wo)[None, :]
    shift_row = np.tile(shift, 4 * Ho * Wo)[None, :]
    return M, shift_row


def prepare_params(p, C, H, W):
    """One-time folding of torch-style params into kernel-ready operators."""
    assert H % 8 == 0 and W % 8 == 0
    H1, W1 = H, W
    H2, W2 = H // 2, W // 2
    H3, W3 = H // 4, W // 4
    H4, W4 = H // 8, W // 8

    m1, s1 = _conv_pool_operator(p["w1"], p["bn1"][0], p["bn1"][1], H1, W1, pad=2)
    # raw input arrives flattened in torch NCHW (c, h, w) order -> permute rows
    m1 = m1.reshape(H1, W1, C, -1).transpose(2, 0, 1, 3).reshape(C * H1 * W1, -1)
    m2, s2 = _conv_pool_operator(p["w2"], p["bn2"][0], p["bn2"][1], H2, W2, pad=1)
    m3, s3 = _conv_pool_operator(p["w3"], p["bn3"][0], p["bn3"][1], H3, W3, pad=1)

    # head: torch flatten is (c, h, w); kernel activation is (h, w, c)
    L3_C = p["w3"].shape[0]
    L4_N, feat = p["w4"].shape
    w4 = np.asarray(p["w4"], np.float32).reshape(L4_N, L3_C, H4, W4)
    w4 = w4.transpose(0, 2, 3, 1).reshape(L4_N, feat)        # cols -> (h, w, c)
    scale4 = np.asarray(p["bn4"][0], np.float32).reshape(-1)
    shift4 = np.asarray(p["bn4"][1], np.float32).reshape(1, -1)
    m4 = w4.T * scale4[None, :]                              # (feat, L4_N)
    m5 = np.asarray(p["w5"], np.float32).T                   # (L4_N, 2)
    b5 = np.asarray(p["b5"], np.float32).reshape(1, -1)

    arrs = (m1, s1, m2, s2, m3, s3, m4, shift4, m5, b5)
    return tuple(jnp.asarray(a, jnp.float32) for a in arrs)


# --------------------------------- forward --------------------------------- #

def forward(prep, x_nchw):
    n = x_nchw.shape[0]
    x_flat = x_nchw.reshape(n, -1).astype(jnp.float32)       # (c, h, w) flatten order
    return pl.pallas_call(
        _cardchecker_kernel,
        out_shape=jax.ShapeDtypeStruct((n, 2), jnp.float32),
        in_specs=[_vmem() for _ in range(11)],
        out_specs=_vmem(),
    )(x_flat, *prep)


# -------------------------- deterministic params --------------------------- #

def _bn_fold(key, c):
    k1, k2, k3, k4 = jax.random.split(key, 4)
    gamma = 1.0 + 0.1 * jax.random.normal(k1, (c,), jnp.float32)
    beta = 0.1 * jax.random.normal(k2, (c,), jnp.float32)
    mean = 0.1 * jax.random.normal(k3, (c,), jnp.float32)
    var = 0.5 + 0.5 * jax.random.uniform(k4, (c,), jnp.float32)
    scale = gamma / jnp.sqrt(var + 1e-5)
    shift = beta - mean * scale
    return scale.reshape(1, c), shift.reshape(1, c)


def init_params(key, C, H, W):
    L1_C, L2_C, L3_C, L4_N = 4, 4, 8, 8
    feat = L3_C * (H // 8) * (W // 8)
    ks = jax.random.split(key, 9)
    p = {}
    p["w1"] = 0.1 * jax.random.normal(ks[0], (L1_C, C, 5, 5), jnp.float32)    # OIHW
    p["bn1"] = _bn_fold(ks[1], L1_C)
    p["w2"] = 0.1 * jax.random.normal(ks[2], (L2_C, L1_C, 3, 3), jnp.float32)
    p["bn2"] = _bn_fold(ks[3], L2_C)
    p["w3"] = 0.1 * jax.random.normal(ks[4], (L3_C, L2_C, 3, 3), jnp.float32)
    p["bn3"] = _bn_fold(ks[5], L3_C)
    p["w4"] = 0.1 * jax.random.normal(ks[6], (L4_N, feat), jnp.float32)       # (out, in)
    p["bn4"] = _bn_fold(ks[7], L4_N)
    k5a, k5b = jax.random.split(ks[8])
    p["w5"] = 0.1 * jax.random.normal(k5a, (2, L4_N), jnp.float32)
    p["b5"] = 0.1 * jax.random.normal(k5b, (1, 2), jnp.float32)
    return p


# ------------------------- pure-JAX reference path ------------------------- #

def ref_forward(p, x_nchw):
    x = jnp.transpose(x_nchw, (0, 2, 3, 1)).astype(jnp.float32)

    def block(x, w_oihw, scale, shift, pad, act, pool):
        w_hwio = jnp.transpose(w_oihw, (2, 3, 1, 0))
        y = jax.lax.conv_general_dilated(
            x, w_hwio, window_strides=(1, 1), padding=[(pad, pad), (pad, pad)],
            dimension_numbers=("NHWC", "HWIO", "NHWC"))
        y = y * scale.reshape(1, 1, 1, -1) + shift.reshape(1, 1, 1, -1)
        y = jnp.where(y > 0, y, 0.01 * y) if act == "leaky_relu" else jnp.maximum(y, 0.0)
        if pool == "avg":
            y = jax.lax.reduce_window(y, 0.0, jax.lax.add,
                                      (1, 2, 2, 1), (1, 2, 2, 1), "VALID") * 0.25
        else:
            y = jax.lax.reduce_window(y, -jnp.inf, jax.lax.max,
                                      (1, 2, 2, 1), (1, 2, 2, 1), "VALID")
        return y

    h = block(x, p["w1"], *p["bn1"], 2, "leaky_relu", "avg")
    h = block(h, p["w2"], *p["bn2"], 1, "relu", "max")
    h = block(h, p["w3"], *p["bn3"], 1, "relu", "max")
    N = h.shape[0]
    feat = jnp.transpose(h, (0, 3, 1, 2)).reshape(N, -1)      # torch flatten (c, h, w)
    z = feat @ p["w4"].T
    z = z * p["bn4"][0] + p["bn4"][1]
    z = jnp.maximum(z, 0.0)
    return z @ p["w5"].T + p["b5"]


# ---------------------------------- main ------------------------------------ #

if __name__ == "__main__":
    C, H, W = 4, 16, 16
    N = 2
    key = jax.random.PRNGKey(0)
    kx, kp = jax.random.split(key)
    x = jax.random.normal(kx, (N, C, H, W), jnp.float32)
    params = init_params(kp, C, H, W)
    prep = prepare_params(params, C, H, W)      # one-time folding, not per call

    fwd = jax.jit(forward)
    y = jax.block_until_ready(fwd(prep, x))

    y_ref = ref_forward(params, x)
    assert y.shape == (N, 2), y.shape
    # slightly looser than before: kernel uses exact dense conv-operators on the
    # MXU while the reference uses XLA's default-precision conv path.
    assert bool(jnp.allclose(y, y_ref, rtol=2e-3, atol=2e-4)), (y, y_ref)
    print("KERNEL_OK")
</pallas_src>

<mosaic_0001>
module attributes {stable_mosaic.version = 11 : i64} {
  func.func @_cardchecker_kernel(%arg0: memref<2x1024xf32, #tpu.memory_space<vmem>>, %arg1: memref<1024x1024xf32, #tpu.memory_space<vmem>>, %arg2: memref<1x1024xf32, #tpu.memory_space<vmem>>, %arg3: memref<256x256xf32, #tpu.memory_space<vmem>>, %arg4: memref<1x256xf32, #tpu.memory_space<vmem>>, %arg5: memref<64x128xf32, #tpu.memory_space<vmem>>, %arg6: memref<1x128xf32, #tpu.memory_space<vmem>>, %arg7: memref<32x8xf32, #tpu.memory_space<vmem>>, %arg8: memref<1x8xf32, #tpu.memory_space<vmem>>, %arg9: memref<8x2xf32, #tpu.memory_space<vmem>>, %arg10: memref<1x2xf32, #tpu.memory_space<vmem>>, %arg11: memref<2x2xf32, #tpu.memory_space<vmem>>) attributes {dimension_semantics = [], scalar_prefetch = 0 : i64, scratch_operands = 0 : i64, tpu.core_type = #tpu.core_type<tc>} {
    %c0 = arith.constant 0 : index
    %c0_0 = arith.constant 0 : index
    %0 = vector.load %arg0[%c0, %c0_0] : memref<2x1024xf32, #tpu.memory_space<vmem>>, vector<2x1024xf32>
    %c0_1 = arith.constant 0 : index
    %c0_2 = arith.constant 0 : index
    %1 = vector.load %arg1[%c0_1, %c0_2] : memref<1024x1024xf32, #tpu.memory_space<vmem>>, vector<1024x1024xf32>
    %cst = arith.constant dense<0.000000e+00> : vector<2x1024xf32>
    %2 = tpu.matmul %0, %1, %cst {dimension_numbers = #tpu.dot_dimension_numbers<[1], [0], [0], [1], [0, 0, 1, 1], [], []>} : vector<2x1024xf32>, vector<1024x1024xf32>, vector<2x1024xf32> -> vector<2x1024xf32>
    %c0_3 = arith.constant 0 : index
    %c0_4 = arith.constant 0 : index
    %3 = vector.load %arg2[%c0_3, %c0_4] : memref<1x1024xf32, #tpu.memory_space<vmem>>, vector<1x1024xf32>
    %4 = vector.broadcast %3 : vector<1x1024xf32> to vector<2x1024xf32>
    %5 = arith.addf %2, %4 : vector<2x1024xf32>
    %cst_5 = arith.constant 0.000000e+00 : f32
    %6 = vector.broadcast %cst_5 : f32 to vector<2x1024xf32>
    %7 = arith.cmpf ogt, %5, %6 : vector<2x1024xf32>
    %cst_6 = arith.constant 0.00999999977 : f32
    %8 = vector.broadcast %cst_6 : f32 to vector<2x1024xf32>
    %9 = arith.mulf %8, %5 : vector<2x1024xf32>
    %10 = arith.select %7, %5, %9 : vector<2x1024xi1>, vector<2x1024xf32>
    %11 = vector.extract_strided_slice %10 {offsets = [0, 0], sizes = [2, 256], strides = [1, 1]} : vector<2x1024xf32> to vector<2x256xf32>
    %12 = vector.extract_strided_slice %10 {offsets = [0, 256], sizes = [2, 256], strides = [1, 1]} : vector<2x1024xf32> to vector<2x256xf32>
    %13 = vector.extract_strided_slice %10 {offsets = [0, 512], sizes = [2, 256], strides = [1, 1]} : vector<2x1024xf32> to vector<2x256xf32>
    %14 = vector.extract_strided_slice %10 {offsets = [0, 768], sizes = [2, 256], strides = [1, 1]} : vector<2x1024xf32> to vector<2x256xf32>
    %15 = arith.addf %11, %12 : vector<2x256xf32>
    %16 = arith.addf %15, %13 : vector<2x256xf32>
    %17 = arith.addf %16, %14 : vector<2x256xf32>
    %cst_7 = arith.constant 2.500000e-01 : f32
    %18 = vector.broadcast %cst_7 : f32 to vector<2x256xf32>
    %19 = arith.mulf %17, %18 : vector<2x256xf32>
    %c0_8 = arith.constant 0 : index
    %c0_9 = arith.constant 0 : index
    %20 = vector.load %arg3[%c0_8, %c0_9] : memref<256x256xf32, #tpu.memory_space<vmem>>, vector<256x256xf32>
    %cst_10 = arith.constant dense<0.000000e+00> : vector<2x256xf32>
    %21 = tpu.matmul %19, %20, %cst_10 {dimension_numbers = #tpu.dot_dimension_numbers<[1], [0], [0], [1], [0, 0, 1, 1], [], []>} : vector<2x256xf32>, vector<256x256xf32>, vector<2x256xf32> -> vector<2x256xf32>
    %c0_11 = arith.constant 0 : index
    %c0_12 = arith.constant 0 : index
    %22 = vector.load %arg4[%c0_11, %c0_12] : memref<1x256xf32, #tpu.memory_space<vmem>>, vector<1x256xf32>
    %23 = vector.broadcast %22 : vector<1x256xf32> to vector<2x256xf32>
    %24 = arith.addf %21, %23 : vector<2x256xf32>
    %cst_13 = arith.constant 0.000000e+00 : f32
    %25 = vector.broadcast %cst_13 : f32 to vector<2x256xf32>
    %26 = arith.maximumf %24, %25 : vector<2x256xf32>
    %27 = vector.extract_strided_slice %26 {offsets = [0, 0], sizes = [2, 64], strides = [1, 1]} : vector<2x256xf32> to vector<2x64xf32>
    %28 = vector.extract_strided_slice %26 {offsets = [0, 64], sizes = [2, 64], strides = [1, 1]} : vector<2x256xf32> to vector<2x64xf32>
    %29 = vector.extract_strided_slice %26 {offsets = [0, 128], sizes = [2, 64], strides = [1, 1]} : vector<2x256xf32> to vector<2x64xf32>
    %30 = vector.extract_strided_slice %26 {offsets = [0, 192], sizes = [2, 64], strides = [1, 1]} : vector<2x256xf32> to vector<2x64xf32>
    %31 = arith.maximumf %27, %28 : vector<2x64xf32>
    %32 = arith.maximumf %29, %30 : vector<2x64xf32>
    %33 = arith.maximumf %31, %32 : vector<2x64xf32>
    %c0_14 = arith.constant 0 : index
    %c0_15 = arith.constant 0 : index
    %34 = vector.load %arg5[%c0_14, %c0_15] : memref<64x128xf32, #tpu.memory_space<vmem>>, vector<64x128xf32>
    %cst_16 = arith.constant dense<0.000000e+00> : vector<2x128xf32>
    %35 = tpu.matmul %33, %34, %cst_16 {dimension_numbers = #tpu.dot_dimension_numbers<[1], [0], [0], [1], [0, 0, 1, 1], [], []>} : vector<2x64xf32>, vector<64x128xf32>, vector<2x128xf32> -> vector<2x128xf32>
    %c0_17 = arith.constant 0 : index
    %c0_18 = arith.constant 0 : index
    %36 = vector.load %arg6[%c0_17, %c0_18] : memref<1x128xf32, #tpu.memory_space<vmem>>, vector<1x128xf32>
    %37 = vector.broadcast %36 : vector<1x128xf32> to vector<2x128xf32>
    %38 = arith.addf %35, %37 : vector<2x128xf32>
    %cst_19 = arith.constant 0.000000e+00 : f32
    %39 = vector.broadcast %cst_19 : f32 to vector<2x128xf32>
    %40 = arith.maximumf %38, %39 : vector<2x128xf32>
    %41 = vector.extract_strided_slice %40 {offsets = [0, 0], sizes = [2, 32], strides = [1, 1]} : vector<2x128xf32> to vector<2x32xf32>
    %42 = vector.extract_strided_slice %40 {offsets = [0, 32], sizes = [2, 32], strides = [1, 1]} : vector<2x128xf32> to vector<2x32xf32>
    %43 = vector.extract_strided_slice %40 {offsets = [0, 64], sizes = [2, 32], strides = [1, 1]} : vector<2x128xf32> to vector<2x32xf32>
    %44 = vector.extract_strided_slice %40 {offsets = [0, 96], sizes = [2, 32], strides = [1, 1]} : vector<2x128xf32> to vector<2x32xf32>
    %45 = arith.maximumf %41, %42 : vector<2x32xf32>
    %46 = arith.maximumf %43, %44 : vector<2x32xf32>
    %47 = arith.maximumf %45, %46 : vector<2x32xf32>
    %c0_20 = arith.constant 0 : index
    %c0_21 = arith.constant 0 : index
    %48 = vector.load %arg7[%c0_20, %c0_21] : memref<32x8xf32, #tpu.memory_space<vmem>>, vector<32x8xf32>
    %cst_22 = arith.constant dense<0.000000e+00> : vector<2x8xf32>
    %49 = tpu.matmul %47, %48, %cst_22 {dimension_numbers = #tpu.dot_dimension_numbers<[1], [0], [0], [1], [0, 0, 1, 1], [], []>} : vector<2x32xf32>, vector<32x8xf32>, vector<2x8xf32> -> vector<2x8xf32>
    %c0_23 = arith.constant 0 : index
    %c0_24 = arith.constant 0 : index
    %50 = vector.load %arg8[%c0_23, %c0_24] : memref<1x8xf32, #tpu.memory_space<vmem>>, vector<1x8xf32>
    %51 = vector.broadcast %50 : vector<1x8xf32> to vector<2x8xf32>
    %52 = arith.addf %49, %51 : vector<2x8xf32>
    %cst_25 = arith.constant 0.000000e+00 : f32
    %53 = vector.broadcast %cst_25 : f32 to vector<2x8xf32>
    %54 = arith.maximumf %52, %53 : vector<2x8xf32>
    %c0_26 = arith.constant 0 : index
    %c0_27 = arith.constant 0 : index
    %55 = vector.load %arg9[%c0_26, %c0_27] : memref<8x2xf32, #tpu.memory_space<vmem>>, vector<8x2xf32>
    %cst_28 = arith.constant dense<0.000000e+00> : vector<2x2xf32>
    %56 = tpu.matmul %54, %55, %cst_28 {dimension_numbers = #tpu.dot_dimension_numbers<[1], [0], [0], [1], [0, 0, 1, 1], [], []>} : vector<2x8xf32>, vector<8x2xf32>, vector<2x2xf32> -> vector<2x2xf32>
    %c0_29 = arith.constant 0 : index
    %c0_30 = arith.constant 0 : index
    %57 = vector.load %arg10[%c0_29, %c0_30] : memref<1x2xf32, #tpu.memory_space<vmem>>, vector<1x2xf32>
    %58 = vector.broadcast %57 : vector<1x2xf32> to vector<2x2xf32>
    %59 = arith.addf %56, %58 : vector<2x2xf32>
    %c0_31 = arith.constant 0 : index
    %c0_32 = arith.constant 0 : index
    %60 = vector.load %arg11[%c0_31, %c0_32] : memref<2x2xf32, #tpu.memory_space<vmem>>, vector<2x2xf32>
    tpu.vector_store %arg11[%c0_31, %c0_32], %59 {strides = array<i32>} : memref<2x2xf32, #tpu.memory_space<vmem>>, vector<2x2xf32>,
    return
  }
}

</mosaic_0001>

<llo_original>
// kernel: forward.1
$region0: #{forward.1}
  #allocation0 [shape = 'u32[]', space=smem, size = 0x4, offset = 0x4, fixed_abs, tag = 'smem constant byte address 0x4 - core index']
  #allocation1 [shape = 'u32[144,128]{1,0:T(1,128)}', space=vmem, size = 0x12000, scoped, tag = 'internal scratch']
  %s0 = inlined_call_operand.vmem [shape: f32[2,1024], index: 0, kind: input, shape index: {}]
  %s1 = inlined_call_operand.hbm [shape: f32[1024,1024], index: 1, kind: input, shape index: {}]
  %s2 = inlined_call_operand.hbm [shape: f32[1,1024], index: 2, kind: input, shape index: {}]
  %s3 = inlined_call_operand.hbm [shape: f32[256,256], index: 3, kind: input, shape index: {}]
  %s4 = inlined_call_operand.hbm [shape: f32[1,256], index: 4, kind: input, shape index: {}]
  %s5 = inlined_call_operand.hbm [shape: f32[64,128], index: 5, kind: input, shape index: {}]
  %s6 = inlined_call_operand.hbm [shape: f32[1,128], index: 6, kind: input, shape index: {}]
  %s7 = inlined_call_operand.vmem [shape: f32[32,8], index: 7, kind: input, shape index: {}]
  %s8 = inlined_call_operand.hbm [shape: f32[1,8], index: 8, kind: input, shape index: {}]
  %s9 = inlined_call_operand.vmem [shape: f32[8,2], index: 9, kind: input, shape index: {}]
  %s10 = inlined_call_operand.hbm [shape: f32[1,2], index: 10, kind: input, shape index: {}]
  %s11 = inlined_call_operand.hbm [shape: f32[2,2], index: 11, kind: output, shape index: {}]
  %s12 = sld [smem:[#allocation0]]
  $region86: #{forward.1} parent=0
    _
  %s14 = ssub.s32 1, %s12
  %s15 = scalar_select 0, %s14, %s12
  $region1: #{forward.1} parent=0
    #allocation2 [shape = 'u8[4194304]{0}', space=vmem, size = 0x400000, scoped, tag = 'input window, operand 1, single buffered']
    #allocation3 [shape = 's32[1]{0}', space=sflag, size = 0x4, scoped, tag = 'scoped memory for forward.1']
    #allocation4 [shape = 's32[1]{0}', space=sflag, size = 0x4, scoped, tag = 'scoped memory for forward.1']
    #allocation5 [shape = 'u8[4096]{0}', space=vmem, size = 0x1000, scoped, tag = 'input window, operand 2, single buffered']
    #allocation6 [shape = 's32[1]{0}', space=sflag, size = 0x4, scoped, tag = 'scoped memory for forward.1']
    #allocation7 [shape = 'u8[262144]{0}', space=vmem, size = 0x40000, scoped, tag = 'input window, operand 3, single buffered']
    #allocation8 [shape = 'u8[1024]{0}', space=vmem, size = 0x400, scoped, tag = 'input window, operand 4, single buffered']
    #allocation9 [shape = 's32[1]{0}', space=sflag, size = 0x4, scoped, tag = 'scoped memory for forward.1']
    #allocation10 [shape = 'u8[32768]{0}', space=vmem, size = 0x8000, scoped, tag = 'input window, operand 5, single buffered']
    #allocation11 [shape = 'u8[512]{0}', space=vmem, size = 0x400, scoped, tag = 'input window, operand 6, single buffered']
    #allocation12 [shape = 's32[1]{0}', space=sflag, size = 0x4, scoped, tag = 'scoped memory for forward.1']
    #allocation13 [shape = 'u8[512]{0}', space=vmem, size = 0x400, scoped, tag = 'input window, operand 8, single buffered']
    #allocation14 [shape = 'u8[512]{0}', space=vmem, size = 0x400, scoped, tag = 'input window, operand 10, single buffered']
    #allocation15 [shape = 's32[1]{0}', space=sflag, size = 0x4, scoped, tag = 'scoped memory for forward.1']
    #allocation16 [shape = 'u8[1024]{0}', space=vmem, size = 0x400, scoped, tag = 'output window, operand 0, single buffered']
    %16 = vsyncpa [#allocation3], 0
    %17 = vsyncpa [#allocation6], 0
    %18 = vsyncpa [#allocation9], 0
    %19 = vsyncpa [#allocation12], 0
    %20 = vsyncpa [#allocation15], 0
    %21 = vsyncpa [#allocation4], 0
    // Predicated region
    $region2: #{forward.1} parent=1 // pred_check
      _
    $region3: #{forward.1} parent=1 // pred_check_branch
      %23 = sbr.rel (0) target = $region5
    $region4: #{forward.1} parent=1 // pred_region
      _
    $region5: #{forward.1} parent=1 // pred_fallthru
      _
    // Predicated region
    $region6: #{forward.1} parent=1 // pred_check
      _
    $region7: #{forward.1} parent=1 // pred_check_branch
      %25 = sbr.rel (0) target = $region9
    $region8: #{forward.1} parent=1 // pred_region
      %s27 = ssub.s32 131072, 131072
      %28 = vsyncadd [#allocation3], %s27
      %s29 = sshll.u32 [#allocation2], 4
      %s30 = int_to_ptr.vmem [resolvable:$true] %s29
      %35 = dma.hbm_to_vmem [thread:$0]  %s1, 131072, %s30, [#allocation3], 1024, 1024, 64
    $region9: #{forward.1} parent=1 // pred_fallthru
      _
    // Predicated region
    $region10: #{forward.1} parent=1 // pred_check
      _
    $region11: #{forward.1} parent=1 // pred_check_branch
      %37 = sbr.rel (0) target = $region13
    $region12: #{forward.1} parent=1 // pred_region
      %s39 = ssub.s32 128, 128
      %40 = vsyncadd [#allocation6], %s39
      %s42 = sshll.u32 [#allocation5], 4
      %s43 = int_to_ptr.vmem [resolvable:$true] %s42
      %45 = dma.hbm_to_vmem [thread:$0]  %s2, 128, %s43, [#allocation6]
    $region13: #{forward.1} parent=1 // pred_fallthru
      _
    // Predicated region
    $region14: #{forward.1} parent=1 // pred_check
      _
    $region15: #{forward.1} parent=1 // pred_check_branch
      %47 = sbr.rel (0) target = $region17
    $region16: #{forward.1} parent=1 // pred_region
      %s49 = ssub.s32 8192, 8192
      %50 = vsyncadd [#allocation6], %s49
      %s51 = sshll.u32 [#allocation7], 4
      %s52 = int_to_ptr.vmem [resolvable:$true] %s51
      %57 = dma.hbm_to_vmem [thread:$0]  %s3, 8192, %s52, [#allocation6], 256, 256, 16
    $region17: #{forward.1} parent=1 // pred_fallthru
      _
    // Predicated region
    $region18: #{forward.1} parent=1 // pred_check
      _
    $region19: #{forward.1} parent=1 // pred_check_branch
      %59 = sbr.rel (0) target = $region21
    $region20: #{forward.1} parent=1 // pred_region
      %s61 = ssub.s32 32, 32
      %62 = vsyncadd [#allocation9], %s61
      %s64 = sshll.u32 [#allocation8], 4
      %s65 = int_to_ptr.vmem [resolvable:$true] %s64
      %67 = dma.hbm_to_vmem [thread:$0]  %s4, 32, %s65, [#allocation9]
    $region21: #{forward.1} parent=1 // pred_fallthru
      _
    // Predicated region
    $region22: #{forward.1} parent=1 // pred_check
      _
    $region23: #{forward.1} parent=1 // pred_check_branch
      %69 = sbr.rel (0) target = $region25
    $region24: #{forward.1} parent=1 // pred_region
      %s71 = ssub.s32 1024, 1024
      %72 = vsyncadd [#allocation9], %s71
      %s73 = sshll.u32 [#allocation10], 4
      %s74 = int_to_ptr.vmem [resolvable:$true] %s73
      %79 = dma.hbm_to_vmem [thread:$0]  %s5, 1024, %s74, [#allocation9], 128, 128, 8
    $region25: #{forward.1} parent=1 // pred_fallthru
      _
    // Predicated region
    $region26: #{forward.1} parent=1 // pred_check
      _
    $region27: #{forward.1} parent=1 // pred_check_branch
      %81 = sbr.rel (0) target = $region29
    $region28: #{forward.1} parent=1 // pred_region
      %s83 = ssub.s32 16, 16
      %84 = vsyncadd [#allocation12], %s83
      %s86 = sshll.u32 [#allocation11], 4
      %s87 = int_to_ptr.vmem [resolvable:$true] %s86
      %89 = dma.hbm_to_vmem [thread:$0]  %s6, 16, %s87, [#allocation12]
    $region29: #{forward.1} parent=1 // pred_fallthru
      _
    // Predicated region
    $region30: #{forward.1} parent=1 // pred_check
      _
    $region31: #{forward.1} parent=1 // pred_check_branch
      %91 = sbr.rel (0) target = $region33
    $region32: #{forward.1} parent=1 // pred_region
      _
    $region33: #{forward.1} parent=1 // pred_fallthru
      _
    // Predicated region
    $region34: #{forward.1} parent=1 // pred_check
      _
    $region35: #{forward.1} parent=1 // pred_check_branch
      %93 = sbr.rel (0) target = $region37
    $region36: #{forward.1} parent=1 // pred_region
      %s95 = ssub.s32 16, 16
      %96 = vsyncadd [#allocation12], %s95
      %s98 = sshll.u32 [#allocation13], 4
      %s99 = int_to_ptr.vmem [resolvable:$true] %s98
      %101 = dma.hbm_to_vmem [thread:$0]  %s8, 16, %s99, [#allocation12]
    $region37: #{forward.1} parent=1 // pred_fallthru
      _
    // Predicated region
    $region38: #{forward.1} parent=1 // pred_check
      _
    $region39: #{forward.1} parent=1 // pred_check_branch
      %103 = sbr.rel (0) target = $region41
    $region40: #{forward.1} parent=1 // pred_region
      _
    $region41: #{forward.1} parent=1 // pred_fallthru
      _
    // Predicated region
    $region42: #{forward.1} parent=1 // pred_check
      _
    $region43: #{forward.1} parent=1 // pred_check_branch
      %105 = sbr.rel (0) target = $region45
    $region44: #{forward.1} parent=1 // pred_region
      %s107 = ssub.s32 16, 16
      %108 = vsyncadd [#allocation15], %s107
      %s110 = sshll.u32 [#allocation14], 4
      %s111 = int_to_ptr.vmem [resolvable:$true] %s110
      %113 = dma.hbm_to_vmem [thread:$0]  %s10, 16, %s111, [#allocation15]
    $region45: #{forward.1} parent=1 // pred_fallthru
      _
    // Predicated region
    $region46: #{forward.1} parent=1 // pred_check
      _
    $region47: #{forward.1} parent=1 // pred_check_branch
      %115 = sbr.rel (0) target = $region49
    $region48: #{forward.1} parent=1 // pred_region
      %116 = dma.done [#allocation3], 131072
    $region49: #{forward.1} parent=1 // pred_fallthru
      _
    // Predicated region
    $region50: #{forward.1} parent=1 // pred_check
      _
    $region51: #{forward.1} parent=1 // pred_check_branch
      %118 = sbr.rel (0) target = $region53
    $region52: #{forward.1} parent=1 // pred_region
      %119 = dma.done [#allocation6], 128
    $region53: #{forward.1} parent=1 // pred_fallthru
      _
    // Predicated region
    $region54: #{forward.1} parent=1 // pred_check
      _
    $region55: #{forward.1} parent=1 // pred_check_branch
      %121 = sbr.rel (0) target = $region57
    $region56: #{forward.1} parent=1 // pred_region
      %122 = dma.done [#allocation6], 8192
    $region57: #{forward.1} parent=1 // pred_fallthru
      _
    // Predicated region
    $region58: #{forward.1} parent=1 // pred_check
      _
    $region59: #{forward.1} parent=1 // pred_check_branch
      %124 = sbr.rel (0) target = $region61
    $region60: #{forward.1} parent=1 // pred_region
      %125 = dma.done [#allocation9], 32
    $region61: #{forward.1} parent=1 // pred_fallthru
      _
    // Predicated region
    $region62: #{forward.1} parent=1 // pred_check
      _
    $region63: #{forward.1} parent=1 // pred_check_branch
      %127 = sbr.rel (0) target = $region65
    $region64: #{forward.1} parent=1 // pred_region
      %128 = dma.done [#allocation9], 1024
    $region65: #{forward.1} parent=1 // pred_fallthru
      _
    // Predicated region
    $region66: #{forward.1} parent=1 // pred_check
      _
    $region67: #{forward.1} parent=1 // pred_check_branch
      %130 = sbr.rel (0) target = $region69
    $region68: #{forward.1} parent=1 // pred_region
      %131 = dma.done [#allocation12], 16
    $region69: #{forward.1} parent=1 // pred_fallthru
      _
    // Predicated region
    $region70: #{forward.1} parent=1 // pred_check
      _
    $region71: #{forward.1} parent=1 // pred_check_branch
      %133 = sbr.rel (0) target = $region73
    $region72: #{forward.1} parent=1 // pred_region
      %134 = dma.done [#allocation12], 16
    $region73: #{forward.1} parent=1 // pred_fallthru
      _
    // Predicated region
    $region74: #{forward.1} parent=1 // pred_check
      _
    $region75: #{forward.1} parent=1 // pred_check_branch
      %136 = sbr.rel (0) target = $region77
    $region76: #{forward.1} parent=1 // pred_region
      %137 = dma.done [#allocation15], 16
    $region77: #{forward.1} parent=1 // pred_fallthru
      _
    %v138 = vld [vmem:[%s0] sm:$0xff]
    %v139 = vld [vmem:[%s0 + $0x8] sm:$0xff]
    %v140 = vld [vmem:[#allocation2] sm:$0xff]
    %v141 = vld [vmem:[#allocation2 + $0x8] sm:$0xff]
    %v142 = vld [vmem:[#allocation2 + $0x10] sm:$0xff]
    %v143 = vld [vmem:[#allocation2 + $0x18] sm:$0xff]
    %v144 = vld [vmem:[#allocation2 + $0x20] sm:$0xff]
    %v145 = vld [vmem:[#allocation2 + $0x28] sm:$0xff]
    %v146 = vld [vmem:[#allocation2 + $0x30] sm:$0xff]
    %v147 = vld [vmem:[#allocation2 + $0x38] sm:$0xff]
    %v148 = vld [vmem:[#allocation2 + $0x40] sm:$0xff]
    %v149 = vld [vmem:[#allocation2 + $0x48] sm:$0xff]
    %v150 = vld [vmem:[#allocation2 + $0x50] sm:$0xff]
    %v151 = vld [vmem:[#allocation2 + $0x58] sm:$0xff]
    %v152 = vld [vmem:[#allocation2 + $0x60] sm:$0xff]
    %v153 = vld [vmem:[#allocation2 + $0x68] sm:$0xff]
    %v154 = vld [vmem:[#allocation2 + $0x70] sm:$0xff]
    %v155 = vld [vmem:[#allocation2 + $0x78] sm:$0xff]
    %v156 = vld [vmem:[#allocation2 + $0x80] sm:$0xff]
    %v157 = vld [vmem:[#allocation2 + $0x88] sm:$0xff]
    %v158 = vld [vmem:[#allocation2 + $0x90] sm:$0xff]
    %v159 = vld [vmem:[#allocation2 + $0x98] sm:$0xff]
    %v160 = vld [vmem:[#allocation2 + $0xa0] sm:$0xff]
    %v161 = vld [vmem:[#allocation2 + $0xa8] sm:$0xff]
    %v162 = vld [vmem:[#allocation2 + $0xb0] sm:$0xff]
    %v163 = vld [vmem:[#allocation2 + $0xb8] sm:$0xff]
    %v164 = vld [vmem:[#allocation2 + $0xc0] sm:$0xff]
    %v165 = vld [vmem:[#allocation2 + $0xc8] sm:$0xff]
    %v166 = vld [vmem:[#allocation2 + $0xd0] sm:$0xff]
    %v167 = vld [vmem:[#allocation2 + $0xd8] sm:$0xff]
    %v168 = vld [vmem:[#allocation2 + $0xe0] sm:$0xff]
    %v169 = vld [vmem:[#allocation2 + $0xe8] sm:$0xff]
    %v170 = vld [vmem:[#allocation2 + $0xf0] sm:$0xff]
    %v171 = vld [vmem:[#allocation2 + $0xf8] sm:$0xff]
    %v172 = vld [vmem:[#allocation2 + $0x100] sm:$0xff]
    %v173 = vld [vmem:[#allocation2 + $0x108] sm:$0xff]
    %v174 = vld [vmem:[#allocation2 + $0x110] sm:$0xff]
    %v175 = vld [vmem:[#allocation2 + $0x118] sm:$0xff]
    %v176 = vld [vmem:[#allocation2 + $0x120] sm:$0xff]
    %v177 = vld [vmem:[#allocation2 + $0x128] sm:$0xff]
    %v178 = vld [vmem:[#allocation2 + $0x130] sm:$0xff]
    %v179 = vld [vmem:[#allocation2 + $0x138] sm:$0xff]
    %v180 = vld [vmem:[#allocation2 + $0x140] sm:$0xff]
    %v181 = vld [vmem:[#allocation2 + $0x148] sm:$0xff]
    %v182 = vld [vmem:[#allocation2 + $0x150] sm:$0xff]
    %v183 = vld [vmem:[#allocation2 + $0x158] sm:$0xff]
    %v184 = vld [vmem:[#allocation2 + $0x160] sm:$0xff]
    %v185 = vld [vmem:[#allocation2 + $0x168] sm:$0xff]
    %v186 = vld [vmem:[#allocation2 + $0x170] sm:$0xff]
    %v187 = vld [vmem:[#allocation2 + $0x178] sm:$0xff]
    %v188 = vld [vmem:[#allocation2 + $0x180] sm:$0xff]
    %v189 = vld [vmem:[#allocation2 + $0x188] sm:$0xff]
    %v190 = vld [vmem:[#allocation2 + $0x190] sm:$0xff]
    %v191 = vld [vmem:[#allocation2 + $0x198] sm:$0xff]
    %v192 = vld [vmem:[#allocation2 + $0x1a0] sm:$0xff]
    %v193 = vld [vmem:[#allocation2 + $0x1a8] sm:$0xff]
    %v194 = vld [vmem:[#allocation2 + $0x1b0] sm:$0xff]
    %v195 = vld [vmem:[#allocation2 + $0x1b8] sm:$0xff]
    %v196 = vld [vmem:[#allocation2 + $0x1c0] sm:$0xff]
    %v197 = vld [vmem:[#allocation2 + $0x1c8] sm:$0xff]
    %v198 = vld [vmem:[#allocation2 + $0x1d0] sm:$0xff]
    %v199 = vld [vmem:[#allocation2 + $0x1d8] sm:$0xff]
    %v200 = vld [vmem:[#allocation2 + $0x1e0] sm:$0xff]
    %v201 = vld [vmem:[#allocation2 + $0x1e8] sm:$0xff]
    %v202 = vld [vmem:[#allocation2 + $0x1f0] sm:$0xff]
    %v203 = vld [vmem:[#allocation2 + $0x1f8] sm:$0xff]
    %v204 = vld [vmem:[#allocation2 + $0x200] sm:$0xff]
    %v205 = vld [vmem:[#allocation2 + $0x208] sm:$0xff]
    %v206 = vld [vmem:[#allocation2 + $0x210] sm:$0xff]
    %v207 = vld [vmem:[#allocation2 + $0x218] sm:$0xff]
    %v208 = vld [vmem:[#allocation2 + $0x220] sm:$0xff]
    %v209 = vld [vmem:[#allocation2 + $0x228] sm:$0xff]
    %v210 = vld [vmem:[#allocation2 + $0x230] sm:$0xff]
    %v211 = vld [vmem:[#allocation2 + $0x238] sm:$0xff]
    %v212 = vld [vmem:[#allocation2 + $0x240] sm:$0xff]
    %v213 = vld [vmem:[#allocation2 + $0x248] sm:$0xff]
    %v214 = vld [vmem:[#allocation2 + $0x250] sm:$0xff]
    %v215 = vld [vmem:[#allocation2 + $0x258] sm:$0xff]
    %v216 = vld [vmem:[#allocation2 + $0x260] sm:$0xff]
    %v217 = vld [vmem:[#allocation2 + $0x268] sm:$0xff]
    %v218 = vld [vmem:[#allocation2 + $0x270] sm:$0xff]
    %v219 = vld [vmem:[#allocation2 + $0x278] sm:$0xff]
    %v220 = vld [vmem:[#allocation2 + $0x280] sm:$0xff]
    %v221 = vld [vmem:[#allocation2 + $0x288] sm:$0xff]
    %v222 = vld [vmem:[#allocation2 + $0x290] sm:$0xff]
    %v223 = vld [vmem:[#allocation2 + $0x298] sm:$0xff]
    %v224 = vld [vmem:[#allocation2 + $0x2a0] sm:$0xff]
    %v225 = vld [vmem:[#allocation2 + $0x2a8] sm:$0xff]
    %v226 = vld [vmem:[#allocation2 + $0x2b0] sm:$0xff]
    %v227 = vld [vmem:[#allocation2 + $0x2b8] sm:$0xff]
    %v228 = vld [vmem:[#allocation2 + $0x2c0] sm:$0xff]
    %v229 = vld [vmem:[#allocation2 + $0x2c8] sm:$0xff]
    %v230 = vld [vmem:[#allocation2 + $0x2d0] sm:$0xff]
    %v231 = vld [vmem:[#allocation2 + $0x2d8] sm:$0xff]
    %v232 = vld [vmem:[#allocation2 + $0x2e0] sm:$0xff]
    %v233 = vld [vmem:[#allocation2 + $0x2e8] sm:$0xff]
    %v234 = vld [vmem:[#allocation2 + $0x2f0] sm:$0xff]
    %v235 = vld [vmem:[#allocation2 + $0x2f8] sm:$0xff]
    %v236 = vld [vmem:[#allocation2 + $0x300] sm:$0xff]
    %v237 = vld [vmem:[#allocation2 + $0x308] sm:$0xff]
    %v238 = vld [vmem:[#allocation2 + $0x310] sm:$0xff]
    %v239 = vld [vmem:[#allocation2 + $0x318] sm:$0xff]
    %v240 = vld [vmem:[#allocation2 + $0x320] sm:$0xff]
    %v241 = vld [vmem:[#allocation2 + $0x328] sm:$0xff]
    %v242 = vld [vmem:[#allocation2 + $0x330] sm:$0xff]
    %v243 = vld [vmem:[#allocation2 + $0x338] sm:$0xff]
    %v244 = vld [vmem:[#allocation2 + $0x340] sm:$0xff]
    %v245 = vld [vmem:[#allocation2 + $0x348] sm:$0xff]
    %v246 = vld [vmem:[#allocation2 + $0x350] sm:$0xff]
    %v247 = vld [vmem:[#allocation2 + $0x358] sm:$0xff]
    %v248 = vld [vmem:[#allocation2 + $0x360] sm:$0xff]
    %v249 = vld [vmem:[#allocation2 + $0x368] sm:$0xff]
    %v250 = vld [vmem:[#allocation2 + $0x370] sm:$0xff]
    %v251 = vld [vmem:[#allocation2 + $0x378] sm:$0xff]
    %v252 = vld [vmem:[#allocation2 + $0x380] sm:$0xff]
    %v253 = vld [vmem:[#allocation2 + $0x388] sm:$0xff]
    %v254 = vld [vmem:[#allocation2 + $0x390] sm:$0xff]
    %v255 = vld [vmem:[#allocation2 + $0x398] sm:$0xff]
    %v256 = vld [vmem:[#allocation2 + $0x3a0] sm:$0xff]
    %v257 = vld [vmem:[#allocation2 + $0x3a8] sm:$0xff]
    %v258 = vld [vmem:[#allocation2 + $0x3b0] sm:$0xff]
    %v259 = vld [vmem:[#allocation2 + $0x3b8] sm:$0xff]
    %v260 = vld [vmem:[#allocation2 + $0x3c0] sm:$0xff]
    %v261 = vld [vmem:[#allocation2 + $0x3c8] sm:$0xff]
    %v262 = vld [vmem:[#allocation2 + $0x3d0] sm:$0xff]
    %v263 = vld [vmem:[#allocation2 + $0x3d8] sm:$0xff]
    %v264 = vld [vmem:[#allocation2 + $0x3e0] sm:$0xff]
    %v265 = vld [vmem:[#allocation2 + $0x3e8] sm:$0xff]
    %v266 = vld [vmem:[#allocation2 + $0x3f0] sm:$0xff]
    %v267 = vld [vmem:[#allocation2 + $0x3f8] sm:$0xff]
    %v268 = vld [vmem:[#allocation2 + $0x400] sm:$0xff]
    %v269 = vld [vmem:[#allocation2 + $0x408] sm:$0xff]
    %v270 = vld [vmem:[#allocation2 + $0x410] sm:$0xff]
    %v271 = vld [vmem:[#allocation2 + $0x418] sm:$0xff]
    %v272 = vld [vmem:[#allocation2 + $0x420] sm:$0xff]
    %v273 = vld [vmem:[#allocation2 + $0x428] sm:$0xff]
    %v274 = vld [vmem:[#allocation2 + $0x430] sm:$0xff]
    %v275 = vld [vmem:[#allocation2 + $0x438] sm:$0xff]
    %v276 = vld [vmem:[#allocation2 + $0x440] sm:$0xff]
    %v277 = vld [vmem:[#allocation2 + $0x448] sm:$0xff]
    %v278 = vld [vmem:[#allocation2 + $0x450] sm:$0xff]
    %v279 = vld [vmem:[#allocation2 + $0x458] sm:$0xff]
    %v280 = vld [vmem:[#allocation2 + $0x460] sm:$0xff]
    %v281 = vld [vmem:[#allocation2 + $0x468] sm:$0xff]
    %v282 = vld [vmem:[#allocation2 + $0x470] sm:$0xff]
    %v283 = vld [vmem:[#allocation2 + $0x478] sm:$0xff]
    %v284 = vld [vmem:[#allocation2 + $0x480] sm:$0xff]
    %v285 = vld [vmem:[#allocation2 + $0x488] sm:$0xff]
    %v286 = vld [vmem:[#allocation2 + $0x490] sm:$0xff]
    %v287 = vld [vmem:[#allocation2 + $0x498] sm:$0xff]
    %v288 = vld [vmem:[#allocation2 + $0x4a0] sm:$0xff]
    %v289 = vld [vmem:[#allocation2 + $0x4a8] sm:$0xff]
    %v290 = vld [vmem:[#allocation2 + $0x4b0] sm:$0xff]
    %v291 = vld [vmem:[#allocation2 + $0x4b8] sm:$0xff]
    %v292 = vld [vmem:[#allocation2 + $0x4c0] sm:$0xff]
    %v293 = vld [vmem:[#allocation2 + $0x4c8] sm:$0xff]
    %v294 = vld [vmem:[#allocation2 + $0x4d0] sm:$0xff]
    %v295 = vld [vmem:[#allocation2 + $0x4d8] sm:$0xff]
    %v296 = vld [vmem:[#allocation2 + $0x4e0] sm:$0xff]
    %v297 = vld [vmem:[#allocation2 + $0x4e8] sm:$0xff]
    %v298 = vld [vmem:[#allocation2 + $0x4f0] sm:$0xff]
    %v299 = vld [vmem:[#allocation2 + $0x4f8] sm:$0xff]
    %v300 = vld [vmem:[#allocation2 + $0x500] sm:$0xff]
    %v301 = vld [vmem:[#allocation2 + $0x508] sm:$0xff]
    %v302 = vld [vmem:[#allocation2 + $0x510] sm:$0xff]
    %v303 = vld [vmem:[#allocation2 + $0x518] sm:$0xff]
    %v304 = vld [vmem:[#allocation2 + $0x520] sm:$0xff]
    %v305 = vld [vmem:[#allocation2 + $0x528] sm:$0xff]
    %v306 = vld [vmem:[#allocation2 + $0x530] sm:$0xff]
    %v307 = vld [vmem:[#allocation2 + $0x538] sm:$0xff]
    %v308 = vld [vmem:[#allocation2 + $0x540] sm:$0xff]
    %v309 = vld [vmem:[#allocation2 + $0x548] sm:$0xff]
    %v310 = vld [vmem:[#allocation2 + $0x550] sm:$0xff]
    %v311 = vld [vmem:[#allocation2 + $0x558] sm:$0xff]
    %v312 = vld [vmem:[#allocation2 + $0x560] sm:$0xff]
    %v313 = vld [vmem:[#allocation2 + $0x568] sm:$0xff]
    %v314 = vld [vmem:[#allocation2 + $0x570] sm:$0xff]
    %v315 = vld [vmem:[#allocation2 + $0x578] sm:$0xff]
    %v316 = vld [vmem:[#allocation2 + $0x580] sm:$0xff]
    %v317 = vld [vmem:[#allocation2 + $0x588] sm:$0xff]
    %v318 = vld [vmem:[#allocation2 + $0x590] sm:$0xff]
    %v319 = vld [vmem:[#allocation2 + $0x598] sm:$0xff]
    %v320 = vld [vmem:[#allocation2 + $0x5a0] sm:$0xff]
    %v321 = vld [vmem:[#allocation2 + $0x5a8] sm:$0xff]
    %v322 = vld [vmem:[#allocation2 + $0x5b0] sm:$0xff]
    %v323 = vld [vmem:[#allocation2 + $0x5b8] sm:$0xff]
    %v324 = vld [vmem:[#allocation2 + $0x5c0] sm:$0xff]
    %v325 = vld [vmem:[#allocation2 + $0x5c8] sm:$0xff]
    %v326 = vld [vmem:[#allocation2 + $0x5d0] sm:$0xff]
    %v327 = vld [vmem:[#allocation2 + $0x5d8] sm:$0xff]
    %v328 = vld [vmem:[#allocation2 + $0x5e0] sm:$0xff]
    %v329 = vld [vmem:[#allocation2 + $0x5e8] sm:$0xff]
    %v330 = vld [vmem:[#allocation2 + $0x5f0] sm:$0xff]
    %v331 = vld [vmem:[#allocation2 + $0x5f8] sm:$0xff]
    %v332 = vld [vmem:[#allocation2 + $0x600] sm:$0xff]
    %v333 = vld [vmem:[#allocation2 + $0x608] sm:$0xff]
    %v334 = vld [vmem:[#allocation2 + $0x610] sm:$0xff]
    %v335 = vld [vmem:[#allocation2 + $0x618] sm:$0xff]
    %v336 = vld [vmem:[#allocation2 + $0x620] sm:$0xff]
    %v337 = vld [vmem:[#allocation2 + $0x628] sm:$0xff]
    %v338 = vld [vmem:[#allocation2 + $0x630] sm:$0xff]
    %v339 = vld [vmem:[#allocation2 + $0x638] sm:$0xff]
    %v340 = vld [vmem:[#allocation2 + $0x640] sm:$0xff]
    %v341 = vld [vmem:[#allocation2 + $0x648] sm:$0xff]
    %v342 = vld [vmem:[#allocation2 + $0x650] sm:$0xff]
    %v343 = vld [vmem:[#allocation2 + $0x658] sm:$0xff]
    %v344 = vld [vmem:[#allocation2 + $0x660] sm:$0xff]
    %v345 = vld [vmem:[#allocation2 + $0x668] sm:$0xff]
    %v346 = vld [vmem:[#allocation2 + $0x670] sm:$0xff]
    %v347 = vld [vmem:[#allocation2 + $0x678] sm:$0xff]
    %v348 = vld [vmem:[#allocation2 + $0x680] sm:$0xff]
    %v349 = vld [vmem:[#allocation2 + $0x688] sm:$0xff]
    %v350 = vld [vmem:[#allocation2 + $0x690] sm:$0xff]
    %v351 = vld [vmem:[#allocation2 + $0x698] sm:$0xff]
    %v352 = vld [vmem:[#allocation2 + $0x6a0] sm:$0xff]
    %v353 = vld [vmem:[#allocation2 + $0x6a8] sm:$0xff]
    %v354 = vld [vmem:[#allocation2 + $0x6b0] sm:$0xff]
    %v355 = vld [vmem:[#allocation2 + $0x6b8] sm:$0xff]
    %v356 = vld [vmem:[#allocation2 + $0x6c0] sm:$0xff]
    %v357 = vld [vmem:[#allocation2 + $0x6c8] sm:$0xff]
    %v358 = vld [vmem:[#allocation2 + $0x6d0] sm:$0xff]
    %v359 = vld [vmem:[#allocation2 + $0x6d8] sm:$0xff]
    %v360 = vld [vmem:[#allocation2 + $0x6e0] sm:$0xff]
    %v361 = vld [vmem:[#allocation2 + $0x6e8] sm:$0xff]
    %v362 = vld [vmem:[#allocation2 + $0x6f0] sm:$0xff]
    %v363 = vld [vmem:[#allocation2 + $0x6f8] sm:$0xff]
    %v364 = vld [vmem:[#allocation2 + $0x700] sm:$0xff]
    %v365 = vld [vmem:[#allocation2 + $0x708] sm:$0xff]
    %v366 = vld [vmem:[#allocation2 + $0x710] sm:$0xff]
    %v367 = vld [vmem:[#allocation2 + $0x718] sm:$0xff]
    %v368 = vld [vmem:[#allocation2 + $0x720] sm:$0xff]
    %v369 = vld [vmem:[#allocation2 + $0x728] sm:$0xff]
    %v370 = vld [vmem:[#allocation2 + $0x730] sm:$0xff]
    %v371 = vld [vmem:[#allocation2 + $0x738] sm:$0xff]
    %v372 = vld [vmem:[#allocation2 + $0x740] sm:$0xff]
    %v373 = vld [vmem:[#allocation2 + $0x748] sm:$0xff]
    %v374 = vld [vmem:[#allocation2 + $0x750] sm:$0xff]
    %v375 = vld [vmem:[#allocation2 + $0x758] sm:$0xff]
    %v376 = vld [vmem:[#allocation2 + $0x760] sm:$0xff]
    %v377 = vld [vmem:[#allocation2 + $0x768] sm:$0xff]
    %v378 = vld [vmem:[#allocation2 + $0x770] sm:$0xff]
    %v379 = vld [vmem:[#allocation2 + $0x778] sm:$0xff]
    %v380 = vld [vmem:[#allocation2 + $0x780] sm:$0xff]
    %v381 = vld [vmem:[#allocation2 + $0x788] sm:$0xff]
    %v382 = vld [vmem:[#allocation2 + $0x790] sm:$0xff]
    %v383 = vld [vmem:[#allocation2 + $0x798] sm:$0xff]
    %v384 = vld [vmem:[#allocation2 + $0x7a0] sm:$0xff]
    %v385 = vld [vmem:[#allocation2 + $0x7a8] sm:$0xff]
    %v386 = vld [vmem:[#allocation2 + $0x7b0] sm:$0xff]
    %v387 = vld [vmem:[#allocation2 + $0x7b8] sm:$0xff]
    %v388 = vld [vmem:[#allocation2 + $0x7c0] sm:$0xff]
    %v389 = vld [vmem:[#allocation2 + $0x7c8] sm:$0xff]
    %v390 = vld [vmem:[#allocation2 + $0x7d0] sm:$0xff]
    %v391 = vld [vmem:[#allocation2 + $0x7d8] sm:$0xff]
    %v392 = vld [vmem:[#allocation2 + $0x7e0] sm:$0xff]
    %v393 = vld [vmem:[#allocation2 + $0x7e8] sm:$0xff]
    %v394 = vld [vmem:[#allocation2 + $0x7f0] sm:$0xff]
    %v395 = vld [vmem:[#allocation2 + $0x7f8] sm:$0xff]
    %v396 = vld [vmem:[#allocation2 + $0x800] sm:$0xff]
    %v397 = vld [vmem:[#allocation2 + $0x808] sm:$0xff]
    %v398 = vld [vmem:[#allocation2 + $0x810] sm:$0xff]
    %v399 = vld [vmem:[#allocation2 + $0x818] sm:$0xff]
    %v400 = vld [vmem:[#allocation2 + $0x820] sm:$0xff]
    %v401 = vld [vmem:[#allocation2 + $0x828] sm:$0xff]
    %v402 = vld [vmem:[#allocation2 + $0x830] sm:$0xff]
    %v403 = vld [vmem:[#allocation2 + $0x838] sm:$0xff]
    %v404 = vld [vmem:[#allocation2 + $0x840] sm:$0xff]
    %v405 = vld [vmem:[#allocation2 + $0x848] sm:$0xff]
    %v406 = vld [vmem:[#allocation2 + $0x850] sm:$0xff]
    %v407 = vld [vmem:[#allocation2 + $0x858] sm:$0xff]
    %v408 = vld [vmem:[#allocation2 + $0x860] sm:$0xff]
    %v409 = vld [vmem:[#allocation2 + $0x868] sm:$0xff]
    %v410 = vld [vmem:[#allocation2 + $0x870] sm:$0xff]
    %v411 = vld [vmem:[#allocation2 + $0x878] sm:$0xff]
    %v412 = vld [vmem:[#allocation2 + $0x880] sm:$0xff]
    %v413 = vld [vmem:[#allocation2 + $0x888] sm:$0xff]
    %v414 = vld [vmem:[#allocation2 + $0x890] sm:$0xff]
    %v415 = vld [vmem:[#allocation2 + $0x898] sm:$0xff]
    %v416 = vld [vmem:[#allocation2 + $0x8a0] sm:$0xff]
    %v417 = vld [vmem:[#allocation2 + $0x8a8] sm:$0xff]
    %v418 = vld [vmem:[#allocation2 + $0x8b0] sm:$0xff]
    %v419 = vld [vmem:[#allocation2 + $0x8b8] sm:$0xff]
    %v420 = vld [vmem:[#allocation2 + $0x8c0] sm:$0xff]
    %v421 = vld [vmem:[#allocation2 + $0x8c8] sm:$0xff]
    %v422 = vld [vmem:[#allocation2 + $0x8d0] sm:$0xff]
    %v423 = vld [vmem:[#allocation2 + $0x8d8] sm:$0xff]
    %v424 = vld [vmem:[#allocation2 + $0x8e0] sm:$0xff]
    %v425 = vld [vmem:[#allocation2 + $0x8e8] sm:$0xff]
    %v426 = vld [vmem:[#allocation2 + $0x8f0] sm:$0xff]
    %v427 = vld [vmem:[#allocation2 + $0x8f8] sm:$0xff]
    %v428 = vld [vmem:[#allocation2 + $0x900] sm:$0xff]
    %v429 = vld [vmem:[#allocation2 + $0x908] sm:$0xff]
    %v430 = vld [vmem:[#allocation2 + $0x910] sm:$0xff]
    %v431 = vld [vmem:[#allocation2 + $0x918] sm:$0xff]
    %v432 = vld [vmem:[#allocation2 + $0x920] sm:$0xff]
    %v433 = vld [vmem:[#allocation2 + $0x928] sm:$0xff]
    %v434 = vld [vmem:[#allocation2 + $0x930] sm:$0xff]
    %v435 = vld [vmem:[#allocation2 + $0x938] sm:$0xff]
    %v436 = vld [vmem:[#allocation2 + $0x940] sm:$0xff]
    %v437 = vld [vmem:[#allocation2 + $0x948] sm:$0xff]
    %v438 = vld [vmem:[#allocation2 + $0x950] sm:$0xff]
    %v439 = vld [vmem:[#allocation2 + $0x958] sm:$0xff]
    %v440 = vld [vmem:[#allocation2 + $0x960] sm:$0xff]
    %v441 = vld [vmem:[#allocation2 + $0x968] sm:$0xff]
    %v442 = vld [vmem:[#allocation2 + $0x970] sm:$0xff]
    %v443 = vld [vmem:[#allocation2 + $0x978] sm:$0xff]
    %v444 = vld [vmem:[#allocation2 + $0x980] sm:$0xff]
    %v445 = vld [vmem:[#allocation2 + $0x988] sm:$0xff]
    %v446 = vld [vmem:[#allocation2 + $0x990] sm:$0xff]
    %v447 = vld [vmem:[#allocation2 + $0x998] sm:$0xff]
    %v448 = vld [vmem:[#allocation2 + $0x9a0] sm:$0xff]
    %v449 = vld [vmem:[#allocation2 + $0x9a8] sm:$0xff]
    %v450 = vld [vmem:[#allocation2 + $0x9b0] sm:$0xff]
    %v451 = vld [vmem:[#allocation2 + $0x9b8] sm:$0xff]
    %v452 = vld [vmem:[#allocation2 + $0x9c0] sm:$0xff]
    %v453 = vld [vmem:[#allocation2 + $0x9c8] sm:$0xff]
    %v454 = vld [vmem:[#allocation2 + $0x9d0] sm:$0xff]
    %v455 = vld [vmem:[#allocation2 + $0x9d8] sm:$0xff]
    %v456 = vld [vmem:[#allocation2 + $0x9e0] sm:$0xff]
    %v457 = vld [vmem:[#allocation2 + $0x9e8] sm:$0xff]
    %v458 = vld [vmem:[#allocation2 + $0x9f0] sm:$0xff]
    %v459 = vld [vmem:[#allocation2 + $0x9f8] sm:$0xff]
    %v460 = vld [vmem:[#allocation2 + $0xa00] sm:$0xff]
    %v461 = vld [vmem:[#allocation2 + $0xa08] sm:$0xff]
    %v462 = vld [vmem:[#allocation2 + $0xa10] sm:$0xff]
    %v463 = vld [vmem:[#allocation2 + $0xa18] sm:$0xff]
    %v464 = vld [vmem:[#allocation2 + $0xa20] sm:$0xff]
    %v465 = vld [vmem:[#allocation2 + $0xa28] sm:$0xff]
    %v466 = vld [vmem:[#allocation2 + $0xa30] sm:$0xff]
    %v467 = vld [vmem:[#allocation2 + $0xa38] sm:$0xff]
    %v468 = vld [vmem:[#allocation2 + $0xa40] sm:$0xff]
    %v469 = vld [vmem:[#allocation2 + $0xa48] sm:$0xff]
    %v470 = vld [vmem:[#allocation2 + $0xa50] sm:$0xff]
    %v471 = vld [vmem:[#allocation2 + $0xa58] sm:$0xff]
    %v472 = vld [vmem:[#allocation2 + $0xa60] sm:$0xff]
    %v473 = vld [vmem:[#allocation2 + $0xa68] sm:$0xff]
    %v474 = vld [vmem:[#allocation2 + $0xa70] sm:$0xff]
    %v475 = vld [vmem:[#allocation2 + $0xa78] sm:$0xff]
    %v476 = vld [vmem:[#allocation2 + $0xa80] sm:$0xff]
    %v477 = vld [vmem:[#allocation2 + $0xa88] sm:$0xff]
    %v478 = vld [vmem:[#allocation2 + $0xa90] sm:$0xff]
    %v479 = vld [vmem:[#allocation2 + $0xa98] sm:$0xff]
    %v480 = vld [vmem:[#allocation2 + $0xaa0] sm:$0xff]
    %v481 = vld [vmem:[#allocation2 + $0xaa8] sm:$0xff]
    %v482 = vld [vmem:[#allocation2 + $0xab0] sm:$0xff]
    %v483 = vld [vmem:[#allocation2 + $0xab8] sm:$0xff]
    %v484 = vld [vmem:[#allocation2 + $0xac0] sm:$0xff]
    %v485 = vld [vmem:[#allocation2 + $0xac8] sm:$0xff]
    %v486 = vld [vmem:[#allocation2 + $0xad0] sm:$0xff]
    %v487 = vld [vmem:[#allocation2 + $0xad8] sm:$0xff]
    %v488 = vld [vmem:[#allocation2 + $0xae0] sm:$0xff]
    %v489 = vld [vmem:[#allocation2 + $0xae8] sm:$0xff]
    %v490 = vld [vmem:[#allocation2 + $0xaf0] sm:$0xff]
    %v491 = vld [vmem:[#allocation2 + $0xaf8] sm:$0xff]
    %v492 = vld [vmem:[#allocation2 + $0xb00] sm:$0xff]
    %v493 = vld [vmem:[#allocation2 + $0xb08] sm:$0xff]
    %v494 = vld [vmem:[#allocation2 + $0xb10] sm:$0xff]
    %v495 = vld [vmem:[#allocation2 + $0xb18] sm:$0xff]
    %v496 = vld [vmem:[#allocation2 + $0xb20] sm:$0xff]
    %v497 = vld [vmem:[#allocation2 + $0xb28] sm:$0xff]
    %v498 = vld [vmem:[#allocation2 + $0xb30] sm:$0xff]
    %v499 = vld [vmem:[#allocation2 + $0xb38] sm:$0xff]
    %v500 = vld [vmem:[#allocation2 + $0xb40] sm:$0xff]
    %v501 = vld [vmem:[#allocation2 + $0xb48] sm:$0xff]
    %v502 = vld [vmem:[#allocation2 + $0xb50] sm:$0xff]
    %v503 = vld [vmem:[#allocation2 + $0xb58] sm:$0xff]
    %v504 = vld [vmem:[#allocation2 + $0xb60] sm:$0xff]
    %v505 = vld [vmem:[#allocation2 + $0xb68] sm:$0xff]
    %v506 = vld [vmem:[#allocation2 + $0xb70] sm:$0xff]
    %v507 = vld [vmem:[#allocation2 + $0xb78] sm:$0xff]
    %v508 = vld [vmem:[#allocation2 + $0xb80] sm:$0xff]
    %v509 = vld [vmem:[#allocation2 + $0xb88] sm:$0xff]
    %v510 = vld [vmem:[#allocation2 + $0xb90] sm:$0xff]
    %v511 = vld [vmem:[#allocation2 + $0xb98] sm:$0xff]
    %v512 = vld [vmem:[#allocation2 + $0xba0] sm:$0xff]
    %v513 = vld [vmem:[#allocation2 + $0xba8] sm:$0xff]
    %v514 = vld [vmem:[#allocation2 + $0xbb0] sm:$0xff]
    %v515 = vld [vmem:[#allocation2 + $0xbb8] sm:$0xff]
    %v516 = vld [vmem:[#allocation2 + $0xbc0] sm:$0xff]
    %v517 = vld [vmem:[#allocation2 + $0xbc8] sm:$0xff]
    %v518 = vld [vmem:[#allocation2 + $0xbd0] sm:$0xff]
    %v519 = vld [vmem:[#allocation2 + $0xbd8] sm:$0xff]
    %v520 = vld [vmem:[#allocation2 + $0xbe0] sm:$0xff]
    %v521 = vld [vmem:[#allocation2 + $0xbe8] sm:$0xff]
    %v522 = vld [vmem:[#allocation2 + $0xbf0] sm:$0xff]
    %v523 = vld [vmem:[#allocation2 + $0xbf8] sm:$0xff]
    %v524 = vld [vmem:[#allocation2 + $0xc00] sm:$0xff]
    %v525 = vld [vmem:[#allocation2 + $0xc08] sm:$0xff]
    %v526 = vld [vmem:[#allocation2 + $0xc10] sm:$0xff]
    %v527 = vld [vmem:[#allocation2 + $0xc18] sm:$0xff]
    %v528 = vld [vmem:[#allocation2 + $0xc20] sm:$0xff]
    %v529 = vld [vmem:[#allocation2 + $0xc28] sm:$0xff]
    %v530 = vld [vmem:[#allocation2 + $0xc30] sm:$0xff]
    %v531 = vld [vmem:[#allocation2 + $0xc38] sm:$0xff]
    %v532 = vld [vmem:[#allocation2 + $0xc40] sm:$0xff]
    %v533 = vld [vmem:[#allocation2 + $0xc48] sm:$0xff]
    %v534 = vld [vmem:[#allocation2 + $0xc50] sm:$0xff]
    %v535 = vld [vmem:[#allocation2 + $0xc58] sm:$0xff]
    %v536 = vld [vmem:[#allocation2 + $0xc60] sm:$0xff]
    %v537 = vld [vmem:[#allocation2 + $0xc68] sm:$0xff]
    %v538 = vld [vmem:[#allocation2 + $0xc70] sm:$0xff]
    %v539 = vld [vmem:[#allocation2 + $0xc78] sm:$0xff]
    %v540 = vld [vmem:[#allocation2 + $0xc80] sm:$0xff]
    %v541 = vld [vmem:[#allocation2 + $0xc88] sm:$0xff]
    %v542 = vld [vmem:[#allocation2 + $0xc90] sm:$0xff]
    %v543 = vld [vmem:[#allocation2 + $0xc98] sm:$0xff]
    %v544 = vld [vmem:[#allocation2 + $0xca0] sm:$0xff]
    %v545 = vld [vmem:[#allocation2 + $0xca8] sm:$0xff]
    %v546 = vld [vmem:[#allocation2 + $0xcb0] sm:$0xff]
    %v547 = vld [vmem:[#allocation2 + $0xcb8] sm:$0xff]
    %v548 = vld [vmem:[#allocation2 + $0xcc0] sm:$0xff]
    %v549 = vld [vmem:[#allocation2 + $0xcc8] sm:$0xff]
    %v550 = vld [vmem:[#allocation2 + $0xcd0] sm:$0xff]
    %v551 = vld [vmem:[#allocation2 + $0xcd8] sm:$0xff]
    %v552 = vld [vmem:[#allocation2 + $0xce0] sm:$0xff]
    %v553 = vld [vmem:[#allocation2 + $0xce8] sm:$0xff]
    %v554 = vld [vmem:[#allocation2 + $0xcf0] sm:$0xff]
    %v555 = vld [vmem:[#allocation2 + $0xcf8] sm:$0xff]
    %v556 = vld [vmem:[#allocation2 + $0xd00] sm:$0xff]
    %v557 = vld [vmem:[#allocation2 + $0xd08] sm:$0xff]
    %v558 = vld [vmem:[#allocation2 + $0xd10] sm:$0xff]
    %v559 = vld [vmem:[#allocation2 + $0xd18] sm:$0xff]
    %v560 = vld [vmem:[#allocation2 + $0xd20] sm:$0xff]
    %v561 = vld [vmem:[#allocation2 + $0xd28] sm:$0xff]
    %v562 = vld [vmem:[#allocation2 + $0xd30] sm:$0xff]
    %v563 = vld [vmem:[#allocation2 + $0xd38] sm:$0xff]
    %v564 = vld [vmem:[#allocation2 + $0xd40] sm:$0xff]
    %v565 = vld [vmem:[#allocation2 + $0xd48] sm:$0xff]
    %v566 = vld [vmem:[#allocation2 + $0xd50] sm:$0xff]
    %v567 = vld [vmem:[#allocation2 + $0xd58] sm:$0xff]
    %v568 = vld [vmem:[#allocation2 + $0xd60] sm:$0xff]
    %v569 = vld [vmem:[#allocation2 + $0xd68] sm:$0xff]
    %v570 = vld [vmem:[#allocation2 + $0xd70] sm:$0xff]
    %v571 = vld [vmem:[#allocation2 + $0xd78] sm:$0xff]
    %v572 = vld [vmem:[#allocation2 + $0xd80] sm:$0xff]
    %v573 = vld [vmem:[#allocation2 + $0xd88] sm:$0xff]
    %v574 = vld [vmem:[#allocation2 + $0xd90] sm:$0xff]
    %v575 = vld [vmem:[#allocation2 + $0xd98] sm:$0xff]
    %v576 = vld [vmem:[#allocation2 + $0xda0] sm:$0xff]
    %v577 = vld [vmem:[#allocation2 + $0xda8] sm:$0xff]
    %v578 = vld [vmem:[#allocation2 + $0xdb0] sm:$0xff]
    %v579 = vld [vmem:[#allocation2 + $0xdb8] sm:$0xff]
    %v580 = vld [vmem:[#allocation2 + $0xdc0] sm:$0xff]
    %v581 = vld [vmem:[#allocation2 + $0xdc8] sm:$0xff]
    %v582 = vld [vmem:[#allocation2 + $0xdd0] sm:$0xff]
    %v583 = vld [vmem:[#allocation2 + $0xdd8] sm:$0xff]
    %v584 = vld [vmem:[#allocation2 + $0xde0] sm:$0xff]
    %v585 = vld [vmem:[#allocation2 + $0xde8] sm:$0xff]
    %v586 = vld [vmem:[#allocation2 + $0xdf0] sm:$0xff]
    %v587 = vld [vmem:[#allocation2 + $0xdf8] sm:$0xff]
    %v588 = vld [vmem:[#allocation2 + $0xe00] sm:$0xff]
    %v589 = vld [vmem:[#allocation2 + $0xe08] sm:$0xff]
    %v590 = vld [vmem:[#allocation2 + $0xe10] sm:$0xff]
    %v591 = vld [vmem:[#allocation2 + $0xe18] sm:$0xff]
    %v592 = vld [vmem:[#allocation2 + $0xe20] sm:$0xff]
    %v593 = vld [vmem:[#allocation2 + $0xe28] sm:$0xff]
    %v594 = vld [vmem:[#allocation2 + $0xe30] sm:$0xff]
    %v595 = vld [vmem:[#allocation2 + $0xe38] sm:$0xff]
    %v596 = vld [vmem:[#allocation2 + $0xe40] sm:$0xff]
    %v597 = vld [vmem:[#allocation2 + $0xe48] sm:$0xff]
    %v598 = vld [vmem:[#allocation2 + $0xe50] sm:$0xff]
    %v599 = vld [vmem:[#allocation2 + $0xe58] sm:$0xff]
    %v600 = vld [vmem:[#allocation2 + $0xe60] sm:$0xff]
    %v601 = vld [vmem:[#allocation2 + $0xe68] sm:$0xff]
    %v602 = vld [vmem:[#allocation2 + $0xe70] sm:$0xff]
    %v603 = vld [vmem:[#allocation2 + $0xe78] sm:$0xff]
    %v604 = vld [vmem:[#allocation2 + $0xe80] sm:$0xff]
    %v605 = vld [vmem:[#allocation2 + $0xe88] sm:$0xff]
    %v606 = vld [vmem:[#allocation2 + $0xe90] sm:$0xff]
    %v607 = vld [vmem:[#allocation2 + $0xe98] sm:$0xff]
    %v608 = vld [vmem:[#allocation2 + $0xea0] sm:$0xff]
    %v609 = vld [vmem:[#allocation2 + $0xea8] sm:$0xff]
    %v610 = vld [vmem:[#allocation2 + $0xeb0] sm:$0xff]
    %v611 = vld [vmem:[#allocation2 + $0xeb8] sm:$0xff]
    %v612 = vld [vmem:[#allocation2 + $0xec0] sm:$0xff]
    %v613 = vld [vmem:[#allocation2 + $0xec8] sm:$0xff]
    %v614 = vld [vmem:[#allocation2 + $0xed0] sm:$0xff]
    %v615 = vld [vmem:[#allocation2 + $0xed8] sm:$0xff]
    %v616 = vld [vmem:[#allocation2 + $0xee0] sm:$0xff]
    %v617 = vld [vmem:[#allocation2 + $0xee8] sm:$0xff]
    %v618 = vld [vmem:[#allocation2 + $0xef0] sm:$0xff]
    %v619 = vld [vmem:[#allocation2 + $0xef8] sm:$0xff]
    %v620 = vld [vmem:[#allocation2 + $0xf00] sm:$0xff]
    %v621 = vld [vmem:[#allocation2 + $0xf08] sm:$0xff]
    %v622 = vld [vmem:[#allocation2 + $0xf10] sm:$0xff]
    %v623 = vld [vmem:[#allocation2 + $0xf18] sm:$0xff]
    %v624 = vld [vmem:[#allocation2 + $0xf20] sm:$0xff]
    %v625 = vld [vmem:[#allocation2 + $0xf28] sm:$0xff]
    %v626 = vld [vmem:[#allocation2 + $0xf30] sm:$0xff]
    %v627 = vld [vmem:[#allocation2 + $0xf38] sm:$0xff]
    %v628 = vld [vmem:[#allocation2 + $0xf40] sm:$0xff]
    %v629 = vld [vmem:[#allocation2 + $0xf48] sm:$0xff]
    %v630 = vld [vmem:[#allocation2 + $0xf50] sm:$0xff]
    %v631 = vld [vmem:[#allocation2 + $0xf58] sm:$0xff]
    %v632 = vld [vmem:[#allocation2 + $0xf60] sm:$0xff]
    %v633 = vld [vmem:[#allocation2 + $0xf68] sm:$0xff]
    %v634 = vld [vmem:[#allocation2 + $0xf70] sm:$0xff]
    %v635 = vld [vmem:[#allocation2 + $0xf78] sm:$0xff]
    %v636 = vld [vmem:[#allocation2 + $0xf80] sm:$0xff]
    %v637 = vld [vmem:[#allocation2 + $0xf88] sm:$0xff]
    %v638 = vld [vmem:[#allocation2 + $0xf90] sm:$0xff]
    %v639 = vld [vmem:[#allocation2 + $0xf98] sm:$0xff]
    %v640 = vld [vmem:[#allocation2 + $0xfa0] sm:$0xff]
    %v641 = vld [vmem:[#allocation2 + $0xfa8] sm:$0xff]
    %v642 = vld [vmem:[#allocation2 + $0xfb0] sm:$0xff]
    %v643 = vld [vmem:[#allocation2 + $0xfb8] sm:$0xff]
    %v644 = vld [vmem:[#allocation2 + $0xfc0] sm:$0xff]
    %v645 = vld [vmem:[#allocation2 + $0xfc8] sm:$0xff]
    %v646 = vld [vmem:[#allocation2 + $0xfd0] sm:$0xff]
    %v647 = vld [vmem:[#allocation2 + $0xfd8] sm:$0xff]
    %v648 = vld [vmem:[#allocation2 + $0xfe0] sm:$0xff]
    %v649 = vld [vmem:[#allocation2 + $0xfe8] sm:$0xff]
    %v650 = vld [vmem:[#allocation2 + $0xff0] sm:$0xff]
    %v651 = vld [vmem:[#allocation2 + $0xff8] sm:$0xff]
    %v652 = vld [vmem:[#allocation2 + $0x1000] sm:$0xff]
    %v653 = vld [vmem:[#allocation2 + $0x1008] sm:$0xff]
    %v654 = vld [vmem:[#allocation2 + $0x1010] sm:$0xff]
    %v655 = vld [vmem:[#allocation2 + $0x1018] sm:$0xff]
    %v656 = vld [vmem:[#allocation2 + $0x1020] sm:$0xff]
    %v657 = vld [vmem:[#allocation2 + $0x1028] sm:$0xff]
    %v658 = vld [vmem:[#allocation2 + $0x1030] sm:$0xff]
    %v659 = vld [vmem:[#allocation2 + $0x1038] sm:$0xff]
    %v660 = vld [vmem:[#allocation2 + $0x1040] sm:$0xff]
    %v661 = vld [vmem:[#allocation2 + $0x1048] sm:$0xff]
    %v662 = vld [vmem:[#allocation2 + $0x1050] sm:$0xff]
    %v663 = vld [vmem:[#allocation2 + $0x1058] sm:$0xff]
    %v664 = vld [vmem:[#allocation2 + $0x1060] sm:$0xff]
    %v665 = vld [vmem:[#allocation2 + $0x1068] sm:$0xff]
    %v666 = vld [vmem:[#allocation2 + $0x1070] sm:$0xff]
    %v667 = vld [vmem:[#allocation2 + $0x1078] sm:$0xff]
    %v668 = vld [vmem:[#allocation2 + $0x1080] sm:$0xff]
    %v669 = vld [vmem:[#allocation2 + $0x1088] sm:$0xff]
    %v670 = vld [vmem:[#allocation2 + $0x1090] sm:$0xff]
    %v671 = vld [vmem:[#allocation2 + $0x1098] sm:$0xff]
    %v672 = vld [vmem:[#allocation2 + $0x10a0] sm:$0xff]
    %v673 = vld [vmem:[#allocation2 + $0x10a8] sm:$0xff]
    %v674 = vld [vmem:[#allocation2 + $0x10b0] sm:$0xff]
    %v675 = vld [vmem:[#allocation2 + $0x10b8] sm:$0xff]
    %v676 = vld [vmem:[#allocation2 + $0x10c0] sm:$0xff]
    %v677 = vld [vmem:[#allocation2 + $0x10c8] sm:$0xff]
    %v678 = vld [vmem:[#allocation2 + $0x10d0] sm:$0xff]
    %v679 = vld [vmem:[#allocation2 + $0x10d8] sm:$0xff]
    %v680 = vld [vmem:[#allocation2 + $0x10e0] sm:$0xff]
    %v681 = vld [vmem:[#allocation2 + $0x10e8] sm:$0xff]
    %v682 = vld [vmem:[#allocation2 + $0x10f0] sm:$0xff]
    %v683 = vld [vmem:[#allocation2 + $0x10f8] sm:$0xff]
    %v684 = vld [vmem:[#allocation2 + $0x1100] sm:$0xff]
    %v685 = vld [vmem:[#allocation2 + $0x1108] sm:$0xff]
    %v686 = vld [vmem:[#allocation2 + $0x1110] sm:$0xff]
    %v687 = vld [vmem:[#allocation2 + $0x1118] sm:$0xff]
    %v688 = vld [vmem:[#allocation2 + $0x1120] sm:$0xff]
    %v689 = vld [vmem:[#allocation2 + $0x1128] sm:$0xff]
    %v690 = vld [vmem:[#allocation2 + $0x1130] sm:$0xff]
    %v691 = vld [vmem:[#allocation2 + $0x1138] sm:$0xff]
    %v692 = vld [vmem:[#allocation2 + $0x1140] sm:$0xff]
    %v693 = vld [vmem:[#allocation2 + $0x1148] sm:$0xff]
    %v694 = vld [vmem:[#allocation2 + $0x1150] sm:$0xff]
    %v695 = vld [vmem:[#allocation2 + $0x1158] sm:$0xff]
    %v696 = vld [vmem:[#allocation2 + $0x1160] sm:$0xff]
    %v697 = vld [vmem:[#allocation2 + $0x1168] sm:$0xff]
    %v698 = vld [vmem:[#allocation2 + $0x1170] sm:$0xff]
    %v699 = vld [vmem:[#allocation2 + $0x1178] sm:$0xff]
    %v700 = vld [vmem:[#allocation2 + $0x1180] sm:$0xff]
    %v701 = vld [vmem:[#allocation2 + $0x1188] sm:$0xff]
    %v702 = vld [vmem:[#allocation2 + $0x1190] sm:$0xff]
    %v703 = vld [vmem:[#allocation2 + $0x1198] sm:$0xff]
    %v704 = vld [vmem:[#allocation2 + $0x11a0] sm:$0xff]
    %v705 = vld [vmem:[#allocation2 + $0x11a8] sm:$0xff]
    %v706 = vld [vmem:[#allocation2 + $0x11b0] sm:$0xff]
    %v707 = vld [vmem:[#allocation2 + $0x11b8] sm:$0xff]
    %v708 = vld [vmem:[#allocation2 + $0x11c0] sm:$0xff]
    %v709 = vld [vmem:[#allocation2 + $0x11c8] sm:$0xff]
    %v710 = vld [vmem:[#allocation2 + $0x11d0] sm:$0xff]
    %v711 = vld [vmem:[#allocation2 + $0x11d8] sm:$0xff]
    %v712 = vld [vmem:[#allocation2 + $0x11e0] sm:$0xff]
    %v713 = vld [vmem:[#allocation2 + $0x11e8] sm:$0xff]
    %v714 = vld [vmem:[#allocation2 + $0x11f0] sm:$0xff]
    %v715 = vld [vmem:[#allocation2 + $0x11f8] sm:$0xff]
    %v716 = vld [vmem:[#allocation2 + $0x1200] sm:$0xff]
    %v717 = vld [vmem:[#allocation2 + $0x1208] sm:$0xff]
    %v718 = vld [vmem:[#allocation2 + $0x1210] sm:$0xff]
    %v719 = vld [vmem:[#allocation2 + $0x1218] sm:$0xff]
    %v720 = vld [vmem:[#allocation2 + $0x1220] sm:$0xff]
    %v721 = vld [vmem:[#allocation2 + $0x1228] sm:$0xff]
    %v722 = vld [vmem:[#allocation2 + $0x1230] sm:$0xff]
    %v723 = vld [vmem:[#allocation2 + $0x1238] sm:$0xff]
    %v724 = vld [vmem:[#allocation2 + $0x1240] sm:$0xff]
    %v725 = vld [vmem:[#allocation2 + $0x1248] sm:$0xff]
    %v726 = vld [vmem:[#allocation2 + $0x1250] sm:$0xff]
    %v727 = vld [vmem:[#allocation2 + $0x1258] sm:$0xff]
    %v728 = vld [vmem:[#allocation2 + $0x1260] sm:$0xff]
    %v729 = vld [vmem:[#allocation2 + $0x1268] sm:$0xff]
    %v730 = vld [vmem:[#allocation2 + $0x1270] sm:$0xff]
    %v731 = vld [vmem:[#allocation2 + $0x1278] sm:$0xff]
    %v732 = vld [vmem:[#allocation2 + $0x1280] sm:$0xff]
    %v733 = vld [vmem:[#allocation2 + $0x1288] sm:$0xff]
    %v734 = vld [vmem:[#allocation2 + $0x1290] sm:$0xff]
    %v735 = vld [vmem:[#allocation2 + $0x1298] sm:$0xff]
    %v736 = vld [vmem:[#allocation2 + $0x12a0] sm:$0xff]
    %v737 = vld [vmem:[#allocation2 + $0x12a8] sm:$0xff]
    %v738 = vld [vmem:[#allocation2 + $0x12b0] sm:$0xff]
    %v739 = vld [vmem:[#allocation2 + $0x12b8] sm:$0xff]
    %v740 = vld [vmem:[#allocation2 + $0x12c0] sm:$0xff]
    %v741 = vld [vmem:[#allocation2 + $0x12c8] sm:$0xff]
    %v742 = vld [vmem:[#allocation2 + $0x12d0] sm:$0xff]
    %v743 = vld [vmem:[#allocation2 + $0x12d8] sm:$0xff]
    %v744 = vld [vmem:[#allocation2 + $0x12e0] sm:$0xff]
    %v745 = vld [vmem:[#allocation2 + $0x12e8] sm:$0xff]
    %v746 = vld [vmem:[#allocation2 + $0x12f0] sm:$0xff]
    %v747 = vld [vmem:[#allocation2 + $0x12f8] sm:$0xff]
    %v748 = vld [vmem:[#allocation2 + $0x1300] sm:$0xff]
    %v749 = vld [vmem:[#allocation2 + $0x1308] sm:$0xff]
    %v750 = vld [vmem:[#allocation2 + $0x1310] sm:$0xff]
    %v751 = vld [vmem:[#allocation2 + $0x1318] sm:$0xff]
    %v752 = vld [vmem:[#allocation2 + $0x1320] sm:$0xff]
    %v753 = vld [vmem:[#allocation2 + $0x1328] sm:$0xff]
    %v754 = vld [vmem:[#allocation2 + $0x1330] sm:$0xff]
    %v755 = vld [vmem:[#allocation2 + $0x1338] sm:$0xff]
    %v756 = vld [vmem:[#allocation2 + $0x1340] sm:$0xff]
    %v757 = vld [vmem:[#allocation2 + $0x1348] sm:$0xff]
    %v758 = vld [vmem:[#allocation2 + $0x1350] sm:$0xff]
    %v759 = vld [vmem:[#allocation2 + $0x1358] sm:$0xff]
    %v760 = vld [vmem:[#allocation2 + $0x1360] sm:$0xff]
    %v761 = vld [vmem:[#allocation2 + $0x1368] sm:$0xff]
    %v762 = vld [vmem:[#allocation2 + $0x1370] sm:$0xff]
    %v763 = vld [vmem:[#allocation2 + $0x1378] sm:$0xff]
    %v764 = vld [vmem:[#allocation2 + $0x1380] sm:$0xff]
    %v765 = vld [vmem:[#allocation2 + $0x1388] sm:$0xff]
    %v766 = vld [vmem:[#allocation2 + $0x1390] sm:$0xff]
    %v767 = vld [vmem:[#allocation2 + $0x1398] sm:$0xff]
    %v768 = vld [vmem:[#allocation2 + $0x13a0] sm:$0xff]
    %v769 = vld [vmem:[#allocation2 + $0x13a8] sm:$0xff]
    %v770 = vld [vmem:[#allocation2 + $0x13b0] sm:$0xff]
    %v771 = vld [vmem:[#allocation2 + $0x13b8] sm:$0xff]
    %v772 = vld [vmem:[#allocation2 + $0x13c0] sm:$0xff]
    %v773 = vld [vmem:[#allocation2 + $0x13c8] sm:$0xff]
    %v774 = vld [vmem:[#allocation2 + $0x13d0] sm:$0xff]
    %v775 = vld [vmem:[#allocation2 + $0x13d8] sm:$0xff]
    %v776 = vld [vmem:[#allocation2 + $0x13e0] sm:$0xff]
    %v777 = vld [vmem:[#allocation2 + $0x13e8] sm:$0xff]
    %v778 = vld [vmem:[#allocation2 + $0x13f0] sm:$0xff]
    %v779 = vld [vmem:[#allocation2 + $0x13f8] sm:$0xff]
    %v780 = vld [vmem:[#allocation2 + $0x1400] sm:$0xff]
    %v781 = vld [vmem:[#allocation2 + $0x1408] sm:$0xff]
    %v782 = vld [vmem:[#allocation2 + $0x1410] sm:$0xff]
    %v783 = vld [vmem:[#allocation2 + $0x1418] sm:$0xff]
    %v784 = vld [vmem:[#allocation2 + $0x1420] sm:$0xff]
    %v785 = vld [vmem:[#allocation2 + $0x1428] sm:$0xff]
    %v786 = vld [vmem:[#allocation2 + $0x1430] sm:$0xff]
    %v787 = vld [vmem:[#allocation2 + $0x1438] sm:$0xff]
    %v788 = vld [vmem:[#allocation2 + $0x1440] sm:$0xff]
    %v789 = vld [vmem:[#allocation2 + $0x1448] sm:$0xff]
    %v790 = vld [vmem:[#allocation2 + $0x1450] sm:$0xff]
    %v791 = vld [vmem:[#allocation2 + $0x1458] sm:$0xff]
    %v792 = vld [vmem:[#allocation2 + $0x1460] sm:$0xff]
    %v793 = vld [vmem:[#allocation2 + $0x1468] sm:$0xff]
    %v794 = vld [vmem:[#allocation2 + $0x1470] sm:$0xff]
    %v795 = vld [vmem:[#allocation2 + $0x1478] sm:$0xff]
    %v796 = vld [vmem:[#allocation2 + $0x1480] sm:$0xff]
    %v797 = vld [vmem:[#allocation2 + $0x1488] sm:$0xff]
    %v798 = vld [vmem:[#allocation2 + $0x1490] sm:$0xff]
    %v799 = vld [vmem:[#allocation2 + $0x1498] sm:$0xff]
    %v800 = vld [vmem:[#allocation2 + $0x14a0] sm:$0xff]
    %v801 = vld [vmem:[#allocation2 + $0x14a8] sm:$0xff]
    %v802 = vld [vmem:[#allocation2 + $0x14b0] sm:$0xff]
    %v803 = vld [vmem:[#allocation2 + $0x14b8] sm:$0xff]
    %v804 = vld [vmem:[#allocation2 + $0x14c0] sm:$0xff]
    %v805 = vld [vmem:[#allocation2 + $0x14c8] sm:$0xff]
    %v806 = vld [vmem:[#allocation2 + $0x14d0] sm:$0xff]
    %v807 = vld [vmem:[#allocation2 + $0x14d8] sm:$0xff]
    %v808 = vld [vmem:[#allocation2 + $0x14e0] sm:$0xff]
    %v809 = vld [vmem:[#allocation2 + $0x14e8] sm:$0xff]
    %v810 = vld [vmem:[#allocation2 + $0x14f0] sm:$0xff]
    %v811 = vld [vmem:[#allocation2 + $0x14f8] sm:$0xff]
    %v812 = vld [vmem:[#allocation2 + $0x1500] sm:$0xff]
    %v813 = vld [vmem:[#allocation2 + $0x1508] sm:$0xff]
    %v814 = vld [vmem:[#allocation2 + $0x1510] sm:$0xff]
    %v815 = vld [vmem:[#allocation2 + $0x1518] sm:$0xff]
    %v816 = vld [vmem:[#allocation2 + $0x1520] sm:$0xff]
    %v817 = vld [vmem:[#allocation2 + $0x1528] sm:$0xff]
    %v818 = vld [vmem:[#allocation2 + $0x1530] sm:$0xff]
    %v819 = vld [vmem:[#allocation2 + $0x1538] sm:$0xff]
    %v820 = vld [vmem:[#allocation2 + $0x1540] sm:$0xff]
    %v821 = vld [vmem:[#allocation2 + $0x1548] sm:$0xff]
    %v822 = vld [vmem:[#allocation2 + $0x1550] sm:$0xff]
    %v823 = vld [vmem:[#allocation2 + $0x1558] sm:$0xff]
    %v824 = vld [vmem:[#allocation2 + $0x1560] sm:$0xff]
    %v825 = vld [vmem:[#allocation2 + $0x1568] sm:$0xff]
    %v826 = vld [vmem:[#allocation2 + $0x1570] sm:$0xff]
    %v827 = vld [vmem:[#allocation2 + $0x1578] sm:$0xff]
    %v828 = vld [vmem:[#allocation2 + $0x1580] sm:$0xff]
    %v829 = vld [vmem:[#allocation2 + $0x1588] sm:$0xff]
    %v830 = vld [vmem:[#allocation2 + $0x1590] sm:$0xff]
    %v831 = vld [vmem:[#allocation2 + $0x1598] sm:$0xff]
    %v832 = vld [vmem:[#allocation2 + $0x15a0] sm:$0xff]
    %v833 = vld [vmem:[#allocation2 + $0x15a8] sm:$0xff]
    %v834 = vld [vmem:[#allocation2 + $0x15b0] sm:$0xff]
    %v835 = vld [vmem:[#allocation2 + $0x15b8] sm:$0xff]
    %v836 = vld [vmem:[#allocation2 + $0x15c0] sm:$0xff]
    %v837 = vld [vmem:[#allocation2 + $0x15c8] sm:$0xff]
    %v838 = vld [vmem:[#allocation2 + $0x15d0] sm:$0xff]
    %v839 = vld [vmem:[#allocation2 + $0x15d8] sm:$0xff]
    %v840 = vld [vmem:[#allocation2 + $0x15e0] sm:$0xff]
    %v841 = vld [vmem:[#allocation2 + $0x15e8] sm:$0xff]
    %v842 = vld [vmem:[#allocation2 + $0x15f0] sm:$0xff]
    %v843 = vld [vmem:[#allocation2 + $0x15f8] sm:$0xff]
    %v844 = vld [vmem:[#allocation2 + $0x1600] sm:$0xff]
    %v845 = vld [vmem:[#allocation2 + $0x1608] sm:$0xff]
    %v846 = vld [vmem:[#allocation2 + $0x1610] sm:$0xff]
    %v847 = vld [vmem:[#allocation2 + $0x1618] sm:$0xff]
    %v848 = vld [vmem:[#allocation2 + $0x1620] sm:$0xff]
    %v849 = vld [vmem:[#allocation2 + $0x1628] sm:$0xff]
    %v850 = vld [vmem:[#allocation2 + $0x1630] sm:$0xff]
    %v851 = vld [vmem:[#allocation2 + $0x1638] sm:$0xff]
    %v852 = vld [vmem:[#allocation2 + $0x1640] sm:$0xff]
    %v853 = vld [vmem:[#allocation2 + $0x1648] sm:$0xff]
    %v854 = vld [vmem:[#allocation2 + $0x1650] sm:$0xff]
    %v855 = vld [vmem:[#allocation2 + $0x1658] sm:$0xff]
    %v856 = vld [vmem:[#allocation2 + $0x1660] sm:$0xff]
    %v857 = vld [vmem:[#allocation2 + $0x1668] sm:$0xff]
    %v858 = vld [vmem:[#allocation2 + $0x1670] sm:$0xff]
    %v859 = vld [vmem:[#allocation2 + $0x1678] sm:$0xff]
    %v860 = vld [vmem:[#allocation2 + $0x1680] sm:$0xff]
    %v861 = vld [vmem:[#allocation2 + $0x1688] sm:$0xff]
    %v862 = vld [vmem:[#allocation2 + $0x1690] sm:$0xff]
    %v863 = vld [vmem:[#allocation2 + $0x1698] sm:$0xff]
    %v864 = vld [vmem:[#allocation2 + $0x16a0] sm:$0xff]
    %v865 = vld [vmem:[#allocation2 + $0x16a8] sm:$0xff]
    %v866 = vld [vmem:[#allocation2 + $0x16b0] sm:$0xff]
    %v867 = vld [vmem:[#allocation2 + $0x16b8] sm:$0xff]
    %v868 = vld [vmem:[#allocation2 + $0x16c0] sm:$0xff]
    %v869 = vld [vmem:[#allocation2 + $0x16c8] sm:$0xff]
    %v870 = vld [vmem:[#allocation2 + $0x16d0] sm:$0xff]
    %v871 = vld [vmem:[#allocation2 + $0x16d8] sm:$0xff]
    %v872 = vld [vmem:[#allocation2 + $0x16e0] sm:$0xff]
    %v873 = vld [vmem:[#allocation2 + $0x16e8] sm:$0xff]
    %v874 = vld [vmem:[#allocation2 + $0x16f0] sm:$0xff]
    %v875 = vld [vmem:[#allocation2 + $0x16f8] sm:$0xff]
    %v876 = vld [vmem:[#allocation2 + $0x1700] sm:$0xff]
    %v877 = vld [vmem:[#allocation2 + $0x1708] sm:$0xff]
    %v878 = vld [vmem:[#allocation2 + $0x1710] sm:$0xff]
    %v879 = vld [vmem:[#allocation2 + $0x1718] sm:$0xff]
    %v880 = vld [vmem:[#allocation2 + $0x1720] sm:$0xff]
    %v881 = vld [vmem:[#allocation2 + $0x1728] sm:$0xff]
    %v882 = vld [vmem:[#allocation2 + $0x1730] sm:$0xff]
    %v883 = vld [vmem:[#allocation2 + $0x1738] sm:$0xff]
    %v884 = vld [vmem:[#allocation2 + $0x1740] sm:$0xff]
    %v885 = vld [vmem:[#allocation2 + $0x1748] sm:$0xff]
    %v886 = vld [vmem:[#allocation2 + $0x1750] sm:$0xff]
    %v887 = vld [vmem:[#allocation2 + $0x1758] sm:$0xff]
    %v888 = vld [vmem:[#allocation2 + $0x1760] sm:$0xff]
    %v889 = vld [vmem:[#allocation2 + $0x1768] sm:$0xff]
    %v890 = vld [vmem:[#allocation2 + $0x1770] sm:$0xff]
    %v891 = vld [vmem:[#allocation2 + $0x1778] sm:$0xff]
    %v892 = vld [vmem:[#allocation2 + $0x1780] sm:$0xff]
    %v893 = vld [vmem:[#allocation2 + $0x1788] sm:$0xff]
    %v894 = vld [vmem:[#allocation2 + $0x1790] sm:$0xff]
    %v895 = vld [vmem:[#allocation2 + $0x1798] sm:$0xff]
    %v896 = vld [vmem:[#allocation2 + $0x17a0] sm:$0xff]
    %v897 = vld [vmem:[#allocation2 + $0x17a8] sm:$0xff]
    %v898 = vld [vmem:[#allocation2 + $0x17b0] sm:$0xff]
    %v899 = vld [vmem:[#allocation2 + $0x17b8] sm:$0xff]
    %v900 = vld [vmem:[#allocation2 + $0x17c0] sm:$0xff]
    %v901 = vld [vmem:[#allocation2 + $0x17c8] sm:$0xff]
    %v902 = vld [vmem:[#allocation2 + $0x17d0] sm:$0xff]
    %v903 = vld [vmem:[#allocation2 + $0x17d8] sm:$0xff]
    %v904 = vld [vmem:[#allocation2 + $0x17e0] sm:$0xff]
    %v905 = vld [vmem:[#allocation2 + $0x17e8] sm:$0xff]
    %v906 = vld [vmem:[#allocation2 + $0x17f0] sm:$0xff]
    %v907 = vld [vmem:[#allocation2 + $0x17f8] sm:$0xff]
    %v908 = vld [vmem:[#allocation2 + $0x1800] sm:$0xff]
    %v909 = vld [vmem:[#allocation2 + $0x1808] sm:$0xff]
    %v910 = vld [vmem:[#allocation2 + $0x1810] sm:$0xff]
    %v911 = vld [vmem:[#allocation2 + $0x1818] sm:$0xff]
    %v912 = vld [vmem:[#allocation2 + $0x1820] sm:$0xff]
    %v913 = vld [vmem:[#allocation2 + $0x1828] sm:$0xff]
    %v914 = vld [vmem:[#allocation2 + $0x1830] sm:$0xff]
    %v915 = vld [vmem:[#allocation2 + $0x1838] sm:$0xff]
    %v916 = vld [vmem:[#allocation2 + $0x1840] sm:$0xff]
    %v917 = vld [vmem:[#allocation2 + $0x1848] sm:$0xff]
    %v918 = vld [vmem:[#allocation2 + $0x1850] sm:$0xff]
    %v919 = vld [vmem:[#allocation2 + $0x1858] sm:$0xff]
    %v920 = vld [vmem:[#allocation2 + $0x1860] sm:$0xff]
    %v921 = vld [vmem:[#allocation2 + $0x1868] sm:$0xff]
    %v922 = vld [vmem:[#allocation2 + $0x1870] sm:$0xff]
    %v923 = vld [vmem:[#allocation2 + $0x1878] sm:$0xff]
    %v924 = vld [vmem:[#allocation2 + $0x1880] sm:$0xff]
    %v925 = vld [vmem:[#allocation2 + $0x1888] sm:$0xff]
    %v926 = vld [vmem:[#allocation2 + $0x1890] sm:$0xff]
    %v927 = vld [vmem:[#allocation2 + $0x1898] sm:$0xff]
    %v928 = vld [vmem:[#allocation2 + $0x18a0] sm:$0xff]
    %v929 = vld [vmem:[#allocation2 + $0x18a8] sm:$0xff]
    %v930 = vld [vmem:[#allocation2 + $0x18b0] sm:$0xff]
    %v931 = vld [vmem:[#allocation2 + $0x18b8] sm:$0xff]
    %v932 = vld [vmem:[#allocation2 + $0x18c0] sm:$0xff]
    %v933 = vld [vmem:[#allocation2 + $0x18c8] sm:$0xff]
    %v934 = vld [vmem:[#allocation2 + $0x18d0] sm:$0xff]
    %v935 = vld [vmem:[#allocation2 + $0x18d8] sm:$0xff]
    %v936 = vld [vmem:[#allocation2 + $0x18e0] sm:$0xff]
    %v937 = vld [vmem:[#allocation2 + $0x18e8] sm:$0xff]
    %v938 = vld [vmem:[#allocation2 + $0x18f0] sm:$0xff]
    %v939 = vld [vmem:[#allocation2 + $0x18f8] sm:$0xff]
    %v940 = vld [vmem:[#allocation2 + $0x1900] sm:$0xff]
    %v941 = vld [vmem:[#allocation2 + $0x1908] sm:$0xff]
    %v942 = vld [vmem:[#allocation2 + $0x1910] sm:$0xff]
    %v943 = vld [vmem:[#allocation2 + $0x1918] sm:$0xff]
    %v944 = vld [vmem:[#allocation2 + $0x1920] sm:$0xff]
    %v945 = vld [vmem:[#allocation2 + $0x1928] sm:$0xff]
    %v946 = vld [vmem:[#allocation2 + $0x1930] sm:$0xff]
    %v947 = vld [vmem:[#allocation2 + $0x1938] sm:$0xff]
    %v948 = vld [vmem:[#allocation2 + $0x1940] sm:$0xff]
    %v949 = vld [vmem:[#allocation2 + $0x1948] sm:$0xff]
    %v950 = vld [vmem:[#allocation2 + $0x1950] sm:$0xff]
    %v951 = vld [vmem:[#allocation2 + $0x1958] sm:$0xff]
    %v952 = vld [vmem:[#allocation2 + $0x1960] sm:$0xff]
    %v953 = vld [vmem:[#allocation2 + $0x1968] sm:$0xff]
    %v954 = vld [vmem:[#allocation2 + $0x1970] sm:$0xff]
    %v955 = vld [vmem:[#allocation2 + $0x1978] sm:$0xff]
    %v956 = vld [vmem:[#allocation2 + $0x1980] sm:$0xff]
    %v957 = vld [vmem:[#allocation2 + $0x1988] sm:$0xff]
    %v958 = vld [vmem:[#allocation2 + $0x1990] sm:$0xff]
    %v959 = vld [vmem:[#allocation2 + $0x1998] sm:$0xff]
    %v960 = vld [vmem:[#allocation2 + $0x19a0] sm:$0xff]
    %v961 = vld [vmem:[#allocation2 + $0x19a8] sm:$0xff]
    %v962 = vld [vmem:[#allocation2 + $0x19b0] sm:$0xff]
    %v963 = vld [vmem:[#allocation2 + $0x19b8] sm:$0xff]
    %v964 = vld [vmem:[#allocation2 + $0x19c0] sm:$0xff]
    %v965 = vld [vmem:[#allocation2 + $0x19c8] sm:$0xff]
    %v966 = vld [vmem:[#allocation2 + $0x19d0] sm:$0xff]
    %v967 = vld [vmem:[#allocation2 + $0x19d8] sm:$0xff]
    %v968 = vld [vmem:[#allocation2 + $0x19e0] sm:$0xff]
    %v969 = vld [vmem:[#allocation2 + $0x19e8] sm:$0xff]
    %v970 = vld [vmem:[#allocation2 + $0x19f0] sm:$0xff]
    %v971 = vld [vmem:[#allocation2 + $0x19f8] sm:$0xff]
    %v972 = vld [vmem:[#allocation2 + $0x1a00] sm:$0xff]
    %v973 = vld [vmem:[#allocation2 + $0x1a08] sm:$0xff]
    %v974 = vld [vmem:[#allocation2 + $0x1a10] sm:$0xff]
    %v975 = vld [vmem:[#allocation2 + $0x1a18] sm:$0xff]
    %v976 = vld [vmem:[#allocation2 + $0x1a20] sm:$0xff]
    %v977 = vld [vmem:[#allocation2 + $0x1a28] sm:$0xff]
    %v978 = vld [vmem:[#allocation2 + $0x1a30] sm:$0xff]
    %v979 = vld [vmem:[#allocation2 + $0x1a38] sm:$0xff]
    %v980 = vld [vmem:[#allocation2 + $0x1a40] sm:$0xff]
    %v981 = vld [vmem:[#allocation2 + $0x1a48] sm:$0xff]
    %v982 = vld [vmem:[#allocation2 + $0x1a50] sm:$0xff]
    %v983 = vld [vmem:[#allocation2 + $0x1a58] sm:$0xff]
    %v984 = vld [vmem:[#allocation2 + $0x1a60] sm:$0xff]
    %v985 = vld [vmem:[#allocation2 + $0x1a68] sm:$0xff]
    %v986 = vld [vmem:[#allocation2 + $0x1a70] sm:$0xff]
    %v987 = vld [vmem:[#allocation2 + $0x1a78] sm:$0xff]
    %v988 = vld [vmem:[#allocation2 + $0x1a80] sm:$0xff]
    %v989 = vld [vmem:[#allocation2 + $0x1a88] sm:$0xff]
    %v990 = vld [vmem:[#allocation2 + $0x1a90] sm:$0xff]
    %v991 = vld [vmem:[#allocation2 + $0x1a98] sm:$0xff]
    %v992 = vld [vmem:[#allocation2 + $0x1aa0] sm:$0xff]
    %v993 = vld [vmem:[#allocation2 + $0x1aa8] sm:$0xff]
    %v994 = vld [vmem:[#allocation2 + $0x1ab0] sm:$0xff]
    %v995 = vld [vmem:[#allocation2 + $0x1ab8] sm:$0xff]
    %v996 = vld [vmem:[#allocation2 + $0x1ac0] sm:$0xff]
    %v997 = vld [vmem:[#allocation2 + $0x1ac8] sm:$0xff]
    %v998 = vld [vmem:[#allocation2 + $0x1ad0] sm:$0xff]
    %v999 = vld [vmem:[#allocation2 + $0x1ad8] sm:$0xff]
    %v1000 = vld [vmem:[#allocation2 + $0x1ae0] sm:$0xff]
    %v1001 = vld [vmem:[#allocation2 + $0x1ae8] sm:$0xff]
    %v1002 = vld [vmem:[#allocation2 + $0x1af0] sm:$0xff]
    %v1003 = vld [vmem:[#allocation2 + $0x1af8] sm:$0xff]
    %v1004 = vld [vmem:[#allocation2 + $0x1b00] sm:$0xff]
    %v1005 = vld [vmem:[#allocation2 + $0x1b08] sm:$0xff]
    %v1006 = vld [vmem:[#allocation2 + $0x1b10] sm:$0xff]
    %v1007 = vld [vmem:[#allocation2 + $0x1b18] sm:$0xff]
    %v1008 = vld [vmem:[#allocation2 + $0x1b20] sm:$0xff]
    %v1009 = vld [vmem:[#allocation2 + $0x1b28] sm:$0xff]
    %v1010 = vld [vmem:[#allocation2 + $0x1b30] sm:$0xff]
    %v1011 = vld [vmem:[#allocation2 + $0x1b38] sm:$0xff]
    %v1012 = vld [vmem:[#allocation2 + $0x1b40] sm:$0xff]
    %v1013 = vld [vmem:[#allocation2 + $0x1b48] sm:$0xff]
    %v1014 = vld [vmem:[#allocation2 + $0x1b50] sm:$0xff]
    %v1015 = vld [vmem:[#allocation2 + $0x1b58] sm:$0xff]
    %v1016 = vld [vmem:[#allocation2 + $0x1b60] sm:$0xff]
    %v1017 = vld [vmem:[#allocation2 + $0x1b68] sm:$0xff]
    %v1018 = vld [vmem:[#allocation2 + $0x1b70] sm:$0xff]
    %v1019 = vld [vmem:[#allocation2 + $0x1b78] sm:$0xff]
    %v1020 = vld [vmem:[#allocation2 + $0x1b80] sm:$0xff]
    %v1021 = vld [vmem:[#allocation2 + $0x1b88] sm:$0xff]
    %v1022 = vld [vmem:[#allocation2 + $0x1b90] sm:$0xff]
    %v1023 = vld [vmem:[#allocation2 + $0x1b98] sm:$0xff]
    %v1024 = vld [vmem:[#allocation2 + $0x1ba0] sm:$0xff]
    %v1025 = vld [vmem:[#allocation2 + $0x1ba8] sm:$0xff]
    %v1026 = vld [vmem:[#allocation2 + $0x1bb0] sm:$0xff]
    %v1027 = vld [vmem:[#allocation2 + $0x1bb8] sm:$0xff]
    %v1028 = vld [vmem:[#allocation2 + $0x1bc0] sm:$0xff]
    %v1029 = vld [vmem:[#allocation2 + $0x1bc8] sm:$0xff]
    %v1030 = vld [vmem:[#allocation2 + $0x1bd0] sm:$0xff]
    %v1031 = vld [vmem:[#allocation2 + $0x1bd8] sm:$0xff]
    %v1032 = vld [vmem:[#allocation2 + $0x1be0] sm:$0xff]
    %v1033 = vld [vmem:[#allocation2 + $0x1be8] sm:$0xff]
    %v1034 = vld [vmem:[#allocation2 + $0x1bf0] sm:$0xff]
    %v1035 = vld [vmem:[#allocation2 + $0x1bf8] sm:$0xff]
    %v1036 = vld [vmem:[#allocation2 + $0x1c00] sm:$0xff]
    %v1037 = vld [vmem:[#allocation2 + $0x1c08] sm:$0xff]
    %v1038 = vld [vmem:[#allocation2 + $0x1c10] sm:$0xff]
    %v1039 = vld [vmem:[#allocation2 + $0x1c18] sm:$0xff]
    %v1040 = vld [vmem:[#allocation2 + $0x1c20] sm:$0xff]
    %v1041 = vld [vmem:[#allocation2 + $0x1c28] sm:$0xff]
    %v1042 = vld [vmem:[#allocation2 + $0x1c30] sm:$0xff]
    %v1043 = vld [vmem:[#allocation2 + $0x1c38] sm:$0xff]
    %v1044 = vld [vmem:[#allocation2 + $0x1c40] sm:$0xff]
    %v1045 = vld [vmem:[#allocation2 + $0x1c48] sm:$0xff]
    %v1046 = vld [vmem:[#allocation2 + $0x1c50] sm:$0xff]
    %v1047 = vld [vmem:[#allocation2 + $0x1c58] sm:$0xff]
    %v1048 = vld [vmem:[#allocation2 + $0x1c60] sm:$0xff]
    %v1049 = vld [vmem:[#allocation2 + $0x1c68] sm:$0xff]
    %v1050 = vld [vmem:[#allocation2 + $0x1c70] sm:$0xff]
    %v1051 = vld [vmem:[#allocation2 + $0x1c78] sm:$0xff]
    %v1052 = vld [vmem:[#allocation2 + $0x1c80] sm:$0xff]
    %v1053 = vld [vmem:[#allocation2 + $0x1c88] sm:$0xff]
    %v1054 = vld [vmem:[#allocation2 + $0x1c90] sm:$0xff]
    %v1055 = vld [vmem:[#allocation2 + $0x1c98] sm:$0xff]
    %v1056 = vld [vmem:[#allocation2 + $0x1ca0] sm:$0xff]
    %v1057 = vld [vmem:[#allocation2 + $0x1ca8] sm:$0xff]
    %v1058 = vld [vmem:[#allocation2 + $0x1cb0] sm:$0xff]
    %v1059 = vld [vmem:[#allocation2 + $0x1cb8] sm:$0xff]
    %v1060 = vld [vmem:[#allocation2 + $0x1cc0] sm:$0xff]
    %v1061 = vld [vmem:[#allocation2 + $0x1cc8] sm:$0xff]
    %v1062 = vld [vmem:[#allocation2 + $0x1cd0] sm:$0xff]
    %v1063 = vld [vmem:[#allocation2 + $0x1cd8] sm:$0xff]
    %v1064 = vld [vmem:[#allocation2 + $0x1ce0] sm:$0xff]
    %v1065 = vld [vmem:[#allocation2 + $0x1ce8] sm:$0xff]
    %v1066 = vld [vmem:[#allocation2 + $0x1cf0] sm:$0xff]
    %v1067 = vld [vmem:[#allocation2 + $0x1cf8] sm:$0xff]
    %v1068 = vld [vmem:[#allocation2 + $0x1d00] sm:$0xff]
    %v1069 = vld [vmem:[#allocation2 + $0x1d08] sm:$0xff]
    %v1070 = vld [vmem:[#allocation2 + $0x1d10] sm:$0xff]
    %v1071 = vld [vmem:[#allocation2 + $0x1d18] sm:$0xff]
    %v1072 = vld [vmem:[#allocation2 + $0x1d20] sm:$0xff]
    %v1073 = vld [vmem:[#allocation2 + $0x1d28] sm:$0xff]
    %v1074 = vld [vmem:[#allocation2 + $0x1d30] sm:$0xff]
    %v1075 = vld [vmem:[#allocation2 + $0x1d38] sm:$0xff]
    %v1076 = vld [vmem:[#allocation2 + $0x1d40] sm:$0xff]
    %v1077 = vld [vmem:[#allocation2 + $0x1d48] sm:$0xff]
    %v1078 = vld [vmem:[#allocation2 + $0x1d50] sm:$0xff]
    %v1079 = vld [vmem:[#allocation2 + $0x1d58] sm:$0xff]
    %v1080 = vld [vmem:[#allocation2 + $0x1d60] sm:$0xff]
    %v1081 = vld [vmem:[#allocation2 + $0x1d68] sm:$0xff]
    %v1082 = vld [vmem:[#allocation2 + $0x1d70] sm:$0xff]
    %v1083 = vld [vmem:[#allocation2 + $0x1d78] sm:$0xff]
    %v1084 = vld [vmem:[#allocation2 + $0x1d80] sm:$0xff]
    %v1085 = vld [vmem:[#allocation2 + $0x1d88] sm:$0xff]
    %v1086 = vld [vmem:[#allocation2 + $0x1d90] sm:$0xff]
    %v1087 = vld [vmem:[#allocation2 + $0x1d98] sm:$0xff]
    %v1088 = vld [vmem:[#allocation2 + $0x1da0] sm:$0xff]
    %v1089 = vld [vmem:[#allocation2 + $0x1da8] sm:$0xff]
    %v1090 = vld [vmem:[#allocation2 + $0x1db0] sm:$0xff]
    %v1091 = vld [vmem:[#allocation2 + $0x1db8] sm:$0xff]
    %v1092 = vld [vmem:[#allocation2 + $0x1dc0] sm:$0xff]
    %v1093 = vld [vmem:[#allocation2 + $0x1dc8] sm:$0xff]
    %v1094 = vld [vmem:[#allocation2 + $0x1dd0] sm:$0xff]
    %v1095 = vld [vmem:[#allocation2 + $0x1dd8] sm:$0xff]
    %v1096 = vld [vmem:[#allocation2 + $0x1de0] sm:$0xff]
    %v1097 = vld [vmem:[#allocation2 + $0x1de8] sm:$0xff]
    %v1098 = vld [vmem:[#allocation2 + $0x1df0] sm:$0xff]
    %v1099 = vld [vmem:[#allocation2 + $0x1df8] sm:$0xff]
    %v1100 = vld [vmem:[#allocation2 + $0x1e00] sm:$0xff]
    %v1101 = vld [vmem:[#allocation2 + $0x1e08] sm:$0xff]
    %v1102 = vld [vmem:[#allocation2 + $0x1e10] sm:$0xff]
    %v1103 = vld [vmem:[#allocation2 + $0x1e18] sm:$0xff]
    %v1104 = vld [vmem:[#allocation2 + $0x1e20] sm:$0xff]
    %v1105 = vld [vmem:[#allocation2 + $0x1e28] sm:$0xff]
    %v1106 = vld [vmem:[#allocation2 + $0x1e30] sm:$0xff]
    %v1107 = vld [vmem:[#allocation2 + $0x1e38] sm:$0xff]
    %v1108 = vld [vmem:[#allocation2 + $0x1e40] sm:$0xff]
    %v1109 = vld [vmem:[#allocation2 + $0x1e48] sm:$0xff]
    %v1110 = vld [vmem:[#allocation2 + $0x1e50] sm:$0xff]
    %v1111 = vld [vmem:[#allocation2 + $0x1e58] sm:$0xff]
    %v1112 = vld [vmem:[#allocation2 + $0x1e60] sm:$0xff]
    %v1113 = vld [vmem:[#allocation2 + $0x1e68] sm:$0xff]
    %v1114 = vld [vmem:[#allocation2 + $0x1e70] sm:$0xff]
    %v1115 = vld [vmem:[#allocation2 + $0x1e78] sm:$0xff]
    %v1116 = vld [vmem:[#allocation2 + $0x1e80] sm:$0xff]
    %v1117 = vld [vmem:[#allocation2 + $0x1e88] sm:$0xff]
    %v1118 = vld [vmem:[#allocation2 + $0x1e90] sm:$0xff]
    %v1119 = vld [vmem:[#allocation2 + $0x1e98] sm:$0xff]
    %v1120 = vld [vmem:[#allocation2 + $0x1ea0] sm:$0xff]
    %v1121 = vld [vmem:[#allocation2 + $0x1ea8] sm:$0xff]
    %v1122 = vld [vmem:[#allocation2 + $0x1eb0] sm:$0xff]
    %v1123 = vld [vmem:[#allocation2 + $0x1eb8] sm:$0xff]
    %v1124 = vld [vmem:[#allocation2 + $0x1ec0] sm:$0xff]
    %v1125 = vld [vmem:[#allocation2 + $0x1ec8] sm:$0xff]
    %v1126 = vld [vmem:[#allocation2 + $0x1ed0] sm:$0xff]
    %v1127 = vld [vmem:[#allocation2 + $0x1ed8] sm:$0xff]
    %v1128 = vld [vmem:[#allocation2 + $0x1ee0] sm:$0xff]
    %v1129 = vld [vmem:[#allocation2 + $0x1ee8] sm:$0xff]
    %v1130 = vld [vmem:[#allocation2 + $0x1ef0] sm:$0xff]
    %v1131 = vld [vmem:[#allocation2 + $0x1ef8] sm:$0xff]
    %v1132 = vld [vmem:[#allocation2 + $0x1f00] sm:$0xff]
    %v1133 = vld [vmem:[#allocation2 + $0x1f08] sm:$0xff]
    %v1134 = vld [vmem:[#allocation2 + $0x1f10] sm:$0xff]
    %v1135 = vld [vmem:[#allocation2 + $0x1f18] sm:$0xff]
    %v1136 = vld [vmem:[#allocation2 + $0x1f20] sm:$0xff]
    %v1137 = vld [vmem:[#allocation2 + $0x1f28] sm:$0xff]
    %v1138 = vld [vmem:[#allocation2 + $0x1f30] sm:$0xff]
    %v1139 = vld [vmem:[#allocation2 + $0x1f38] sm:$0xff]
    %v1140 = vld [vmem:[#allocation2 + $0x1f40] sm:$0xff]
    %v1141 = vld [vmem:[#allocation2 + $0x1f48] sm:$0xff]
    %v1142 = vld [vmem:[#allocation2 + $0x1f50] sm:$0xff]
    %v1143 = vld [vmem:[#allocation2 + $0x1f58] sm:$0xff]
    %v1144 = vld [vmem:[#allocation2 + $0x1f60] sm:$0xff]
    %v1145 = vld [vmem:[#allocation2 + $0x1f68] sm:$0xff]
    %v1146 = vld [vmem:[#allocation2 + $0x1f70] sm:$0xff]
    %v1147 = vld [vmem:[#allocation2 + $0x1f78] sm:$0xff]
    %v1148 = vld [vmem:[#allocation2 + $0x1f80] sm:$0xff]
    %v1149 = vld [vmem:[#allocation2 + $0x1f88] sm:$0xff]
    %v1150 = vld [vmem:[#allocation2 + $0x1f90] sm:$0xff]
    %v1151 = vld [vmem:[#allocation2 + $0x1f98] sm:$0xff]
    %v1152 = vld [vmem:[#allocation2 + $0x1fa0] sm:$0xff]
    %v1153 = vld [vmem:[#allocation2 + $0x1fa8] sm:$0xff]
    %v1154 = vld [vmem:[#allocation2 + $0x1fb0] sm:$0xff]
    %v1155 = vld [vmem:[#allocation2 + $0x1fb8] sm:$0xff]
    %v1156 = vld [vmem:[#allocation2 + $0x1fc0] sm:$0xff]
    %v1157 = vld [vmem:[#allocation2 + $0x1fc8] sm:$0xff]
    %v1158 = vld [vmem:[#allocation2 + $0x1fd0] sm:$0xff]
    %v1159 = vld [vmem:[#allocation2 + $0x1fd8] sm:$0xff]
    %v1160 = vld [vmem:[#allocation2 + $0x1fe0] sm:$0xff]
    %v1161 = vld [vmem:[#allocation2 + $0x1fe8] sm:$0xff]
    %v1162 = vld [vmem:[#allocation2 + $0x1ff0] sm:$0xff]
    %v1163 = vld [vmem:[#allocation2 + $0x1ff8] sm:$0xff]
    %v1164 = vld [vmem:[#allocation5] sm:$0xff]
    %v1166 = vlaneseq
    %v1167 = vshrl.u32 %v1166, 7
    %v1168 = vsub.s32 0, %v1167
    %v1169 = vrot.slane %v1164, %v1168
    %v1170 = vlaneseq
    %v1171 = vshrl.u32 %v1170, 7
    %v1172 = vsub.s32 1, %v1171
    %v1173 = vrot.slane %v1164, %v1172
    %v1174 = vlaneseq
    %v1175 = vshrl.u32 %v1174, 7
    %v1176 = vsub.s32 2, %v1175
    %v1177 = vrot.slane %v1164, %v1176
    %v1178 = vlaneseq
    %v1179 = vshrl.u32 %v1178, 7
    %v1180 = vsub.s32 3, %v1179
    %v1181 = vrot.slane %v1164, %v1180
    %v1182 = vlaneseq
    %v1183 = vshrl.u32 %v1182, 7
    %v1184 = vsub.s32 4, %v1183
    %v1185 = vrot.slane %v1164, %v1184
    %v1186 = vlaneseq
    %v1187 = vshrl.u32 %v1186, 7
    %v1188 = vsub.s32 5, %v1187
    %v1189 = vrot.slane %v1164, %v1188
    %v1190 = vlaneseq
    %v1191 = vshrl.u32 %v1190, 7
    %v1192 = vsub.s32 6, %v1191
    %v1193 = vrot.slane %v1164, %v1192
    %v1194 = vlaneseq
    %v1195 = vshrl.u32 %v1194, 7
    %v1196 = vsub.s32 7, %v1195
    %v1197 = vrot.slane %v1164, %v1196
    %v1208 = vcombine.high %v138, %v138
    %v1210 = vunpack.c.l.s4 1983009808
    %v1211 = vunpack.c.0.s8 %v1210
    %v1212 = vlaneseq
    %v1213 = vshrl.u32 %v1212, 7
    %v1214 = vsub.s32 %v1211, %v1213
    %v1215 = vrot.slane %v138, %v1214
    %v1217 = vunpack.c.l.s4 1983009808
    %v1218 = vunpack.c.0.s8 %v1217
    %v1219 = vlaneseq
    %v1220 = vshrl.u32 %v1219, 7
    %v1221 = vsub.s32 %v1218, %v1220
    %v1222 = vrot.slane %v1208, %v1221
    %v1223 = vcombine.high %v1215, %v1215
    %v1224 = vcombine.high %v1222, %v1222
    %v1225 = vcombine.high %v139, %v139
    %v1227 = vunpack.c.l.s4 1983009808
    %v1228 = vunpack.c.0.s8 %v1227
    %v1229 = vlaneseq
    %v1230 = vshrl.u32 %v1229, 7
    %v1231 = vsub.s32 %v1228, %v1230
    %v1232 = vrot.slane %v139, %v1231
    %v1234 = vunpack.c.l.s4 1983009808
    %v1235 = vunpack.c.0.s8 %v1234
    %v1236 = vlaneseq
    %v1237 = vshrl.u32 %v1236, 7
    %v1238 = vsub.s32 %v1235, %v1237
    %v1239 = vrot.slane %v1225, %v1238
    %v1240 = vcombine.high %v1232, %v1232
    %v1241 = vcombine.high %v1239, %v1239
    %1250 = vmatprep.subr.mxu0 %v261
    %1251 = vmatpush1.msra.mxu0 %v260
    %1252 = vmatprep.subr.mxu0 %v253
    %1253 = vmatpush1.msra.mxu0 %v252
    %1254 = vmatprep.subr.mxu0 %v245
    %1255 = vmatpush1.msra.mxu0 %v244
    %1256 = vmatprep.subr.mxu0 %v237
    %1257 = vmatpush1.msra.mxu0 %v236
    %1258 = vmatprep.subr.mxu0 %v229
    %1259 = vmatpush1.msra.mxu0 %v228
    %1260 = vmatprep.subr.mxu0 %v221
    %1261 = vmatpush1.msra.mxu0 %v220
    %1262 = vmatprep.subr.mxu0 %v213
    %1263 = vmatpush1.msra.mxu0 %v212
    %1264 = vmatprep.subr.mxu0 %v205
    %1265 = vmatpush1.msra.mxu0 %v204
    %1266 = vmatprep.subr.mxu0 %v197
    %1267 = vmatpush1.msra.mxu0 %v196
    %1268 = vmatprep.subr.mxu0 %v189
    %1269 = vmatpush1.msra.mxu0 %v188
    %1270 = vmatprep.subr.mxu0 %v181
    %1271 = vmatpush1.msra.mxu0 %v180
    %1272 = vmatprep.subr.mxu0 %v173
    %1273 = vmatpush1.msra.mxu0 %v172
    %1274 = vmatprep.subr.mxu0 %v165
    %1275 = vmatpush1.msra.mxu0 %v164
    %1276 = vmatprep.subr.mxu0 %v157
    %1277 = vmatpush1.msra.mxu0 %v156
    %1278 = vmatprep.subr.mxu0 %v149
    %1279 = vmatpush1.msra.mxu0 %v148
    %1280 = vmatprep.subr.mxu0 %v141
    %1281 = vmatpush1.msra.mxu0 %v140
    %1282 = vmatprep.subr.mxu0 %v389
    %1283 = vmatpush2.msra.mxu0 %v388
    %1284 = vmatprep.subr.mxu0 %v381
    %1285 = vmatpush2.msra.mxu0 %v380
    %1286 = vmatprep.subr.mxu0 %v373
    %1287 = vmatpush2.msra.mxu0 %v372
    %1288 = vmatprep.subr.mxu0 %v365
    %1289 = vmatpush2.msra.mxu0 %v364
    %1290 = vmatprep.subr.mxu0 %v357
    %1291 = vmatpush2.msra.mxu0 %v356
    %1292 = vmatprep.subr.mxu0 %v349
    %1293 = vmatpush2.msra.mxu0 %v348
    %1294 = vmatprep.subr.mxu0 %v341
    %1295 = vmatpush2.msra.mxu0 %v340
    %1296 = vmatprep.subr.mxu0 %v333
    %1297 = vmatpush2.msra.mxu0 %v332
    %1298 = vmatprep.subr.mxu0 %v325
    %1299 = vmatpush2.msra.mxu0 %v324
    %1300 = vmatprep.subr.mxu0 %v317
    %1301 = vmatpush2.msra.mxu0 %v316
    %1302 = vmatprep.subr.mxu0 %v309
    %1303 = vmatpush2.msra.mxu0 %v308
    %1304 = vmatprep.subr.mxu0 %v301
    %1305 = vmatpush2.msra.mxu0 %v300
    %1306 = vmatprep.subr.mxu0 %v293
    %1307 = vmatpush2.msra.mxu0 %v292
    %1308 = vmatprep.subr.mxu0 %v285
    %1309 = vmatpush2.msra.mxu0 %v284
    %1310 = vmatprep.subr.mxu0 %v277
    %1311 = vmatpush2.msra.mxu0 %v276
    %1312 = vmatprep.subr.mxu0 %v269
    %1313 = vmatpush2.msra.mxu0 %v268
    %1314 = vmatprep.mubr.f32.mxu0 %v1223
    %1315 = vmatmul.mubr.f32.gmra.mxu0 %v1215
    %v1316 = vpop.f32.mrf.mxu0
    %v1317 = vadd.f32 %v1169, %v1316
    %v1318 = vpop.f32.mrf.mxu0
    %v1319 = vadd.f32 %v1173, %v1318
    %1320 = vdwg.mxu0
    %1321 = vmatprep.subr.mxu0 %v517
    %1322 = vmatpush1.msra.mxu0 %v516
    %1323 = vmatprep.subr.mxu0 %v509
    %1324 = vmatpush1.msra.mxu0 %v508
    %1325 = vmatprep.subr.mxu0 %v501
    %1326 = vmatpush1.msra.mxu0 %v500
    %1327 = vmatprep.subr.mxu0 %v493
    %1328 = vmatpush1.msra.mxu0 %v492
    %1329 = vmatprep.subr.mxu0 %v485
    %1330 = vmatpush1.msra.mxu0 %v484
    %1331 = vmatprep.subr.mxu0 %v477
    %1332 = vmatpush1.msra.mxu0 %v476
    %1333 = vmatprep.subr.mxu0 %v469
    %1334 = vmatpush1.msra.mxu0 %v468
    %1335 = vmatprep.subr.mxu0 %v461
    %1336 = vmatpush1.msra.mxu0 %v460
    %1337 = vmatprep.subr.mxu0 %v453
    %1338 = vmatpush1.msra.mxu0 %v452
    %1339 = vmatprep.subr.mxu0 %v445
    %1340 = vmatpush1.msra.mxu0 %v444
    %1341 = vmatprep.subr.mxu0 %v437
    %1342 = vmatpush1.msra.mxu0 %v436
    %1343 = vmatprep.subr.mxu0 %v429
    %1344 = vmatpush1.msra.mxu0 %v428
    %1345 = vmatprep.subr.mxu0 %v421
    %1346 = vmatpush1.msra.mxu0 %v420
    %1347 = vmatprep.subr.mxu0 %v413
    %1348 = vmatpush1.msra.mxu0 %v412
    %1349 = vmatprep.subr.mxu0 %v405
    %1350 = vmatpush1.msra.mxu0 %v404
    %1351 = vmatprep.subr.mxu0 %v397
    %1352 = vmatpush1.msra.mxu0 %v396
    %1353 = vmatprep.subr.mxu0 %v645
    %1354 = vmatpush2.msra.mxu0 %v644
    %1355 = vmatprep.subr.mxu0 %v637
    %1356 = vmatpush2.msra.mxu0 %v636
    %1357 = vmatprep.subr.mxu0 %v629
    %1358 = vmatpush2.msra.mxu0 %v628
    %1359 = vmatprep.subr.mxu0 %v621
    %1360 = vmatpush2.msra.mxu0 %v620
    %1361 = vmatprep.subr.mxu0 %v613
    %1362 = vmatpush2.msra.mxu0 %v612
    %1363 = vmatprep.subr.mxu0 %v605
    %1364 = vmatpush2.msra.mxu0 %v604
    %1365 = vmatprep.subr.mxu0 %v597
    %1366 = vmatpush2.msra.mxu0 %v596
    %1367 = vmatprep.subr.mxu0 %v589
    %1368 = vmatpush2.msra.mxu0 %v588
    %1369 = vmatprep.subr.mxu0 %v581
    %1370 = vmatpush2.msra.mxu0 %v580
    %1371 = vmatprep.subr.mxu0 %v573
    %1372 = vmatpush2.msra.mxu0 %v572
    %1373 = vmatprep.subr.mxu0 %v565
    %1374 = vmatpush2.msra.mxu0 %v564
    %1375 = vmatprep.subr.mxu0 %v557
    %1376 = vmatpush2.msra.mxu0 %v556
    %1377 = vmatprep.subr.mxu0 %v549
    %1378 = vmatpush2.msra.mxu0 %v548
    %1379 = vmatprep.subr.mxu0 %v541
    %1380 = vmatpush2.msra.mxu0 %v540
    %1381 = vmatprep.subr.mxu0 %v533
    %1382 = vmatpush2.msra.mxu0 %v532
    %1383 = vmatprep.subr.mxu0 %v525
    %1384 = vmatpush2.msra.mxu0 %v524
    %1385 = vmatprep.mubr.f32.mxu0 %v1224
    %1386 = vmatmul.mubr.f32.gmra.mxu0 %v1222
    %v1387 = vpop.f32.mrf.mxu0
    %v1388 = vadd.f32 %v1317, %v1387
    %v1389 = vpop.f32.mrf.mxu0
    %v1390 = vadd.f32 %v1319, %v1389
    %1391 = vdwg.mxu0
    %1392 = vmatprep.subr.mxu0 %v773
    %1393 = vmatpush1.msra.mxu0 %v772
    %1394 = vmatprep.subr.mxu0 %v765
    %1395 = vmatpush1.msra.mxu0 %v764
    %1396 = vmatprep.subr.mxu0 %v757
    %1397 = vmatpush1.msra.mxu0 %v756
    %1398 = vmatprep.subr.mxu0 %v749
    %1399 = vmatpush1.msra.mxu0 %v748
    %1400 = vmatprep.subr.mxu0 %v741
    %1401 = vmatpush1.msra.mxu0 %v740
    %1402 = vmatprep.subr.mxu0 %v733
    %1403 = vmatpush1.msra.mxu0 %v732
    %1404 = vmatprep.subr.mxu0 %v725
    %1405 = vmatpush1.msra.mxu0 %v724
    %1406 = vmatprep.subr.mxu0 %v717
    %1407 = vmatpush1.msra.mxu0 %v716
    %1408 = vmatprep.subr.mxu0 %v709
    %1409 = vmatpush1.msra.mxu0 %v708
    %1410 = vmatprep.subr.mxu0 %v701
    %1411 = vmatpush1.msra.mxu0 %v700
    %1412 = vmatprep.subr.mxu0 %v693
    %1413 = vmatpush1.msra.mxu0 %v692
    %1414 = vmatprep.subr.mxu0 %v685
    %1415 = vmatpush1.msra.mxu0 %v684
    %1416 = vmatprep.subr.mxu0 %v677
    %1417 = vmatpush1.msra.mxu0 %v676
    %1418 = vmatprep.subr.mxu0 %v669
    %1419 = vmatpush1.msra.mxu0 %v668
    %1420 = vmatprep.subr.mxu0 %v661
    %1421 = vmatpush1.msra.mxu0 %v660
    %1422 = vmatprep.subr.mxu0 %v653
    %1423 = vmatpush1.msra.mxu0 %v652
    %1424 = vmatprep.subr.mxu0 %v901
    %1425 = vmatpush2.msra.mxu0 %v900
    %1426 = vmatprep.subr.mxu0 %v893
    %1427 = vmatpush2.msra.mxu0 %v892
    %1428 = vmatprep.subr.mxu0 %v885
    %1429 = vmatpush2.msra.mxu0 %v884
    %1430 = vmatprep.subr.mxu0 %v877
    %1431 = vmatpush2.msra.mxu0 %v876
    %1432 = vmatprep.subr.mxu0 %v869
    %1433 = vmatpush2.msra.mxu0 %v868
    %1434 = vmatprep.subr.mxu0 %v861
    %1435 = vmatpush2.msra.mxu0 %v860
    %1436 = vmatprep.subr.mxu0 %v853
    %1437 = vmatpush2.msra.mxu0 %v852
    %1438 = vmatprep.subr.mxu0 %v845
    %1439 = vmatpush2.msra.mxu0 %v844
    %1440 = vmatprep.subr.mxu0 %v837
    %1441 = vmatpush2.msra.mxu0 %v836
    %1442 = vmatprep.subr.mxu0 %v829
    %1443 = vmatpush2.msra.mxu0 %v828
    %1444 = vmatprep.subr.mxu0 %v821
    %1445 = vmatpush2.msra.mxu0 %v820
    %1446 = vmatprep.subr.mxu0 %v813
    %1447 = vmatpush2.msra.mxu0 %v812
    %1448 = vmatprep.subr.mxu0 %v805
    %1449 = vmatpush2.msra.mxu0 %v804
    %1450 = vmatprep.subr.mxu0 %v797
    %1451 = vmatpush2.msra.mxu0 %v796
    %1452 = vmatprep.subr.mxu0 %v789
    %1453 = vmatpush2.msra.mxu0 %v788
    %1454 = vmatprep.subr.mxu0 %v781
    %1455 = vmatpush2.msra.mxu0 %v780
    %1456 = vmatprep.mubr.f32.mxu0 %v1240
    %1457 = vmatmul.mubr.f32.gmra.mxu0 %v1232
    %v1458 = vpop.f32.mrf.mxu0
    %v1459 = vadd.f32 %v1388, %v1458
    %v1460 = vpop.f32.mrf.mxu0
    %v1461 = vadd.f32 %v1390, %v1460
    %1462 = vdwg.mxu0
    %1463 = vmatprep.subr.mxu0 %v1029
    %1464 = vmatpush1.msra.mxu0 %v1028
    %1465 = vmatprep.subr.mxu0 %v1021
    %1466 = vmatpush1.msra.mxu0 %v1020
    %1467 = vmatprep.subr.mxu0 %v1013
    %1468 = vmatpush1.msra.mxu0 %v1012
    %1469 = vmatprep.subr.mxu0 %v1005
    %1470 = vmatpush1.msra.mxu0 %v1004
    %1471 = vmatprep.subr.mxu0 %v997
    %1472 = vmatpush1.msra.mxu0 %v996
    %1473 = vmatprep.subr.mxu0 %v989
    %1474 = vmatpush1.msra.mxu0 %v988
    %1475 = vmatprep.subr.mxu0 %v981
    %1476 = vmatpush1.msra.mxu0 %v980
    %1477 = vmatprep.subr.mxu0 %v973
    %1478 = vmatpush1.msra.mxu0 %v972
    %1479 = vmatprep.subr.mxu0 %v965
    %1480 = vmatpush1.msra.mxu0 %v964
    %1481 = vmatprep.subr.mxu0 %v957
    %1482 = vmatpush1.msra.mxu0 %v956
    %1483 = vmatprep.subr.mxu0 %v949
    %1484 = vmatpush1.msra.mxu0 %v948
    %1485 = vmatprep.subr.mxu0 %v941
    %1486 = vmatpush1.msra.mxu0 %v940
    %1487 = vmatprep.subr.mxu0 %v933
    %1488 = vmatpush1.msra.mxu0 %v932
    %1489 = vmatprep.subr.mxu0 %v925
    %1490 = vmatpush1.msra.mxu0 %v924
    %1491 = vmatprep.subr.mxu0 %v917
    %1492 = vmatpush1.msra.mxu0 %v916
    %1493 = vmatprep.subr.mxu0 %v909
    %1494 = vmatpush1.msra.mxu0 %v908
    %1495 = vmatprep.subr.mxu0 %v1157
    %1496 = vmatpush2.msra.mxu0 %v1156
    %1497 = vmatprep.subr.mxu0 %v1149
    %1498 = vmatpush2.msra.mxu0 %v1148
    %1499 = vmatprep.subr.mxu0 %v1141
    %1500 = vmatpush2.msra.mxu0 %v1140
    %1501 = vmatprep.subr.mxu0 %v1133
    %1502 = vmatpush2.msra.mxu0 %v1132
    %1503 = vmatprep.subr.mxu0 %v1125
    %1504 = vmatpush2.msra.mxu0 %v1124
    %1505 = vmatprep.subr.mxu0 %v1117
    %1506 = vmatpush2.msra.mxu0 %v1116
    %1507 = vmatprep.subr.mxu0 %v1109
    %1508 = vmatpush2.msra.mxu0 %v1108
    %1509 = vmatprep.subr.mxu0 %v1101
    %1510 = vmatpush2.msra.mxu0 %v1100
    %1511 = vmatprep.subr.mxu0 %v1093
    %1512 = vmatpush2.msra.mxu0 %v1092
    %1513 = vmatprep.subr.mxu0 %v1085
    %1514 = vmatpush2.msra.mxu0 %v1084
    %1515 = vmatprep.subr.mxu0 %v1077
    %1516 = vmatpush2.msra.mxu0 %v1076
    %1517 = vmatprep.subr.mxu0 %v1069
    %1518 = vmatpush2.msra.mxu0 %v1068
    %1519 = vmatprep.subr.mxu0 %v1061
    %1520 = vmatpush2.msra.mxu0 %v1060
    %1521 = vmatprep.subr.mxu0 %v1053
    %1522 = vmatpush2.msra.mxu0 %v1052
    %1523 = vmatprep.subr.mxu0 %v1045
    %1524 = vmatpush2.msra.mxu0 %v1044
    %1525 = vmatprep.subr.mxu0 %v1037
    %1526 = vmatpush2.msra.mxu0 %v1036
    %1527 = vmatprep.mubr.f32.mxu0 %v1241
    %1528 = vmatmul.mubr.f32.gmra.mxu0 %v1239
    %v1529 = vpop.f32.mrf.mxu0
    %v1530 = vadd.f32 %v1459, %v1529
    %v1531 = vpop.f32.mrf.mxu0
    %v1532 = vadd.f32 %v1461, %v1531
    %1533 = vdwg.mxu0
    %1534 = vmatprep.subr.mxu0 %v263
    %1535 = vmatpush1.msra.mxu0 %v262
    %1536 = vmatprep.subr.mxu0 %v255
    %1537 = vmatpush1.msra.mxu0 %v254
    %1538 = vmatprep.subr.mxu0 %v247
    %1539 = vmatpush1.msra.mxu0 %v246
    %1540 = vmatprep.subr.mxu0 %v239
    %1541 = vmatpush1.msra.mxu0 %v238
    %1542 = vmatprep.subr.mxu0 %v231
    %1543 = vmatpush1.msra.mxu0 %v230
    %1544 = vmatprep.subr.mxu0 %v223
    %1545 = vmatpush1.msra.mxu0 %v222
    %1546 = vmatprep.subr.mxu0 %v215
    %1547 = vmatpush1.msra.mxu0 %v214
    %1548 = vmatprep.subr.mxu0 %v207
    %1549 = vmatpush1.msra.mxu0 %v206
    %1550 = vmatprep.subr.mxu0 %v199
    %1551 = vmatpush1.msra.mxu0 %v198
    %1552 = vmatprep.subr.mxu0 %v191
    %1553 = vmatpush1.msra.mxu0 %v190
    %1554 = vmatprep.subr.mxu0 %v183
    %1555 = vmatpush1.msra.mxu0 %v182
    %1556 = vmatprep.subr.mxu0 %v175
    %1557 = vmatpush1.msra.mxu0 %v174
    %1558 = vmatprep.subr.mxu0 %v167
    %1559 = vmatpush1.msra.mxu0 %v166
    %1560 = vmatprep.subr.mxu0 %v159
    %1561 = vmatpush1.msra.mxu0 %v158
    %1562 = vmatprep.subr.mxu0 %v151
    %1563 = vmatpush1.msra.mxu0 %v150
    %1564 = vmatprep.subr.mxu0 %v143
    %1565 = vmatpush1.msra.mxu0 %v142
    %1566 = vmatprep.subr.mxu0 %v391
    %1567 = vmatpush2.msra.mxu0 %v390
    %1568 = vmatprep.subr.mxu0 %v383
    %1569 = vmatpush2.msra.mxu0 %v382
    %1570 = vmatprep.subr.mxu0 %v375
    %1571 = vmatpush2.msra.mxu0 %v374
    %1572 = vmatprep.subr.mxu0 %v367
    %1573 = vmatpush2.msra.mxu0 %v366
    %1574 = vmatprep.subr.mxu0 %v359
    %1575 = vmatpush2.msra.mxu0 %v358
    %1576 = vmatprep.subr.mxu0 %v351
    %1577 = vmatpush2.msra.mxu0 %v350
    %1578 = vmatprep.subr.mxu0 %v343
    %1579 = vmatpush2.msra.mxu0 %v342
    %1580 = vmatprep.subr.mxu0 %v335
    %1581 = vmatpush2.msra.mxu0 %v334
    %1582 = vmatprep.subr.mxu0 %v327
    %1583 = vmatpush2.msra.mxu0 %v326
    %1584 = vmatprep.subr.mxu0 %v319
    %1585 = vmatpush2.msra.mxu0 %v318
    %1586 = vmatprep.subr.mxu0 %v311
    %1587 = vmatpush2.msra.mxu0 %v310
    %1588 = vmatprep.subr.mxu0 %v303
    %1589 = vmatpush2.msra.mxu0 %v302
    %1590 = vmatprep.subr.mxu0 %v295
    %1591 = vmatpush2.msra.mxu0 %v294
    %1592 = vmatprep.subr.mxu0 %v287
    %1593 = vmatpush2.msra.mxu0 %v286
    %1594 = vmatprep.subr.mxu0 %v279
    %1595 = vmatpush2.msra.mxu0 %v278
    %1596 = vmatprep.subr.mxu0 %v271
    %1597 = vmatpush2.msra.mxu0 %v270
    %1598 = vmatprep.mubr.f32.mxu0 %v1223
    %1599 = vmatmul.mubr.f32.gmra.mxu0 %v1215
    %v1600 = vpop.f32.mrf.mxu0
    %v1601 = vadd.f32 %v1177, %v1600
    %v1602 = vpop.f32.mrf.mxu0
    %v1603 = vadd.f32 %v1181, %v1602
    %1604 = vdwg.mxu0
    %1605 = vmatprep.subr.mxu0 %v519
    %1606 = vmatpush1.msra.mxu0 %v518
    %1607 = vmatprep.subr.mxu0 %v511
    %1608 = vmatpush1.msra.mxu0 %v510
    %1609 = vmatprep.subr.mxu0 %v503
    %1610 = vmatpush1.msra.mxu0 %v502
    %1611 = vmatprep.subr.mxu0 %v495
    %1612 = vmatpush1.msra.mxu0 %v494
    %1613 = vmatprep.subr.mxu0 %v487
    %1614 = vmatpush1.msra.mxu0 %v486
    %1615 = vmatprep.subr.mxu0 %v479
    %1616 = vmatpush1.msra.mxu0 %v478
    %1617 = vmatprep.subr.mxu0 %v471
    %1618 = vmatpush1.msra.mxu0 %v470
    %1619 = vmatprep.subr.mxu0 %v463
    %1620 = vmatpush1.msra.mxu0 %v462
    %1621 = vmatprep.subr.mxu0 %v455
    %1622 = vmatpush1.msra.mxu0 %v454
    %1623 = vmatprep.subr.mxu0 %v447
    %1624 = vmatpush1.msra.mxu0 %v446
    %1625 = vmatprep.subr.mxu0 %v439
    %1626 = vmatpush1.msra.mxu0 %v438
    %1627 = vmatprep.subr.mxu0 %v431
    %1628 = vmatpush1.msra.mxu0 %v430
    %1629 = vmatprep.subr.mxu0 %v423
    %1630 = vmatpush1.msra.mxu0 %v422
    %1631 = vmatprep.subr.mxu0 %v415
    %1632 = vmatpush1.msra.mxu0 %v414
    %1633 = vmatprep.subr.mxu0 %v407
    %1634 = vmatpush1.msra.mxu0 %v406
    %1635 = vmatprep.subr.mxu0 %v399
    %1636 = vmatpush1.msra.mxu0 %v398
    %1637 = vmatprep.subr.mxu0 %v647
    %1638 = vmatpush2.msra.mxu0 %v646
    %1639 = vmatprep.subr.mxu0 %v639
    %1640 = vmatpush2.msra.mxu0 %v638
    %1641 = vmatprep.subr.mxu0 %v631
    %1642 = vmatpush2.msra.mxu0 %v630
    %1643 = vmatprep.subr.mxu0 %v623
    %1644 = vmatpush2.msra.mxu0 %v622
    %1645 = vmatprep.subr.mxu0 %v615
    %1646 = vmatpush2.msra.mxu0 %v614
    %1647 = vmatprep.subr.mxu0 %v607
    %1648 = vmatpush2.msra.mxu0 %v606
    %1649 = vmatprep.subr.mxu0 %v599
    %1650 = vmatpush2.msra.mxu0 %v598
    %1651 = vmatprep.subr.mxu0 %v591
    %1652 = vmatpush2.msra.mxu0 %v590
    %1653 = vmatprep.subr.mxu0 %v583
    %1654 = vmatpush2.msra.mxu0 %v582
    %1655 = vmatprep.subr.mxu0 %v575
    %1656 = vmatpush2.msra.mxu0 %v574
    %1657 = vmatprep.subr.mxu0 %v567
    %1658 = vmatpush2.msra.mxu0 %v566
    %1659 = vmatprep.subr.mxu0 %v559
    %1660 = vmatpush2.msra.mxu0 %v558
    %1661 = vmatprep.subr.mxu0 %v551
    %1662 = vmatpush2.msra.mxu0 %v550
    %1663 = vmatprep.subr.mxu0 %v543
    %1664 = vmatpush2.msra.mxu0 %v542
    %1665 = vmatprep.subr.mxu0 %v535
    %1666 = vmatpush2.msra.mxu0 %v534
    %1667 = vmatprep.subr.mxu0 %v527
    %1668 = vmatpush2.msra.mxu0 %v526
    %1669 = vmatprep.mubr.f32.mxu0 %v1224
    %1670 = vmatmul.mubr.f32.gmra.mxu0 %v1222
    %v1671 = vpop.f32.mrf.mxu0
    %v1672 = vadd.f32 %v1601, %v1671
    %v1673 = vpop.f32.mrf.mxu0
    %v1674 = vadd.f32 %v1603, %v1673
    %1675 = vdwg.mxu0
    %1676 = vmatprep.subr.mxu0 %v775
    %1677 = vmatpush1.msra.mxu0 %v774
    %1678 = vmatprep.subr.mxu0 %v767
    %1679 = vmatpush1.msra.mxu0 %v766
    %1680 = vmatprep.subr.mxu0 %v759
    %1681 = vmatpush1.msra.mxu0 %v758
    %1682 = vmatprep.subr.mxu0 %v751
    %1683 = vmatpush1.msra.mxu0 %v750
    %1684 = vmatprep.subr.mxu0 %v743
    %1685 = vmatpush1.msra.mxu0 %v742
    %1686 = vmatprep.subr.mxu0 %v735
    %1687 = vmatpush1.msra.mxu0 %v734
    %1688 = vmatprep.subr.mxu0 %v727
    %1689 = vmatpush1.msra.mxu0 %v726
    %1690 = vmatprep.subr.mxu0 %v719
    %1691 = vmatpush1.msra.mxu0 %v718
    %1692 = vmatprep.subr.mxu0 %v711
    %1693 = vmatpush1.msra.mxu0 %v710
    %1694 = vmatprep.subr.mxu0 %v703
    %1695 = vmatpush1.msra.mxu0 %v702
    %1696 = vmatprep.subr.mxu0 %v695
    %1697 = vmatpush1.msra.mxu0 %v694
    %1698 = vmatprep.subr.mxu0 %v687
    %1699 = vmatpush1.msra.mxu0 %v686
    %1700 = vmatprep.subr.mxu0 %v679
    %1701 = vmatpush1.msra.mxu0 %v678
    %1702 = vmatprep.subr.mxu0 %v671
    %1703 = vmatpush1.msra.mxu0 %v670
    %1704 = vmatprep.subr.mxu0 %v663
    %1705 = vmatpush1.msra.mxu0 %v662
    %1706 = vmatprep.subr.mxu0 %v655
    %1707 = vmatpush1.msra.mxu0 %v654
    %1708 = vmatprep.subr.mxu0 %v903
    %1709 = vmatpush2.msra.mxu0 %v902
    %1710 = vmatprep.subr.mxu0 %v895
    %1711 = vmatpush2.msra.mxu0 %v894
    %1712 = vmatprep.subr.mxu0 %v887
    %1713 = vmatpush2.msra.mxu0 %v886
    %1714 = vmatprep.subr.mxu0 %v879
    %1715 = vmatpush2.msra.mxu0 %v878
    %1716 = vmatprep.subr.mxu0 %v871
    %1717 = vmatpush2.msra.mxu0 %v870
    %1718 = vmatprep.subr.mxu0 %v863
    %1719 = vmatpush2.msra.mxu0 %v862
    %1720 = vmatprep.subr.mxu0 %v855
    %1721 = vmatpush2.msra.mxu0 %v854
    %1722 = vmatprep.subr.mxu0 %v847
    %1723 = vmatpush2.msra.mxu0 %v846
    %1724 = vmatprep.subr.mxu0 %v839
    %1725 = vmatpush2.msra.mxu0 %v838
    %1726 = vmatprep.subr.mxu0 %v831
    %1727 = vmatpush2.msra.mxu0 %v830
    %1728 = vmatprep.subr.mxu0 %v823
    %1729 = vmatpush2.msra.mxu0 %v822
    %1730 = vmatprep.subr.mxu0 %v815
    %1731 = vmatpush2.msra.mxu0 %v814
    %1732 = vmatprep.subr.mxu0 %v807
    %1733 = vmatpush2.msra.mxu0 %v806
    %1734 = vmatprep.subr.mxu0 %v799
    %1735 = vmatpush2.msra.mxu0 %v798
    %1736 = vmatprep.subr.mxu0 %v791
    %1737 = vmatpush2.msra.mxu0 %v790
    %1738 = vmatprep.subr.mxu0 %v783
    %1739 = vmatpush2.msra.mxu0 %v782
    %1740 = vmatprep.mubr.f32.mxu0 %v1240
    %1741 = vmatmul.mubr.f32.gmra.mxu0 %v1232
    %v1742 = vpop.f32.mrf.mxu0
    %v1743 = vadd.f32 %v1672, %v1742
    %v1744 = vpop.f32.mrf.mxu0
    %v1745 = vadd.f32 %v1674, %v1744
    %1746 = vdwg.mxu0
    %1747 = vmatprep.subr.mxu0 %v1031
    %1748 = vmatpush1.msra.mxu0 %v1030
    %1749 = vmatprep.subr.mxu0 %v1023
    %1750 = vmatpush1.msra.mxu0 %v1022
    %1751 = vmatprep.subr.mxu0 %v1015
    %1752 = vmatpush1.msra.mxu0 %v1014
    %1753 = vmatprep.subr.mxu0 %v1007
    %1754 = vmatpush1.msra.mxu0 %v1006
    %1755 = vmatprep.subr.mxu0 %v999
    %1756 = vmatpush1.msra.mxu0 %v998
    %1757 = vmatprep.subr.mxu0 %v991
    %1758 = vmatpush1.msra.mxu0 %v990
    %1759 = vmatprep.subr.mxu0 %v983
    %1760 = vmatpush1.msra.mxu0 %v982
    %1761 = vmatprep.subr.mxu0 %v975
    %1762 = vmatpush1.msra.mxu0 %v974
    %1763 = vmatprep.subr.mxu0 %v967
    %1764 = vmatpush1.msra.mxu0 %v966
    %1765 = vmatprep.subr.mxu0 %v959
    %1766 = vmatpush1.msra.mxu0 %v958
    %1767 = vmatprep.subr.mxu0 %v951
    %1768 = vmatpush1.msra.mxu0 %v950
    %1769 = vmatprep.subr.mxu0 %v943
    %1770 = vmatpush1.msra.mxu0 %v942
    %1771 = vmatprep.subr.mxu0 %v935
    %1772 = vmatpush1.msra.mxu0 %v934
    %1773 = vmatprep.subr.mxu0 %v927
    %1774 = vmatpush1.msra.mxu0 %v926
    %1775 = vmatprep.subr.mxu0 %v919
    %1776 = vmatpush1.msra.mxu0 %v918
    %1777 = vmatprep.subr.mxu0 %v911
    %1778 = vmatpush1.msra.mxu0 %v910
    %1779 = vmatprep.subr.mxu0 %v1159
    %1780 = vmatpush2.msra.mxu0 %v1158
    %1781 = vmatprep.subr.mxu0 %v1151
    %1782 = vmatpush2.msra.mxu0 %v1150
    %1783 = vmatprep.subr.mxu0 %v1143
    %1784 = vmatpush2.msra.mxu0 %v1142
    %1785 = vmatprep.subr.mxu0 %v1135
    %1786 = vmatpush2.msra.mxu0 %v1134
    %1787 = vmatprep.subr.mxu0 %v1127
    %1788 = vmatpush2.msra.mxu0 %v1126
    %1789 = vmatprep.subr.mxu0 %v1119
    %1790 = vmatpush2.msra.mxu0 %v1118
    %1791 = vmatprep.subr.mxu0 %v1111
    %1792 = vmatpush2.msra.mxu0 %v1110
    %1793 = vmatprep.subr.mxu0 %v1103
    %1794 = vmatpush2.msra.mxu0 %v1102
    %1795 = vmatprep.subr.mxu0 %v1095
    %1796 = vmatpush2.msra.mxu0 %v1094
    %1797 = vmatprep.subr.mxu0 %v1087
    %1798 = vmatpush2.msra.mxu0 %v1086
    %1799 = vmatprep.subr.mxu0 %v1079
    %1800 = vmatpush2.msra.mxu0 %v1078
    %1801 = vmatprep.subr.mxu0 %v1071
    %1802 = vmatpush2.msra.mxu0 %v1070
    %1803 = vmatprep.subr.mxu0 %v1063
    %1804 = vmatpush2.msra.mxu0 %v1062
    %1805 = vmatprep.subr.mxu0 %v1055
    %1806 = vmatpush2.msra.mxu0 %v1054
    %1807 = vmatprep.subr.mxu0 %v1047
    %1808 = vmatpush2.msra.mxu0 %v1046
    %1809 = vmatprep.subr.mxu0 %v1039
    %1810 = vmatpush2.msra.mxu0 %v1038
    %1811 = vmatprep.mubr.f32.mxu0 %v1241
    %1812 = vmatmul.mubr.f32.gmra.mxu0 %v1239
    %v1813 = vpop.f32.mrf.mxu0
    %v1814 = vadd.f32 %v1743, %v1813
    %v1815 = vpop.f32.mrf.mxu0
    %v1816 = vadd.f32 %v1745, %v1815
    %1817 = vdwg.mxu0
    %1818 = vmatprep.subr.mxu0 %v265
    %1819 = vmatpush1.msra.mxu0 %v264
    %1820 = vmatprep.subr.mxu0 %v257
    %1821 = vmatpush1.msra.mxu0 %v256
    %1822 = vmatprep.subr.mxu0 %v249
    %1823 = vmatpush1.msra.mxu0 %v248
    %1824 = vmatprep.subr.mxu0 %v241
    %1825 = vmatpush1.msra.mxu0 %v240
    %1826 = vmatprep.subr.mxu0 %v233
    %1827 = vmatpush1.msra.mxu0 %v232
    %1828 = vmatprep.subr.mxu0 %v225
    %1829 = vmatpush1.msra.mxu0 %v224
    %1830 = vmatprep.subr.mxu0 %v217
    %1831 = vmatpush1.msra.mxu0 %v216
    %1832 = vmatprep.subr.mxu0 %v209
    %1833 = vmatpush1.msra.mxu0 %v208
    %1834 = vmatprep.subr.mxu0 %v201
    %1835 = vmatpush1.msra.mxu0 %v200
    %1836 = vmatprep.subr.mxu0 %v193
    %1837 = vmatpush1.msra.mxu0 %v192
    %1838 = vmatprep.subr.mxu0 %v185
    %1839 = vmatpush1.msra.mxu0 %v184
    %1840 = vmatprep.subr.mxu0 %v177
    %1841 = vmatpush1.msra.mxu0 %v176
    %1842 = vmatprep.subr.mxu0 %v169
    %1843 = vmatpush1.msra.mxu0 %v168
    %1844 = vmatprep.subr.mxu0 %v161
    %1845 = vmatpush1.msra.mxu0 %v160
    %1846 = vmatprep.subr.mxu0 %v153
    %1847 = vmatpush1.msra.mxu0 %v152
    %1848 = vmatprep.subr.mxu0 %v145
    %1849 = vmatpush1.msra.mxu0 %v144
    %1850 = vmatprep.subr.mxu0 %v393
    %1851 = vmatpush2.msra.mxu0 %v392
    %1852 = vmatprep.subr.mxu0 %v385
    %1853 = vmatpush2.msra.mxu0 %v384
    %1854 = vmatprep.subr.mxu0 %v377
    %1855 = vmatpush2.msra.mxu0 %v376
    %1856 = vmatprep.subr.mxu0 %v369
    %1857 = vmatpush2.msra.mxu0 %v368
    %1858 = vmatprep.subr.mxu0 %v361
    %1859 = vmatpush2.msra.mxu0 %v360
    %1860 = vmatprep.subr.mxu0 %v353
    %1861 = vmatpush2.msra.mxu0 %v352
    %1862 = vmatprep.subr.mxu0 %v345
    %1863 = vmatpush2.msra.mxu0 %v344
    %1864 = vmatprep.subr.mxu0 %v337
    %1865 = vmatpush2.msra.mxu0 %v336
    %1866 = vmatprep.subr.mxu0 %v329
    %1867 = vmatpush2.msra.mxu0 %v328
    %1868 = vmatprep.subr.mxu0 %v321
    %1869 = vmatpush2.msra.mxu0 %v320
    %1870 = vmatprep.subr.mxu0 %v313
    %1871 = vmatpush2.msra.mxu0 %v312
    %1872 = vmatprep.subr.mxu0 %v305
    %1873 = vmatpush2.msra.mxu0 %v304
    %1874 = vmatprep.subr.mxu0 %v297
    %1875 = vmatpush2.msra.mxu0 %v296
    %1876 = vmatprep.subr.mxu0 %v289
    %1877 = vmatpush2.msra.mxu0 %v288
    %1878 = vmatprep.subr.mxu0 %v281
    %1879 = vmatpush2.msra.mxu0 %v280
    %1880 = vmatprep.subr.mxu0 %v273
    %1881 = vmatpush2.msra.mxu0 %v272
    %1882 = vmatprep.mubr.f32.mxu0 %v1223
    %1883 = vmatmul.mubr.f32.gmra.mxu0 %v1215
    %v1884 = vpop.f32.mrf.mxu0
    %v1885 = vadd.f32 %v1185, %v1884
    %v1886 = vpop.f32.mrf.mxu0
    %v1887 = vadd.f32 %v1189, %v1886
    %1888 = vdwg.mxu0
    %1889 = vmatprep.subr.mxu0 %v521
    %1890 = vmatpush1.msra.mxu0 %v520
    %1891 = vmatprep.subr.mxu0 %v513
    %1892 = vmatpush1.msra.mxu0 %v512
    %1893 = vmatprep.subr.mxu0 %v505
    %1894 = vmatpush1.msra.mxu0 %v504
    %1895 = vmatprep.subr.mxu0 %v497
    %1896 = vmatpush1.msra.mxu0 %v496
    %1897 = vmatprep.subr.mxu0 %v489
    %1898 = vmatpush1.msra.mxu0 %v488
    %1899 = vmatprep.subr.mxu0 %v481
    %1900 = vmatpush1.msra.mxu0 %v480
    %1901 = vmatprep.subr.mxu0 %v473
    %1902 = vmatpush1.msra.mxu0 %v472
    %1903 = vmatprep.subr.mxu0 %v465
    %1904 = vmatpush1.msra.mxu0 %v464
    %1905 = vmatprep.subr.mxu0 %v457
    %1906 = vmatpush1.msra.mxu0 %v456
    %1907 = vmatprep.subr.mxu0 %v449
    %1908 = vmatpush1.msra.mxu0 %v448
    %1909 = vmatprep.subr.mxu0 %v441
    %1910 = vmatpush1.msra.mxu0 %v440
    %1911 = vmatprep.subr.mxu0 %v433
    %1912 = vmatpush1.msra.mxu0 %v432
    %1913 = vmatprep.subr.mxu0 %v425
    %1914 = vmatpush1.msra.mxu0 %v424
    %1915 = vmatprep.subr.mxu0 %v417
    %1916 = vmatpush1.msra.mxu0 %v416
    %1917 = vmatprep.subr.mxu0 %v409
    %1918 = vmatpush1.msra.mxu0 %v408
    %1919 = vmatprep.subr.mxu0 %v401
    %1920 = vmatpush1.msra.mxu0 %v400
    %1921 = vmatprep.subr.mxu0 %v649
    %1922 = vmatpush2.msra.mxu0 %v648
    %1923 = vmatprep.subr.mxu0 %v641
    %1924 = vmatpush2.msra.mxu0 %v640
    %1925 = vmatprep.subr.mxu0 %v633
    %1926 = vmatpush2.msra.mxu0 %v632
    %1927 = vmatprep.subr.mxu0 %v625
    %1928 = vmatpush2.msra.mxu0 %v624
    %1929 = vmatprep.subr.mxu0 %v617
    %1930 = vmatpush2.msra.mxu0 %v616
    %1931 = vmatprep.subr.mxu0 %v609
    %1932 = vmatpush2.msra.mxu0 %v608
    %1933 = vmatprep.subr.mxu0 %v601
    %1934 = vmatpush2.msra.mxu0 %v600
    %1935 = vmatprep.subr.mxu0 %v593
    %1936 = vmatpush2.msra.mxu0 %v592
    %1937 = vmatprep.subr.mxu0 %v585
    %1938 = vmatpush2.msra.mxu0 %v584
    %1939 = vmatprep.subr.mxu0 %v577
    %1940 = vmatpush2.msra.mxu0 %v576
    %1941 = vmatprep.subr.mxu0 %v569
    %1942 = vmatpush2.msra.mxu0 %v568
    %1943 = vmatprep.subr.mxu0 %v561
    %1944 = vmatpush2.msra.mxu0 %v560
    %1945 = vmatprep.subr.mxu0 %v553
    %1946 = vmatpush2.msra.mxu0 %v552
    %1947 = vmatprep.subr.mxu0 %v545
    %1948 = vmatpush2.msra.mxu0 %v544
    %1949 = vmatprep.subr.mxu0 %v537
    %1950 = vmatpush2.msra.mxu0 %v536
    %1951 = vmatprep.subr.mxu0 %v529
    %1952 = vmatpush2.msra.mxu0 %v528
    %1953 = vmatprep.mubr.f32.mxu0 %v1224
    %1954 = vmatmul.mubr.f32.gmra.mxu0 %v1222
    %v1955 = vpop.f32.mrf.mxu0
    %v1956 = vadd.f32 %v1885, %v1955
    %v1957 = vpop.f32.mrf.mxu0
    %v1958 = vadd.f32 %v1887, %v1957
    %1959 = vdwg.mxu0
    %1960 = vmatprep.subr.mxu0 %v777
    %1961 = vmatpush1.msra.mxu0 %v776
    %1962 = vmatprep.subr.mxu0 %v769
    %1963 = vmatpush1.msra.mxu0 %v768
    %1964 = vmatprep.subr.mxu0 %v761
    %1965 = vmatpush1.msra.mxu0 %v760
    %1966 = vmatprep.subr.mxu0 %v753
    %1967 = vmatpush1.msra.mxu0 %v752
    %1968 = vmatprep.subr.mxu0 %v745
    %1969 = vmatpush1.msra.mxu0 %v744
    %1970 = vmatprep.subr.mxu0 %v737
    %1971 = vmatpush1.msra.mxu0 %v736
    %1972 = vmatprep.subr.mxu0 %v729
    %1973 = vmatpush1.msra.mxu0 %v728
    %1974 = vmatprep.subr.mxu0 %v721
    %1975 = vmatpush1.msra.mxu0 %v720
    %1976 = vmatprep.subr.mxu0 %v713
    %1977 = vmatpush1.msra.mxu0 %v712
    %1978 = vmatprep.subr.mxu0 %v705
    %1979 = vmatpush1.msra.mxu0 %v704
    %1980 = vmatprep.subr.mxu0 %v697
    %1981 = vmatpush1.msra.mxu0 %v696
    %1982 = vmatprep.subr.mxu0 %v689
    %1983 = vmatpush1.msra.mxu0 %v688
    %1984 = vmatprep.subr.mxu0 %v681
    %1985 = vmatpush1.msra.mxu0 %v680
    %1986 = vmatprep.subr.mxu0 %v673
    %1987 = vmatpush1.msra.mxu0 %v672
    %1988 = vmatprep.subr.mxu0 %v665
    %1989 = vmatpush1.msra.mxu0 %v664
    %1990 = vmatprep.subr.mxu0 %v657
    %1991 = vmatpush1.msra.mxu0 %v656
    %1992 = vmatprep.subr.mxu0 %v905
    %1993 = vmatpush2.msra.mxu0 %v904
    %1994 = vmatprep.subr.mxu0 %v897
    %1995 = vmatpush2.msra.mxu0 %v896
    %1996 = vmatprep.subr.mxu0 %v889
    %1997 = vmatpush2.msra.mxu0 %v888
    %1998 = vmatprep.subr.mxu0 %v881
    %1999 = vmatpush2.msra.mxu0 %v880
    %2000 = vmatprep.subr.mxu0 %v873
    %2001 = vmatpush2.msra.mxu0 %v872
    %2002 = vmatprep.subr.mxu0 %v865
    %2003 = vmatpush2.msra.mxu0 %v864
    %2004 = vmatprep.subr.mxu0 %v857
    %2005 = vmatpush2.msra.mxu0 %v856
    %2006 = vmatprep.subr.mxu0 %v849
    %2007 = vmatpush2.msra.mxu0 %v848
    %2008 = vmatprep.subr.mxu0 %v841
    %2009 = vmatpush2.msra.mxu0 %v840
    %2010 = vmatprep.subr.mxu0 %v833
    %2011 = vmatpush2.msra.mxu0 %v832
    %2012 = vmatprep.subr.mxu0 %v825
    %2013 = vmatpush2.msra.mxu0 %v824
    %2014 = vmatprep.subr.mxu0 %v817
    %2015 = vmatpush2.msra.mxu0 %v816
    %2016 = vmatprep.subr.mxu0 %v809
    %2017 = vmatpush2.msra.mxu0 %v808
    %2018 = vmatprep.subr.mxu0 %v801
    %2019 = vmatpush2.msra.mxu0 %v800
    %2020 = vmatprep.subr.mxu0 %v793
    %2021 = vmatpush2.msra.mxu0 %v792
    %2022 = vmatprep.subr.mxu0 %v785
    %2023 = vmatpush2.msra.mxu0 %v784
    %2024 = vmatprep.mubr.f32.mxu0 %v1240
    %2025 = vmatmul.mubr.f32.gmra.mxu0 %v1232
    %v2026 = vpop.f32.mrf.mxu0
    %v2027 = vadd.f32 %v1956, %v2026
    %v2028 = vpop.f32.mrf.mxu0
    %v2029 = vadd.f32 %v1958, %v2028
    %2030 = vdwg.mxu0
    %2031 = vmatprep.subr.mxu0 %v1033
    %2032 = vmatpush1.msra.mxu0 %v1032
    %2033 = vmatprep.subr.mxu0 %v1025
    %2034 = vmatpush1.msra.mxu0 %v1024
    %2035 = vmatprep.subr.mxu0 %v1017
    %2036 = vmatpush1.msra.mxu0 %v1016
    %2037 = vmatprep.subr.mxu0 %v1009
    %2038 = vmatpush1.msra.mxu0 %v1008
    %2039 = vmatprep.subr.mxu0 %v1001
    %2040 = vmatpush1.msra.mxu0 %v1000
    %2041 = vmatprep.subr.mxu0 %v993
    %2042 = vmatpush1.msra.mxu0 %v992
    %2043 = vmatprep.subr.mxu0 %v985
    %2044 = vmatpush1.msra.mxu0 %v984
    %2045 = vmatprep.subr.mxu0 %v977
    %2046 = vmatpush1.msra.mxu0 %v976
    %2047 = vmatprep.subr.mxu0 %v969
    %2048 = vmatpush1.msra.mxu0 %v968
    %2049 = vmatprep.subr.mxu0 %v961
    %2050 = vmatpush1.msra.mxu0 %v960
    %2051 = vmatprep.subr.mxu0 %v953
    %2052 = vmatpush1.msra.mxu0 %v952
    %2053 = vmatprep.subr.mxu0 %v945
    %2054 = vmatpush1.msra.mxu0 %v944
    %2055 = vmatprep.subr.mxu0 %v937
    %2056 = vmatpush1.msra.mxu0 %v936
    %2057 = vmatprep.subr.mxu0 %v929
    %2058 = vmatpush1.msra.mxu0 %v928
    %2059 = vmatprep.subr.mxu0 %v921
    %2060 = vmatpush1.msra.mxu0 %v920
    %2061 = vmatprep.subr.mxu0 %v913
    %2062 = vmatpush1.msra.mxu0 %v912
    %2063 = vmatprep.subr.mxu0 %v1161
    %2064 = vmatpush2.msra.mxu0 %v1160
    %2065 = vmatprep.subr.mxu0 %v1153
    %2066 = vmatpush2.msra.mxu0 %v1152
    %2067 = vmatprep.subr.mxu0 %v1145
    %2068 = vmatpush2.msra.mxu0 %v1144
    %2069 = vmatprep.subr.mxu0 %v1137
    %2070 = vmatpush2.msra.mxu0 %v1136
    %2071 = vmatprep.subr.mxu0 %v1129
    %2072 = vmatpush2.msra.mxu0 %v1128
    %2073 = vmatprep.subr.mxu0 %v1121
    %2074 = vmatpush2.msra.mxu0 %v1120
    %2075 = vmatprep.subr.mxu0 %v1113
    %2076 = vmatpush2.msra.mxu0 %v1112
    %2077 = vmatprep.subr.mxu0 %v1105
    %2078 = vmatpush2.msra.mxu0 %v1104
    %2079 = vmatprep.subr.mxu0 %v1097
    %2080 = vmatpush2.msra.mxu0 %v1096
    %2081 = vmatprep.subr.mxu0 %v1089
    %2082 = vmatpush2.msra.mxu0 %v1088
    %2083 = vmatprep.subr.mxu0 %v1081
    %2084 = vmatpush2.msra.mxu0 %v1080
    %2085 = vmatprep.subr.mxu0 %v1073
    %2086 = vmatpush2.msra.mxu0 %v1072
    %2087 = vmatprep.subr.mxu0 %v1065
    %2088 = vmatpush2.msra.mxu0 %v1064
    %2089 = vmatprep.subr.mxu0 %v1057
    %2090 = vmatpush2.msra.mxu0 %v1056
    %2091 = vmatprep.subr.mxu0 %v1049
    %2092 = vmatpush2.msra.mxu0 %v1048
    %2093 = vmatprep.subr.mxu0 %v1041
    %2094 = vmatpush2.msra.mxu0 %v1040
    %2095 = vmatprep.mubr.f32.mxu0 %v1241
    %2096 = vmatmul.mubr.f32.gmra.mxu0 %v1239
    %v2097 = vpop.f32.mrf.mxu0
    %v2098 = vadd.f32 %v2027, %v2097
    %v2099 = vpop.f32.mrf.mxu0
    %v2100 = vadd.f32 %v2029, %v2099
    %2101 = vdwg.mxu0
    %2102 = vmatprep.subr.mxu0 %v267
    %2103 = vmatpush1.msra.mxu0 %v266
    %2104 = vmatprep.subr.mxu0 %v259
    %2105 = vmatpush1.msra.mxu0 %v258
    %2106 = vmatprep.subr.mxu0 %v251
    %2107 = vmatpush1.msra.mxu0 %v250
    %2108 = vmatprep.subr.mxu0 %v243
    %2109 = vmatpush1.msra.mxu0 %v242
    %2110 = vmatprep.subr.mxu0 %v235
    %2111 = vmatpush1.msra.mxu0 %v234
    %2112 = vmatprep.subr.mxu0 %v227
    %2113 = vmatpush1.msra.mxu0 %v226
    %2114 = vmatprep.subr.mxu0 %v219
    %2115 = vmatpush1.msra.mxu0 %v218
    %2116 = vmatprep.subr.mxu0 %v211
    %2117 = vmatpush1.msra.mxu0 %v210
    %2118 = vmatprep.subr.mxu0 %v203
    %2119 = vmatpush1.msra.mxu0 %v202
    %2120 = vmatprep.subr.mxu0 %v195
    %2121 = vmatpush1.msra.mxu0 %v194
    %2122 = vmatprep.subr.mxu0 %v187
    %2123 = vmatpush1.msra.mxu0 %v186
    %2124 = vmatprep.subr.mxu0 %v179
    %2125 = vmatpush1.msra.mxu0 %v178
    %2126 = vmatprep.subr.mxu0 %v171
    %2127 = vmatpush1.msra.mxu0 %v170
    %2128 = vmatprep.subr.mxu0 %v163
    %2129 = vmatpush1.msra.mxu0 %v162
    %2130 = vmatprep.subr.mxu0 %v155
    %2131 = vmatpush1.msra.mxu0 %v154
    %2132 = vmatprep.subr.mxu0 %v147
    %2133 = vmatpush1.msra.mxu0 %v146
    %2134 = vmatprep.subr.mxu0 %v395
    %2135 = vmatpush2.msra.mxu0 %v394
    %2136 = vmatprep.subr.mxu0 %v387
    %2137 = vmatpush2.msra.mxu0 %v386
    %2138 = vmatprep.subr.mxu0 %v379
    %2139 = vmatpush2.msra.mxu0 %v378
    %2140 = vmatprep.subr.mxu0 %v371
    %2141 = vmatpush2.msra.mxu0 %v370
    %2142 = vmatprep.subr.mxu0 %v363
    %2143 = vmatpush2.msra.mxu0 %v362
    %2144 = vmatprep.subr.mxu0 %v355
    %2145 = vmatpush2.msra.mxu0 %v354
    %2146 = vmatprep.subr.mxu0 %v347
    %2147 = vmatpush2.msra.mxu0 %v346
    %2148 = vmatprep.subr.mxu0 %v339
    %2149 = vmatpush2.msra.mxu0 %v338
    %2150 = vmatprep.subr.mxu0 %v331
    %2151 = vmatpush2.msra.mxu0 %v330
    %2152 = vmatprep.subr.mxu0 %v323
    %2153 = vmatpush2.msra.mxu0 %v322
    %2154 = vmatprep.subr.mxu0 %v315
    %2155 = vmatpush2.msra.mxu0 %v314
    %2156 = vmatprep.subr.mxu0 %v307
    %2157 = vmatpush2.msra.mxu0 %v306
    %2158 = vmatprep.subr.mxu0 %v299
    %2159 = vmatpush2.msra.mxu0 %v298
    %2160 = vmatprep.subr.mxu0 %v291
    %2161 = vmatpush2.msra.mxu0 %v290
    %2162 = vmatprep.subr.mxu0 %v283
    %2163 = vmatpush2.msra.mxu0 %v282
    %2164 = vmatprep.subr.mxu0 %v275
    %2165 = vmatpush2.msra.mxu0 %v274
    %2166 = vmatprep.mubr.f32.mxu0 %v1223
    %2167 = vmatmul.mubr.f32.gmra.mxu0 %v1215
    %v2168 = vpop.f32.mrf.mxu0
    %v2169 = vadd.f32 %v1193, %v2168
    %v2170 = vpop.f32.mrf.mxu0
    %v2171 = vadd.f32 %v1197, %v2170
    %2172 = vdwg.mxu0
    %2173 = vmatprep.subr.mxu0 %v523
    %2174 = vmatpush1.msra.mxu0 %v522
    %2175 = vmatprep.subr.mxu0 %v515
    %2176 = vmatpush1.msra.mxu0 %v514
    %2177 = vmatprep.subr.mxu0 %v507
    %2178 = vmatpush1.msra.mxu0 %v506
    %2179 = vmatprep.subr.mxu0 %v499
    %2180 = vmatpush1.msra.mxu0 %v498
    %2181 = vmatprep.subr.mxu0 %v491
    %2182 = vmatpush1.msra.mxu0 %v490
    %2183 = vmatprep.subr.mxu0 %v483
    %2184 = vmatpush1.msra.mxu0 %v482
    %2185 = vmatprep.subr.mxu0 %v475
    %2186 = vmatpush1.msra.mxu0 %v474
    %2187 = vmatprep.subr.mxu0 %v467
    %2188 = vmatpush1.msra.mxu0 %v466
    %2189 = vmatprep.subr.mxu0 %v459
    %2190 = vmatpush1.msra.mxu0 %v458
    %2191 = vmatprep.subr.mxu0 %v451
    %2192 = vmatpush1.msra.mxu0 %v450
    %2193 = vmatprep.subr.mxu0 %v443
    %2194 = vmatpush1.msra.mxu0 %v442
    %2195 = vmatprep.subr.mxu0 %v435
    %2196 = vmatpush1.msra.mxu0 %v434
    %2197 = vmatprep.subr.mxu0 %v427
    %2198 = vmatpush1.msra.mxu0 %v426
    %2199 = vmatprep.subr.mxu0 %v419
    %2200 = vmatpush1.msra.mxu0 %v418
    %2201 = vmatprep.subr.mxu0 %v411
    %2202 = vmatpush1.msra.mxu0 %v410
    %2203 = vmatprep.subr.mxu0 %v403
    %2204 = vmatpush1.msra.mxu0 %v402
    %2205 = vmatprep.subr.mxu0 %v651
    %2206 = vmatpush2.msra.mxu0 %v650
    %2207 = vmatprep.subr.mxu0 %v643
    %2208 = vmatpush2.msra.mxu0 %v642
    %2209 = vmatprep.subr.mxu0 %v635
    %2210 = vmatpush2.msra.mxu0 %v634
    %2211 = vmatprep.subr.mxu0 %v627
    %2212 = vmatpush2.msra.mxu0 %v626
    %2213 = vmatprep.subr.mxu0 %v619
    %2214 = vmatpush2.msra.mxu0 %v618
    %2215 = vmatprep.subr.mxu0 %v611
    %2216 = vmatpush2.msra.mxu0 %v610
    %2217 = vmatprep.subr.mxu0 %v603
    %2218 = vmatpush2.msra.mxu0 %v602
    %2219 = vmatprep.subr.mxu0 %v595
    %2220 = vmatpush2.msra.mxu0 %v594
    %2221 = vmatprep.subr.mxu0 %v587
    %2222 = vmatpush2.msra.mxu0 %v586
    %2223 = vmatprep.subr.mxu0 %v579
    %2224 = vmatpush2.msra.mxu0 %v578
    %2225 = vmatprep.subr.mxu0 %v571
    %2226 = vmatpush2.msra.mxu0 %v570
    %2227 = vmatprep.subr.mxu0 %v563
    %2228 = vmatpush2.msra.mxu0 %v562
    %2229 = vmatprep.subr.mxu0 %v555
    %2230 = vmatpush2.msra.mxu0 %v554
    %2231 = vmatprep.subr.mxu0 %v547
    %2232 = vmatpush2.msra.mxu0 %v546
    %2233 = vmatprep.subr.mxu0 %v539
    %2234 = vmatpush2.msra.mxu0 %v538
    %2235 = vmatprep.subr.mxu0 %v531
    %2236 = vmatpush2.msra.mxu0 %v530
    %2237 = vmatprep.mubr.f32.mxu0 %v1224
    %2238 = vmatmul.mubr.f32.gmra.mxu0 %v1222
    %v2239 = vpop.f32.mrf.mxu0
    %v2240 = vadd.f32 %v2169, %v2239
    %v2241 = vpop.f32.mrf.mxu0
    %v2242 = vadd.f32 %v2171, %v2241
    %2243 = vdwg.mxu0
    %2244 = vmatprep.subr.mxu0 %v779
    %2245 = vmatpush1.msra.mxu0 %v778
    %2246 = vmatprep.subr.mxu0 %v771
    %2247 = vmatpush1.msra.mxu0 %v770
    %2248 = vmatprep.subr.mxu0 %v763
    %2249 = vmatpush1.msra.mxu0 %v762
    %2250 = vmatprep.subr.mxu0 %v755
    %2251 = vmatpush1.msra.mxu0 %v754
    %2252 = vmatprep.subr.mxu0 %v747
    %2253 = vmatpush1.msra.mxu0 %v746
    %2254 = vmatprep.subr.mxu0 %v739
    %2255 = vmatpush1.msra.mxu0 %v738
    %2256 = vmatprep.subr.mxu0 %v731
    %2257 = vmatpush1.msra.mxu0 %v730
    %2258 = vmatprep.subr.mxu0 %v723
    %2259 = vmatpush1.msra.mxu0 %v722
    %2260 = vmatprep.subr.mxu0 %v715
    %2261 = vmatpush1.msra.mxu0 %v714
    %2262 = vmatprep.subr.mxu0 %v707
    %2263 = vmatpush1.msra.mxu0 %v706
    %2264 = vmatprep.subr.mxu0 %v699
    %2265 = vmatpush1.msra.mxu0 %v698
    %2266 = vmatprep.subr.mxu0 %v691
    %2267 = vmatpush1.msra.mxu0 %v690
    %2268 = vmatprep.subr.mxu0 %v683
    %2269 = vmatpush1.msra.mxu0 %v682
    %2270 = vmatprep.subr.mxu0 %v675
    %2271 = vmatpush1.msra.mxu0 %v674
    %2272 = vmatprep.subr.mxu0 %v667
    %2273 = vmatpush1.msra.mxu0 %v666
    %2274 = vmatprep.subr.mxu0 %v659
    %2275 = vmatpush1.msra.mxu0 %v658
    %2276 = vmatprep.subr.mxu0 %v907
    %2277 = vmatpush2.msra.mxu0 %v906
    %2278 = vmatprep.subr.mxu0 %v899
    %2279 = vmatpush2.msra.mxu0 %v898
    %2280 = vmatprep.subr.mxu0 %v891
    %2281 = vmatpush2.msra.mxu0 %v890
    %2282 = vmatprep.subr.mxu0 %v883
    %2283 = vmatpush2.msra.mxu0 %v882
    %2284 = vmatprep.subr.mxu0 %v875
    %2285 = vmatpush2.msra.mxu0 %v874
    %2286 = vmatprep.subr.mxu0 %v867
    %2287 = vmatpush2.msra.mxu0 %v866
    %2288 = vmatprep.subr.mxu0 %v859
    %2289 = vmatpush2.msra.mxu0 %v858
    %2290 = vmatprep.subr.mxu0 %v851
    %2291 = vmatpush2.msra.mxu0 %v850
    %2292 = vmatprep.subr.mxu0 %v843
    %2293 = vmatpush2.msra.mxu0 %v842
    %2294 = vmatprep.subr.mxu0 %v835
    %2295 = vmatpush2.msra.mxu0 %v834
    %2296 = vmatprep.subr.mxu0 %v827
    %2297 = vmatpush2.msra.mxu0 %v826
    %2298 = vmatprep.subr.mxu0 %v819
    %2299 = vmatpush2.msra.mxu0 %v818
    %2300 = vmatprep.subr.mxu0 %v811
    %2301 = vmatpush2.msra.mxu0 %v810
    %2302 = vmatprep.subr.mxu0 %v803
    %2303 = vmatpush2.msra.mxu0 %v802
    %2304 = vmatprep.subr.mxu0 %v795
    %2305 = vmatpush2.msra.mxu0 %v794
    %2306 = vmatprep.subr.mxu0 %v787
    %2307 = vmatpush2.msra.mxu0 %v786
    %2308 = vmatprep.mubr.f32.mxu0 %v1240
    %2309 = vmatmul.mubr.f32.gmra.mxu0 %v1232
    %v2310 = vpop.f32.mrf.mxu0
    %v2311 = vadd.f32 %v2240, %v2310
    %v2312 = vpop.f32.mrf.mxu0
    %v2313 = vadd.f32 %v2242, %v2312
    %2314 = vdwg.mxu0
    %2315 = vmatprep.subr.mxu0 %v1035
    %2316 = vmatpush1.msra.mxu0 %v1034
    %2317 = vmatprep.subr.mxu0 %v1027
    %2318 = vmatpush1.msra.mxu0 %v1026
    %2319 = vmatprep.subr.mxu0 %v1019
    %2320 = vmatpush1.msra.mxu0 %v1018
    %2321 = vmatprep.subr.mxu0 %v1011
    %2322 = vmatpush1.msra.mxu0 %v1010
    %2323 = vmatprep.subr.mxu0 %v1003
    %2324 = vmatpush1.msra.mxu0 %v1002
    %2325 = vmatprep.subr.mxu0 %v995
    %2326 = vmatpush1.msra.mxu0 %v994
    %2327 = vmatprep.subr.mxu0 %v987
    %2328 = vmatpush1.msra.mxu0 %v986
    %2329 = vmatprep.subr.mxu0 %v979
    %2330 = vmatpush1.msra.mxu0 %v978
    %2331 = vmatprep.subr.mxu0 %v971
    %2332 = vmatpush1.msra.mxu0 %v970
    %2333 = vmatprep.subr.mxu0 %v963
    %2334 = vmatpush1.msra.mxu0 %v962
    %2335 = vmatprep.subr.mxu0 %v955
    %2336 = vmatpush1.msra.mxu0 %v954
    %2337 = vmatprep.subr.mxu0 %v947
    %2338 = vmatpush1.msra.mxu0 %v946
    %2339 = vmatprep.subr.mxu0 %v939
    %2340 = vmatpush1.msra.mxu0 %v938
    %2341 = vmatprep.subr.mxu0 %v931
    %2342 = vmatpush1.msra.mxu0 %v930
    %2343 = vmatprep.subr.mxu0 %v923
    %2344 = vmatpush1.msra.mxu0 %v922
    %2345 = vmatprep.subr.mxu0 %v915
    %2346 = vmatpush1.msra.mxu0 %v914
    %2347 = vmatprep.subr.mxu0 %v1163
    %2348 = vmatpush2.msra.mxu0 %v1162
    %2349 = vmatprep.subr.mxu0 %v1155
    %2350 = vmatpush2.msra.mxu0 %v1154
    %2351 = vmatprep.subr.mxu0 %v1147
    %2352 = vmatpush2.msra.mxu0 %v1146
    %2353 = vmatprep.subr.mxu0 %v1139
    %2354 = vmatpush2.msra.mxu0 %v1138
    %2355 = vmatprep.subr.mxu0 %v1131
    %2356 = vmatpush2.msra.mxu0 %v1130
    %2357 = vmatprep.subr.mxu0 %v1123
    %2358 = vmatpush2.msra.mxu0 %v1122
    %2359 = vmatprep.subr.mxu0 %v1115
    %2360 = vmatpush2.msra.mxu0 %v1114
    %2361 = vmatprep.subr.mxu0 %v1107
    %2362 = vmatpush2.msra.mxu0 %v1106
    %2363 = vmatprep.subr.mxu0 %v1099
    %2364 = vmatpush2.msra.mxu0 %v1098
    %2365 = vmatprep.subr.mxu0 %v1091
    %2366 = vmatpush2.msra.mxu0 %v1090
    %2367 = vmatprep.subr.mxu0 %v1083
    %2368 = vmatpush2.msra.mxu0 %v1082
    %2369 = vmatprep.subr.mxu0 %v1075
    %2370 = vmatpush2.msra.mxu0 %v1074
    %2371 = vmatprep.subr.mxu0 %v1067
    %2372 = vmatpush2.msra.mxu0 %v1066
    %2373 = vmatprep.subr.mxu0 %v1059
    %2374 = vmatpush2.msra.mxu0 %v1058
    %2375 = vmatprep.subr.mxu0 %v1051
    %2376 = vmatpush2.msra.mxu0 %v1050
    %2377 = vmatprep.subr.mxu0 %v1043
    %2378 = vmatpush2.msra.mxu0 %v1042
    %2379 = vmatprep.mubr.f32.mxu0 %v1241
    %2380 = vmatmul.mubr.f32.gmra.mxu0 %v1239
    %v2381 = vpop.f32.mrf.mxu0
    %v2382 = vadd.f32 %v2311, %v2381
    %v2383 = vpop.f32.mrf.mxu0
    %v2384 = vadd.f32 %v2313, %v2383
    %2385 = vdwg.mxu0
    %vm2386 = vcmp.gt.f32.partialorder %v1530, 0.0
    %vm2387 = vcmp.gt.f32.partialorder %v1532, 0.0
    %vm2388 = vcmp.gt.f32.partialorder %v1814, 0.0
    %vm2389 = vcmp.gt.f32.partialorder %v1816, 0.0
    %vm2390 = vcmp.gt.f32.partialorder %v2098, 0.0
    %vm2391 = vcmp.gt.f32.partialorder %v2100, 0.0
    %vm2392 = vcmp.gt.f32.partialorder %v2382, 0.0
    %vm2393 = vcmp.gt.f32.partialorder %v2384, 0.0
    %v2394 = vmul.f32 %v1530, 0.01
    %v2395 = vmul.f32 %v1532, 0.01
    %v2396 = vmul.f32 %v1814, 0.01
    %v2397 = vmul.f32 %v1816, 0.01
    %v2398 = vmul.f32 %v2098, 0.01
    %v2399 = vmul.f32 %v2100, 0.01
    %v2400 = vmul.f32 %v2382, 0.01
    %v2401 = vmul.f32 %v2384, 0.01
    %v2402 = vsel %vm2386, %v1530, %v2394
    %v2403 = vsel %vm2387, %v1532, %v2395
    %v2404 = vsel %vm2388, %v1814, %v2396
    %v2405 = vsel %vm2389, %v1816, %v2397
    %v2406 = vsel %vm2390, %v2098, %v2398
    %v2407 = vsel %vm2391, %v2100, %v2399
    %v2408 = vsel %vm2392, %v2382, %v2400
    %v2409 = vsel %vm2393, %v2384, %v2401
    %v2410 = vadd.f32 %v2402, %v2404
    %v2411 = vadd.f32 %v2403, %v2405
    %v2412 = vadd.f32 %v2410, %v2406
    %v2413 = vadd.f32 %v2411, %v2407
    %v2414 = vadd.f32 %v2412, %v2408
    %v2415 = vadd.f32 %v2413, %v2409
    %v2416 = vmul.f32 %v2414, 0.25
    %v2417 = vmul.f32 %v2415, 0.25
    %v2418 = vld [vmem:[#allocation7] sm:$0xff]
    %v2419 = vld [vmem:[#allocation7 + $0x8] sm:$0xff]
    %v2420 = vld [vmem:[#allocation7 + $0x10] sm:$0xff]
    %v2421 = vld [vmem:[#allocation7 + $0x18] sm:$0xff]
    %v2422 = vld [vmem:[#allocation7 + $0x20] sm:$0xff]
    %v2423 = vld [vmem:[#allocation7 + $0x28] sm:$0xff]
    %v2424 = vld [vmem:[#allocation7 + $0x30] sm:$0xff]
    %v2425 = vld [vmem:[#allocation7 + $0x38] sm:$0xff]
    %v2426 = vld [vmem:[#allocation7 + $0x40] sm:$0xff]
    %v2427 = vld [vmem:[#allocation7 + $0x48] sm:$0xff]
    %v2428 = vld [vmem:[#allocation7 + $0x50] sm:$0xff]
    %v2429 = vld [vmem:[#allocation7 + $0x58] sm:$0xff]
    %v2430 = vld [vmem:[#allocation7 + $0x60] sm:$0xff]
    %v2431 = vld [vmem:[#allocation7 + $0x68] sm:$0xff]
    %v2432 = vld [vmem:[#allocation7 + $0x70] sm:$0xff]
    %v2433 = vld [vmem:[#allocation7 + $0x78] sm:$0xff]
    %v2434 = vld [vmem:[#allocation7 + $0x80] sm:$0xff]
    %v2435 = vld [vmem:[#allocation7 + $0x88] sm:$0xff]
    %v2436 = vld [vmem:[#allocation7 + $0x90] sm:$0xff]
    %v2437 = vld [vmem:[#allocation7 + $0x98] sm:$0xff]
    %v2438 = vld [vmem:[#allocation7 + $0xa0] sm:$0xff]
    %v2439 = vld [vmem:[#allocation7 + $0xa8] sm:$0xff]
    %v2440 = vld [vmem:[#allocation7 + $0xb0] sm:$0xff]
    %v2441 = vld [vmem:[#allocation7 + $0xb8] sm:$0xff]
    %v2442 = vld [vmem:[#allocation7 + $0xc0] sm:$0xff]
    %v2443 = vld [vmem:[#allocation7 + $0xc8] sm:$0xff]
    %v2444 = vld [vmem:[#allocation7 + $0xd0] sm:$0xff]
    %v2445 = vld [vmem:[#allocation7 + $0xd8] sm:$0xff]
    %v2446 = vld [vmem:[#allocation7 + $0xe0] sm:$0xff]
    %v2447 = vld [vmem:[#allocation7 + $0xe8] sm:$0xff]
    %v2448 = vld [vmem:[#allocation7 + $0xf0] sm:$0xff]
    %v2449 = vld [vmem:[#allocation7 + $0xf8] sm:$0xff]
    %v2450 = vld [vmem:[#allocation7 + $0x100] sm:$0xff]
    %v2451 = vld [vmem:[#allocation7 + $0x108] sm:$0xff]
    %v2452 = vld [vmem:[#allocation7 + $0x110] sm:$0xff]
    %v2453 = vld [vmem:[#allocation7 + $0x118] sm:$0xff]
    %v2454 = vld [vmem:[#allocation7 + $0x120] sm:$0xff]
    %v2455 = vld [vmem:[#allocation7 + $0x128] sm:$0xff]
    %v2456 = vld [vmem:[#allocation7 + $0x130] sm:$0xff]
    %v2457 = vld [vmem:[#allocation7 + $0x138] sm:$0xff]
    %v2458 = vld [vmem:[#allocation7 + $0x140] sm:$0xff]
    %v2459 = vld [vmem:[#allocation7 + $0x148] sm:$0xff]
    %v2460 = vld [vmem:[#allocation7 + $0x150] sm:$0xff]
    %v2461 = vld [vmem:[#allocation7 + $0x158] sm:$0xff]
    %v2462 = vld [vmem:[#allocation7 + $0x160] sm:$0xff]
    %v2463 = vld [vmem:[#allocation7 + $0x168] sm:$0xff]
    %v2464 = vld [vmem:[#allocation7 + $0x170] sm:$0xff]
    %v2465 = vld [vmem:[#allocation7 + $0x178] sm:$0xff]
    %v2466 = vld [vmem:[#allocation7 + $0x180] sm:$0xff]
    %v2467 = vld [vmem:[#allocation7 + $0x188] sm:$0xff]
    %v2468 = vld [vmem:[#allocation7 + $0x190] sm:$0xff]
    %v2469 = vld [vmem:[#allocation7 + $0x198] sm:$0xff]
    %v2470 = vld [vmem:[#allocation7 + $0x1a0] sm:$0xff]
    %v2471 = vld [vmem:[#allocation7 + $0x1a8] sm:$0xff]
    %v2472 = vld [vmem:[#allocation7 + $0x1b0] sm:$0xff]
    %v2473 = vld [vmem:[#allocation7 + $0x1b8] sm:$0xff]
    %v2474 = vld [vmem:[#allocation7 + $0x1c0] sm:$0xff]
    %v2475 = vld [vmem:[#allocation7 + $0x1c8] sm:$0xff]
    %v2476 = vld [vmem:[#allocation7 + $0x1d0] sm:$0xff]
    %v2477 = vld [vmem:[#allocation7 + $0x1d8] sm:$0xff]
    %v2478 = vld [vmem:[#allocation7 + $0x1e0] sm:$0xff]
    %v2479 = vld [vmem:[#allocation7 + $0x1e8] sm:$0xff]
    %v2480 = vld [vmem:[#allocation7 + $0x1f0] sm:$0xff]
    %v2481 = vld [vmem:[#allocation7 + $0x1f8] sm:$0xff]
    %v2482 = vld [vmem:[#allocation8] sm:$0x3]
    %v2484 = vlaneseq
    %v2485 = vshrl.u32 %v2484, 7
    %v2486 = vsub.s32 0, %v2485
    %v2487 = vrot.slane %v2482, %v2486
    %v2488 = vlaneseq
    %v2489 = vshrl.u32 %v2488, 7
    %v2490 = vsub.s32 1, %v2489
    %v2491 = vrot.slane %v2482, %v2490
    %2494 = vmatprep.subr.mxu0 %v2449
    %2495 = vmatpush1.msra.mxu0 %v2448
    %2496 = vmatprep.subr.mxu0 %v2447
    %2497 = vmatpush1.msra.mxu0 %v2446
    %2498 = vmatprep.subr.mxu0 %v2445
    %2499 = vmatpush1.msra.mxu0 %v2444
    %2500 = vmatprep.subr.mxu0 %v2443
    %2501 = vmatpush1.msra.mxu0 %v2442
    %2502 = vmatprep.subr.mxu0 %v2441
    %2503 = vmatpush1.msra.mxu0 %v2440
    %2504 = vmatprep.subr.mxu0 %v2439
    %2505 = vmatpush1.msra.mxu0 %v2438
    %2506 = vmatprep.subr.mxu0 %v2437
    %2507 = vmatpush1.msra.mxu0 %v2436
    %2508 = vmatprep.subr.mxu0 %v2435
    %2509 = vmatpush1.msra.mxu0 %v2434
    %2510 = vmatprep.subr.mxu0 %v2433
    %2511 = vmatpush1.msra.mxu0 %v2432
    %2512 = vmatprep.subr.mxu0 %v2431
    %2513 = vmatpush1.msra.mxu0 %v2430
    %2514 = vmatprep.subr.mxu0 %v2429
    %2515 = vmatpush1.msra.mxu0 %v2428
    %2516 = vmatprep.subr.mxu0 %v2427
    %2517 = vmatpush1.msra.mxu0 %v2426
    %2518 = vmatprep.subr.mxu0 %v2425
    %2519 = vmatpush1.msra.mxu0 %v2424
    %2520 = vmatprep.subr.mxu0 %v2423
    %2521 = vmatpush1.msra.mxu0 %v2422
    %2522 = vmatprep.subr.mxu0 %v2421
    %2523 = vmatpush1.msra.mxu0 %v2420
    %2524 = vmatprep.subr.mxu0 %v2419
    %2525 = vmatpush1.msra.mxu0 %v2418
    %2526 = vmatprep.subr.mxu0 %v2481
    %2527 = vmatpush2.msra.mxu0 %v2480
    %2528 = vmatprep.subr.mxu0 %v2479
    %2529 = vmatpush2.msra.mxu0 %v2478
    %2530 = vmatprep.subr.mxu0 %v2477
    %2531 = vmatpush2.msra.mxu0 %v2476
    %2532 = vmatprep.subr.mxu0 %v2475
    %2533 = vmatpush2.msra.mxu0 %v2474
    %2534 = vmatprep.subr.mxu0 %v2473
    %2535 = vmatpush2.msra.mxu0 %v2472
    %2536 = vmatprep.subr.mxu0 %v2471
    %2537 = vmatpush2.msra.mxu0 %v2470
    %2538 = vmatprep.subr.mxu0 %v2469
    %2539 = vmatpush2.msra.mxu0 %v2468
    %2540 = vmatprep.subr.mxu0 %v2467
    %2541 = vmatpush2.msra.mxu0 %v2466
    %2542 = vmatprep.subr.mxu0 %v2465
    %2543 = vmatpush2.msra.mxu0 %v2464
    %2544 = vmatprep.subr.mxu0 %v2463
    %2545 = vmatpush2.msra.mxu0 %v2462
    %2546 = vmatprep.subr.mxu0 %v2461
    %2547 = vmatpush2.msra.mxu0 %v2460
    %2548 = vmatprep.subr.mxu0 %v2459
    %2549 = vmatpush2.msra.mxu0 %v2458
    %2550 = vmatprep.subr.mxu0 %v2457
    %2551 = vmatpush2.msra.mxu0 %v2456
    %2552 = vmatprep.subr.mxu0 %v2455
    %2553 = vmatpush2.msra.mxu0 %v2454
    %2554 = vmatprep.subr.mxu0 %v2453
    %2555 = vmatpush2.msra.mxu0 %v2452
    %2556 = vmatprep.subr.mxu0 %v2451
    %2557 = vmatpush2.msra.mxu0 %v2450
    %2558 = vmatprep.mubr.f32.mxu0 %v2417
    %2559 = vmatmul.mubr.f32.gmra.mxu0 %v2416
    %v2560 = vpop.f32.mrf.mxu0
    %v2561 = vadd.f32 %v2487, %v2560
    %v2562 = vpop.f32.mrf.mxu0
    %v2563 = vadd.f32 %v2491, %v2562
    %2564 = vdwg.mxu0
    %v2565 = vmax.f32 %v2561, 0.0
    %v2566 = vmax.f32 %v2563, 0.0
    %2568 = vrot.lane.b32.xlu0 %v2565, 64
    %v2569 = vpop.permute.xlu0 %2568
    %v2571 = vmax.f32 %v2565, %v2569
    %2573 = vrot.lane.b32.xlu0 %v2566, 64
    %v2574 = vpop.permute.xlu0 %2573
    %v2576 = vmax.f32 %v2566, %v2574
    %v2577 = vmax.f32 %v2571, %v2576
    %v2578 = vld [vmem:[#allocation10] sm:$0xff]
    %v2579 = vld [vmem:[#allocation10 + $0x8] sm:$0xff]
    %v2580 = vld [vmem:[#allocation10 + $0x10] sm:$0xff]
    %v2581 = vld [vmem:[#allocation10 + $0x18] sm:$0xff]
    %v2582 = vld [vmem:[#allocation10 + $0x20] sm:$0xff]
    %v2583 = vld [vmem:[#allocation10 + $0x28] sm:$0xff]
    %v2584 = vld [vmem:[#allocation10 + $0x30] sm:$0xff]
    %v2585 = vld [vmem:[#allocation10 + $0x38] sm:$0xff]
    %v2586 = vld [vmem:[#allocation11] sm:$0x1]
    %v2588 = vlaneseq
    %v2589 = vshrl.u32 %v2588, 7
    %v2590 = vsub.s32 0, %v2589
    %v2591 = vrot.slane %v2586, %v2590
    %vm2593 = vcmask 523264
    %v2595 = vsel %vm2593, %v2577, 0
    %2597 = vmatprep.subr.mxu0 0.0
    %2598 = vmatpush1.msra.mxu0 0.0
    %2599 = vmatprep.subr.mxu0 0.0
    %2600 = vmatpush1.msra.mxu0 0.0
    %2601 = vmatprep.subr.mxu0 0.0
    %2602 = vmatpush1.msra.mxu0 0.0
    %2603 = vmatprep.subr.mxu0 0.0
    %2604 = vmatpush1.msra.mxu0 0.0
    %2605 = vmatprep.subr.mxu0 0.0
    %2606 = vmatpush1.msra.mxu0 0.0
    %2607 = vmatprep.subr.mxu0 0.0
    %2608 = vmatpush1.msra.mxu0 0.0
    %2609 = vmatprep.subr.mxu0 0.0
    %2610 = vmatpush1.msra.mxu0 0.0
    %2611 = vmatprep.subr.mxu0 0.0
    %2612 = vmatpush1.msra.mxu0 0.0
    %2613 = vmatprep.subr.mxu0 0.0
    %2614 = vmatpush1.msra.mxu0 %v2585
    %2615 = vmatprep.subr.mxu0 0.0
    %2616 = vmatpush1.msra.mxu0 %v2584
    %2617 = vmatprep.subr.mxu0 0.0
    %2618 = vmatpush1.msra.mxu0 %v2583
    %2619 = vmatprep.subr.mxu0 0.0
    %2620 = vmatpush1.msra.mxu0 %v2582
    %2621 = vmatprep.subr.mxu0 0.0
    %2622 = vmatpush1.msra.mxu0 %v2581
    %2623 = vmatprep.subr.mxu0 0.0
    %2624 = vmatpush1.msra.mxu0 %v2580
    %2625 = vmatprep.subr.mxu0 0.0
    %2626 = vmatpush1.msra.mxu0 %v2579
    %2627 = vmatprep.subr.mxu0 0.0
    %2628 = vmatpush1.msra.mxu0 %v2578
    %2629 = vmatprep.subr.mxu0 0.0
    %2630 = vmatpush2.msra.mxu0 0.0
    %2631 = vmatprep.subr.mxu0 0.0
    %2632 = vmatpush2.msra.mxu0 0.0
    %2633 = vmatprep.subr.mxu0 0.0
    %2634 = vmatpush2.msra.mxu0 0.0
    %2635 = vmatprep.subr.mxu0 0.0
    %2636 = vmatpush2.msra.mxu0 0.0
    %2637 = vmatprep.subr.mxu0 0.0
    %2638 = vmatpush2.msra.mxu0 0.0
    %2639 = vmatprep.subr.mxu0 0.0
    %2640 = vmatpush2.msra.mxu0 0.0
    %2641 = vmatprep.subr.mxu0 0.0
    %2642 = vmatpush2.msra.mxu0 0.0
    %2643 = vmatprep.subr.mxu0 0.0
    %2644 = vmatpush2.msra.mxu0 0.0
    %2645 = vmatprep.subr.mxu0 0.0
    %2646 = vmatpush2.msra.mxu0 0.0
    %2647 = vmatprep.subr.mxu0 0.0
    %2648 = vmatpush2.msra.mxu0 0.0
    %2649 = vmatprep.subr.mxu0 0.0
    %2650 = vmatpush2.msra.mxu0 0.0
    %2651 = vmatprep.subr.mxu0 0.0
    %2652 = vmatpush2.msra.mxu0 0.0
    %2653 = vmatprep.subr.mxu0 0.0
    %2654 = vmatpush2.msra.mxu0 0.0
    %2655 = vmatprep.subr.mxu0 0.0
    %2656 = vmatpush2.msra.mxu0 0.0
    %2657 = vmatprep.subr.mxu0 0.0
    %2658 = vmatpush2.msra.mxu0 0.0
    %2659 = vmatprep.subr.mxu0 0.0
    %2660 = vmatpush2.msra.mxu0 0.0
    %2661 = vmatprep.mubr.f32.mxu0 0.0
    %2662 = vmatmul.mubr.f32.gmra.mxu0 %v2595
    %v2663 = vpop.f32.mrf.mxu0
    %v2664 = vadd.f32 %v2591, %v2663
    %v2665 = vpop.f32.mrf.mxu0
    %2666 = vdwg.mxu0
    %v2667 = vmax.f32 %v2664, 0.0
    %2669 = vrot.lane.b32.xlu0 %v2667, 96
    %v2670 = vpop.permute.xlu0 %2669
    %v2672 = vmax.f32 %v2667, %v2670
    %2674 = vrot.lane.b32.xlu0 %v2672, 64
    %v2675 = vpop.permute.xlu0 %2674
    %v2677 = vmax.f32 %v2672, %v2675
    %v2678 = vld [vmem:[%s7] sm:$0xff]
    %v2679 = vld [vmem:[%s7 + $0x8] sm:$0xff]
    %v2680 = vld [vmem:[%s7 + $0x10] sm:$0xff]
    %v2681 = vld [vmem:[%s7 + $0x18] sm:$0xff]
    %v2682 = vld [vmem:[#allocation13] sm:$0x1]
    %v2684 = vlaneseq
    %v2685 = vshrl.u32 %v2684, 7
    %v2686 = vsub.s32 0, %v2685
    %v2687 = vrot.slane %v2682, %v2686
    %vm2689 = vcmask 261120
    %v2691 = vsel %vm2689, %v2677, 0
    %2693 = vmatprep.subr.mxu0 0.0
    %2694 = vmatpush1.msra.mxu0 0.0
    %2695 = vmatprep.subr.mxu0 0.0
    %2696 = vmatpush1.msra.mxu0 0.0
    %2697 = vmatprep.subr.mxu0 0.0
    %2698 = vmatpush1.msra.mxu0 0.0
    %2699 = vmatprep.subr.mxu0 0.0
    %2700 = vmatpush1.msra.mxu0 0.0
    %2701 = vmatprep.subr.mxu0 0.0
    %2702 = vmatpush1.msra.mxu0 0.0
    %2703 = vmatprep.subr.mxu0 0.0
    %2704 = vmatpush1.msra.mxu0 0.0
    %2705 = vmatprep.subr.mxu0 0.0
    %2706 = vmatpush1.msra.mxu0 0.0
    %2707 = vmatprep.subr.mxu0 0.0
    %2708 = vmatpush1.msra.mxu0 0.0
    %2709 = vmatprep.subr.mxu0 0.0
    %2710 = vmatpush1.msra.mxu0 0.0
    %2711 = vmatprep.subr.mxu0 0.0
    %2712 = vmatpush1.msra.mxu0 0.0
    %2713 = vmatprep.subr.mxu0 0.0
    %2714 = vmatpush1.msra.mxu0 0.0
    %2715 = vmatprep.subr.mxu0 0.0
    %2716 = vmatpush1.msra.mxu0 0.0
    %2717 = vmatprep.subr.mxu0 0.0
    %2718 = vmatpush1.msra.mxu0 %v2681
    %2719 = vmatprep.subr.mxu0 0.0
    %2720 = vmatpush1.msra.mxu0 %v2680
    %2721 = vmatprep.subr.mxu0 0.0
    %2722 = vmatpush1.msra.mxu0 %v2679
    %2723 = vmatprep.subr.mxu0 0.0
    %2724 = vmatpush1.msra.mxu0 %v2678
    %2725 = vmatprep.subr.mxu0 0.0
    %2726 = vmatpush2.msra.mxu0 0.0
    %2727 = vmatprep.subr.mxu0 0.0
    %2728 = vmatpush2.msra.mxu0 0.0
    %2729 = vmatprep.subr.mxu0 0.0
    %2730 = vmatpush2.msra.mxu0 0.0
    %2731 = vmatprep.subr.mxu0 0.0
    %2732 = vmatpush2.msra.mxu0 0.0
    %2733 = vmatprep.subr.mxu0 0.0
    %2734 = vmatpush2.msra.mxu0 0.0
    %2735 = vmatprep.subr.mxu0 0.0
    %2736 = vmatpush2.msra.mxu0 0.0
    %2737 = vmatprep.subr.mxu0 0.0
    %2738 = vmatpush2.msra.mxu0 0.0
    %2739 = vmatprep.subr.mxu0 0.0
    %2740 = vmatpush2.msra.mxu0 0.0
    %2741 = vmatprep.subr.mxu0 0.0
    %2742 = vmatpush2.msra.mxu0 0.0
    %2743 = vmatprep.subr.mxu0 0.0
    %2744 = vmatpush2.msra.mxu0 0.0
    %2745 = vmatprep.subr.mxu0 0.0
    %2746 = vmatpush2.msra.mxu0 0.0
    %2747 = vmatprep.subr.mxu0 0.0
    %2748 = vmatpush2.msra.mxu0 0.0
    %2749 = vmatprep.subr.mxu0 0.0
    %2750 = vmatpush2.msra.mxu0 0.0
    %2751 = vmatprep.subr.mxu0 0.0
    %2752 = vmatpush2.msra.mxu0 0.0
    %2753 = vmatprep.subr.mxu0 0.0
    %2754 = vmatpush2.msra.mxu0 0.0
    %2755 = vmatprep.subr.mxu0 0.0
    %2756 = vmatpush2.msra.mxu0 0.0
    %2757 = vmatprep.mubr.f32.mxu0 0.0
    %2758 = vmatmul.mubr.f32.gmra.mxu0 %v2691
    %v2759 = vpop.f32.mrf.mxu0
    %v2760 = vadd.f32 %v2687, %v2759
    %v2761 = vpop.f32.mrf.mxu0
    %2762 = vdwg.mxu0
    %v2763 = vmax.f32 %v2760, 0.0
    %v2764 = vld [vmem:[%s9] sm:$0xff]
    %v2765 = vld [vmem:[#allocation14] sm:$0x1]
    %v2767 = vlaneseq
    %v2768 = vshrl.u32 %v2767, 7
    %v2769 = vsub.s32 0, %v2768
    %v2770 = vrot.slane %v2765, %v2769
    %vm2772 = vcmask 64512
    %v2774 = vsel %vm2772, %v2763, 0
    %2776 = vmatprep.subr.mxu0 0.0
    %2777 = vmatpush1.msra.mxu0 0.0
    %2778 = vmatprep.subr.mxu0 0.0
    %2779 = vmatpush1.msra.mxu0 0.0
    %2780 = vmatprep.subr.mxu0 0.0
    %2781 = vmatpush1.msra.mxu0 0.0
    %2782 = vmatprep.subr.mxu0 0.0
    %2783 = vmatpush1.msra.mxu0 0.0
    %2784 = vmatprep.subr.mxu0 0.0
    %2785 = vmatpush1.msra.mxu0 0.0
    %2786 = vmatprep.subr.mxu0 0.0
    %2787 = vmatpush1.msra.mxu0 0.0
    %2788 = vmatprep.subr.mxu0 0.0
    %2789 = vmatpush1.msra.mxu0 0.0
    %2790 = vmatprep.subr.mxu0 0.0
    %2791 = vmatpush1.msra.mxu0 0.0
    %2792 = vmatprep.subr.mxu0 0.0
    %2793 = vmatpush1.msra.mxu0 0.0
    %2794 = vmatprep.subr.mxu0 0.0
    %2795 = vmatpush1.msra.mxu0 0.0
    %2796 = vmatprep.subr.mxu0 0.0
    %2797 = vmatpush1.msra.mxu0 0.0
    %2798 = vmatprep.subr.mxu0 0.0
    %2799 = vmatpush1.msra.mxu0 0.0
    %2800 = vmatprep.subr.mxu0 0.0
    %2801 = vmatpush1.msra.mxu0 0.0
    %2802 = vmatprep.subr.mxu0 0.0
    %2803 = vmatpush1.msra.mxu0 0.0
    %2804 = vmatprep.subr.mxu0 0.0
    %2805 = vmatpush1.msra.mxu0 0.0
    %2806 = vmatprep.subr.mxu0 0.0
    %2807 = vmatpush1.msra.mxu0 %v2764
    %2808 = vmatprep.subr.mxu0 0.0
    %2809 = vmatpush2.msra.mxu0 0.0
    %2810 = vmatprep.subr.mxu0 0.0
    %2811 = vmatpush2.msra.mxu0 0.0
    %2812 = vmatprep.subr.mxu0 0.0
    %2813 = vmatpush2.msra.mxu0 0.0
    %2814 = vmatprep.subr.mxu0 0.0
    %2815 = vmatpush2.msra.mxu0 0.0
    %2816 = vmatprep.subr.mxu0 0.0
    %2817 = vmatpush2.msra.mxu0 0.0
    %2818 = vmatprep.subr.mxu0 0.0
    %2819 = vmatpush2.msra.mxu0 0.0
    %2820 = vmatprep.subr.mxu0 0.0
    %2821 = vmatpush2.msra.mxu0 0.0
    %2822 = vmatprep.subr.mxu0 0.0
    %2823 = vmatpush2.msra.mxu0 0.0
    %2824 = vmatprep.subr.mxu0 0.0
    %2825 = vmatpush2.msra.mxu0 0.0
    %2826 = vmatprep.subr.mxu0 0.0
    %2827 = vmatpush2.msra.mxu0 0.0
    %2828 = vmatprep.subr.mxu0 0.0
    %2829 = vmatpush2.msra.mxu0 0.0
    %2830 = vmatprep.subr.mxu0 0.0
    %2831 = vmatpush2.msra.mxu0 0.0
    %2832 = vmatprep.subr.mxu0 0.0
    %2833 = vmatpush2.msra.mxu0 0.0
    %2834 = vmatprep.subr.mxu0 0.0
    %2835 = vmatpush2.msra.mxu0 0.0
    %2836 = vmatprep.subr.mxu0 0.0
    %2837 = vmatpush2.msra.mxu0 0.0
    %2838 = vmatprep.subr.mxu0 0.0
    %2839 = vmatpush2.msra.mxu0 0.0
    %2840 = vmatprep.mubr.f32.mxu0 0.0
    %2841 = vmatmul.mubr.f32.gmra.mxu0 %v2774
    %v2842 = vpop.f32.mrf.mxu0
    %v2843 = vadd.f32 %v2770, %v2842
    %v2844 = vpop.f32.mrf.mxu0
    %2845 = vdwg.mxu0
    %vm2846 = vcmask 9216
    %2847 = vst.msk [vmem:[#allocation16] sm:$0x3] %vm2846, %v2843
    // Predicated region
    $region78: #{forward.1} parent=1 // pred_check
      _
    $region79: #{forward.1} parent=1 // pred_check_branch
      %2849 = sbr.rel (0) target = $region81
    $region80: #{forward.1} parent=1 // pred_region
      %s2851 = ssub.s32 32, 32
      %2852 = vsyncadd [#allocation4], %s2851
      %s2854 = sshll.u32 [#allocation16], 4
      %s2855 = int_to_ptr.vmem [resolvable:$true] %s2854
      %2857 = dma.vmem_to_hbm [thread:$0]  %s2855, 32, %s11, [#allocation4]
    $region81: #{forward.1} parent=1 // pred_fallthru
      _
    // Predicated region
    $region82: #{forward.1} parent=1 // pred_check
      _
    $region83: #{forward.1} parent=1 // pred_check_branch
      %2859 = sbr.rel (0) target = $region85
    $region84: #{forward.1} parent=1 // pred_region
      %2860 = dma.done [#allocation4], 32
    $region85: #{forward.1} parent=1 // pred_fallthru
      _
    %2861 = vsyncpa [#allocation3], 1
    %2862 = vsyncpa [#allocation6], 1
    %2863 = vsyncpa [#allocation9], 1
    %2864 = vsyncpa [#allocation12], 1
    %2865 = vsyncpa [#allocation15], 1
    %2866 = vsyncpa [#allocation4], 1

</llo_original>
